<compile_context>
chip_gen: v5e
topology: v5e:2x2
jax: 0.10.0
libtpu: 0.0.40
codegen_flags: <defaults>
</compile_context>

<pallas_src>
import jax
import jax.numpy as jnp
from jax.experimental import pallas as pl
from jax.experimental.pallas import tpu as pltpu

LANES = 128    # lane-dense channel padding for conv/FC outputs
TM_MAX = 512   # max rows per grid step (keeps double-buffered VMEM small)


def _pick_tm(m):
    """Row tile: full extent when small, else a sublane-friendly 512-row tile."""
    return m if m <= TM_MAX else TM_MAX


# ----------------------------- Pallas kernels -----------------------------

def _conv_bias_relu_pool_kernel(p_ref, w_ref, b_ref, o_ref):
    """Fused im2col-matmul + bias + ReLU + 2x2 max-pool for one row tile.

    p_ref: (4, TM, K) bf16 patches; leading axis = position in the 2x2 pool
           window for the same output pixel.
    w_ref: (K, 128) bf16 weights (Cout zero-padded to 128 lanes).
    b_ref: (1, 128) f32 bias.
    o_ref: (TM, 128) f32 pooled, ReLU'd output.
    """
    w = w_ref[...]
    # Running max over the 4 pool positions; ReLU(max(x)+b) == max(ReLU(x+b))
    # since bias is shared and ReLU is monotonic.
    m = jnp.dot(p_ref[0], w, preferred_element_type=jnp.float32)
    for q in range(1, 4):
        m = jnp.maximum(m, jnp.dot(p_ref[q], w,
                                   preferred_element_type=jnp.float32))
    o_ref[...] = jnp.maximum(m + b_ref[...], 0.0)


def _matmul_bias_kernel(x_ref, w_ref, b_ref, o_ref):
    acc = jnp.dot(x_ref[...], w_ref[...], preferred_element_type=jnp.float32)
    o_ref[...] = acc + b_ref[...]


# --------------------------- Pallas call wrappers --------------------------

def conv_relu_pool(patches, w_mat, b_row):
    """patches: (4, M, K) bf16; w_mat: (K, 128) bf16; b_row: (1, 128) f32
    -> (M, 128) f32 pooled conv output (channels zero-padded to 128)."""
    _, m, k = patches.shape
    tm = _pick_tm(m)
    grid = (pl.cdiv(m, tm),)
    flops = 2 * m * k * LANES * 4
    bytes_accessed = (patches.size * 2 + w_mat.size * 2 + b_row.size * 4
                      + m * LANES * 4)
    return pl.pallas_call(
        _conv_bias_relu_pool_kernel,
        out_shape=jax.ShapeDtypeStruct((m, LANES), jnp.float32),
        grid_spec=pltpu.PrefetchScalarGridSpec(
            num_scalar_prefetch=0,
            grid=grid,
            in_specs=[
                pl.BlockSpec((4, tm, k), lambda i: (0, i, 0)),
                pl.BlockSpec((k, LANES), lambda i: (0, 0)),
                pl.BlockSpec((1, LANES), lambda i: (0, 0)),
            ],
            out_specs=pl.BlockSpec((tm, LANES), lambda i: (i, 0)),
        ),
        compiler_params=pltpu.CompilerParams(
            dimension_semantics=("parallel",)),
        cost_estimate=pl.CostEstimate(
            flops=flops, transcendentals=0, bytes_accessed=bytes_accessed),
    )(patches, w_mat, b_row)


def matmul_bias(x, w_mat, b_row):
    """x: (M, K) bf16; w_mat: (K, 128) bf16; b_row: (1, 128) f32 -> (M, 128) f32."""
    m, k = x.shape
    tm = _pick_tm(m)
    grid = (pl.cdiv(m, tm),)
    return pl.pallas_call(
        _matmul_bias_kernel,
        out_shape=jax.ShapeDtypeStruct((m, LANES), jnp.float32),
        grid_spec=pltpu.PrefetchScalarGridSpec(
            num_scalar_prefetch=0,
            grid=grid,
            in_specs=[
                pl.BlockSpec((tm, k), lambda i: (i, 0)),
                pl.BlockSpec((k, LANES), lambda i: (0, 0)),
                pl.BlockSpec((1, LANES), lambda i: (0, 0)),
            ],
            out_specs=pl.BlockSpec((tm, LANES), lambda i: (i, 0)),
        ),
        compiler_params=pltpu.CompilerParams(
            dimension_semantics=("parallel",)),
        cost_estimate=pl.CostEstimate(
            flops=2 * m * k * LANES, transcendentals=0,
            bytes_accessed=(x.size * 2 + w_mat.size * 2 + b_row.size * 4
                            + m * LANES * 4)),
    )(x, w_mat, b_row)


# ------------------------------- Glue (XLA) --------------------------------

def im2col_pool_quadrants(x, k=5):
    """x: (N,H,W,C) f32 -> (4, N*(H//2)*(W//2), k*k*C) bf16 patches.

    Leading axis q = 2*py+px is the position inside the 2x2 max-pool window
    (conv output pixel (2*oh+py, 2*ow+px)); rows are ordered (n, oh, ow);
    features are ordered (kh, kw, c) to match the (2,3,1,0) weight transpose.
    """
    n, h, w, c = x.shape
    pad = k // 2
    oh, ow = h // 2, w // 2
    xp = jnp.pad(x, ((0, 0), (pad, pad), (pad, pad), (0, 0)))
    taps = [xp[:, dh:dh + h, dw:dw + w, :] for dh in range(k) for dw in range(k)]
    p = jnp.stack(taps, axis=3)                          # (N, H, W, k*k, C)
    p = p.reshape(n, oh, 2, ow, 2, k * k, c)             # split pool windows
    p = jnp.transpose(p, (2, 4, 0, 1, 3, 5, 6))          # (py, px, N, OH, OW, kk, C)
    return p.reshape(4, n * oh * ow, k * k * c).astype(jnp.bfloat16)


def convnet_forward(x_nchw, p, kernels=(16, 32), classes=10):
    """x_nchw: (N,1,28,28) f32 -> logits (N, classes) f32."""
    c1, c2 = kernels
    n, _, h, w = x_nchw.shape
    x = jnp.transpose(x_nchw, (0, 2, 3, 1))              # NCHW -> NHWC

    # conv1 + bias + ReLU + 2x2 max-pool (one fused, gridded Pallas kernel)
    p1 = im2col_pool_quadrants(x, k=5)                   # (4, N*14*14, 25)
    a1 = conv_relu_pool(p1, p["w1"], p["b1"])            # (N*14*14, 128) f32
    oh1, ow1 = h // 2, w // 2
    a1 = a1.reshape(n, oh1, ow1, LANES)[..., :c1]        # (N,14,14,16)

    # conv2 + bias + ReLU + 2x2 max-pool
    p2 = im2col_pool_quadrants(a1, k=5)                  # (4, N*7*7, 400)
    a2 = conv_relu_pool(p2, p["w2"], p["b2"])            # (N*7*7, 128) f32
    oh2, ow2 = oh1 // 2, ow1 // 2

    # FC: the flatten keeps (h, w, c_padded128) order; the permutation to
    # PyTorch's (c, h, w) flatten order and the channel padding were folded
    # into p["fc_w"] once at prepare time, so there is no per-call transpose.
    flat = a2.reshape(n, oh2 * ow2 * LANES).astype(jnp.bfloat16)   # (N, 6272)
    logits = matmul_bias(flat, p["fc_w"], p["fc_b"])               # (N, 128)
    return logits[:, :classes]


# ------------------------------ Parameters ---------------------------------

def init_params(key, kernels=(16, 32), classes=10):
    """PyTorch-layout parameters (Cout,Cin,kh,kw) / (classes, 7*7*C2)."""
    k1, k2, k3, k4, k5, k6 = jax.random.split(key, 6)
    c1, c2 = kernels
    fan1 = 1 * 5 * 5
    fan2 = 16 * 5 * 5
    fan3 = 7 * 7 * c2
    return {
        "w1": jax.random.normal(k1, (c1, 1, 5, 5), jnp.float32) / jnp.sqrt(fan1),
        "b1": jax.random.normal(k2, (c1,), jnp.float32) * 0.01,
        "w2": jax.random.normal(k3, (c2, 16, 5, 5), jnp.float32) / jnp.sqrt(fan2),
        "b2": jax.random.normal(k4, (c2,), jnp.float32) * 0.01,
        "fc_w": jax.random.normal(k5, (classes, fan3), jnp.float32) / jnp.sqrt(fan3),
        "fc_b": jax.random.normal(k6, (classes,), jnp.float32) * 0.01,
    }


def prepare_params(params, kernels=(16, 32), classes=10):
    """One-time weight-layout prep (run once, outside jit).

    - conv weights (Cout,Cin,5,5) -> (5*5*Cin, 128) bf16, Cout zero-padded
    - biases -> (1, 128) f32, zero-padded
    - fc weight -> (7*7*128, 128) bf16 with the NCHW-flatten permutation and
      channel/output padding folded in (padded rows/cols are zero).
    """
    c1, c2 = kernels

    def conv_w(wt):
        cout, cin, kh, kw = wt.shape
        m = jnp.transpose(wt, (2, 3, 1, 0)).reshape(kh * kw * cin, cout)
        return jnp.pad(m, ((0, 0), (0, LANES - cout))).astype(jnp.bfloat16)

    def pad_b(b):
        return jnp.pad(b, (0, LANES - b.shape[0])).reshape(1, LANES).astype(jnp.float32)

    fc_w = params["fc_w"].reshape(classes, c2, 7, 7)
    fc_w = jnp.transpose(fc_w, (2, 3, 1, 0))                          # (7,7,C2,classes)
    fc_w = jnp.pad(fc_w, ((0, 0), (0, 0), (0, LANES - c2), (0, LANES - classes)))
    fc_w = fc_w.reshape(7 * 7 * LANES, LANES).astype(jnp.bfloat16)
    fc_b = jnp.pad(params["fc_b"], (0, LANES - classes)).reshape(1, LANES)
    fc_b = fc_b.astype(jnp.float32)

    return {
        "w1": conv_w(params["w1"]), "b1": pad_b(params["b1"]),
        "w2": conv_w(params["w2"]), "b2": pad_b(params["b2"]),
        "fc_w": fc_w, "fc_b": fc_b,
    }


if __name__ == "__main__":
    key = jax.random.PRNGKey(0)
    key_x, key_p = jax.random.split(key)

    # fc expects 7*7*kernels[-1] features, i.e. 28x28 input (MNIST-style).
    x = jax.random.normal(key_x, (2, 1, 28, 28), jnp.float32)
    raw_params = init_params(key_p, kernels=(16, 32), classes=10)
    params = prepare_params(raw_params, kernels=(16, 32), classes=10)

    fwd = jax.jit(convnet_forward)
    logits = fwd(x, params)
    jax.block_until_ready(logits)

    assert logits.shape == (2, 10)
    assert logits.dtype == jnp.float32
    assert bool(jnp.all(jnp.isfinite(logits)))
    print("KERNEL_OK")
</pallas_src>

<mosaic_0001>
module attributes {stable_mosaic.version = 11 : i64} {
  func.func @_conv_bias_relu_pool_kernel(%arg0: i32, %arg1: memref<4x392x25xbf16, #tpu.memory_space<vmem>>, %arg2: memref<25x128xbf16, #tpu.memory_space<vmem>>, %arg3: memref<1x128xf32, #tpu.memory_space<vmem>>, %arg4: memref<392x128xf32, #tpu.memory_space<vmem>>) attributes {dimension_semantics = [#tpu.dimension_semantics<parallel>], iteration_bounds = array<i64: 1>, scalar_prefetch = 0 : i64, scratch_operands = 0 : i64, tpu.core_type = #tpu.core_type<tc>, window_params = [{transform_indices = @transform_0, window_bounds = array<i64: 4, 392, 25>}, {pipeline_mode = #tpu.pipeline_mode<synchronous>, transform_indices = @transform_1, window_bounds = array<i64: 25, 128>}, {pipeline_mode = #tpu.pipeline_mode<synchronous>, transform_indices = @transform_2, window_bounds = array<i64: 1, 128>}, {transform_indices = @transform_3, window_bounds = array<i64: 392, 128>}]} {
    %c0 = arith.constant 0 : index
    %c0_0 = arith.constant 0 : index
    %0 = vector.load %arg2[%c0, %c0_0] : memref<25x128xbf16, #tpu.memory_space<vmem>>, vector<25x128xbf16>
    %c0_1 = arith.constant 0 : index
    %c0_2 = arith.constant 0 : index
    %c0_3 = arith.constant 0 : index
    %1 = vector.load %arg1[%c0_1, %c0_2, %c0_3] : memref<4x392x25xbf16, #tpu.memory_space<vmem>>, vector<1x392x25xbf16>
    %2 = vector.shape_cast %1 : vector<1x392x25xbf16> to vector<392x25xbf16>
    %cst = arith.constant dense<0.000000e+00> : vector<392x128xf32>
    %3 = tpu.matmul %2, %0, %cst {dimension_numbers = #tpu.dot_dimension_numbers<[1], [0], [0], [1], [0, 0, 1, 1], [], []>} : vector<392x25xbf16>, vector<25x128xbf16>, vector<392x128xf32> -> vector<392x128xf32>
    %c1 = arith.constant 1 : index
    %c0_4 = arith.constant 0 : index
    %c0_5 = arith.constant 0 : index
    %4 = vector.load %arg1[%c1, %c0_4, %c0_5] : memref<4x392x25xbf16, #tpu.memory_space<vmem>>, vector<1x392x25xbf16>
    %5 = vector.shape_cast %4 : vector<1x392x25xbf16> to vector<392x25xbf16>
    %cst_6 = arith.constant dense<0.000000e+00> : vector<392x128xf32>
    %6 = tpu.matmul %5, %0, %cst_6 {dimension_numbers = #tpu.dot_dimension_numbers<[1], [0], [0], [1], [0, 0, 1, 1], [], []>} : vector<392x25xbf16>, vector<25x128xbf16>, vector<392x128xf32> -> vector<392x128xf32>
    %7 = arith.maximumf %3, %6 : vector<392x128xf32>
    %c2 = arith.constant 2 : index
    %c0_7 = arith.constant 0 : index
    %c0_8 = arith.constant 0 : index
    %8 = vector.load %arg1[%c2, %c0_7, %c0_8] : memref<4x392x25xbf16, #tpu.memory_space<vmem>>, vector<1x392x25xbf16>
    %9 = vector.shape_cast %8 : vector<1x392x25xbf16> to vector<392x25xbf16>
    %cst_9 = arith.constant dense<0.000000e+00> : vector<392x128xf32>
    %10 = tpu.matmul %9, %0, %cst_9 {dimension_numbers = #tpu.dot_dimension_numbers<[1], [0], [0], [1], [0, 0, 1, 1], [], []>} : vector<392x25xbf16>, vector<25x128xbf16>, vector<392x128xf32> -> vector<392x128xf32>
    %11 = arith.maximumf %7, %10 : vector<392x128xf32>
    %c3 = arith.constant 3 : index
    %c0_10 = arith.constant 0 : index
    %c0_11 = arith.constant 0 : index
    %12 = vector.load %arg1[%c3, %c0_10, %c0_11] : memref<4x392x25xbf16, #tpu.memory_space<vmem>>, vector<1x392x25xbf16>
    %13 = vector.shape_cast %12 : vector<1x392x25xbf16> to vector<392x25xbf16>
    %cst_12 = arith.constant dense<0.000000e+00> : vector<392x128xf32>
    %14 = tpu.matmul %13, %0, %cst_12 {dimension_numbers = #tpu.dot_dimension_numbers<[1], [0], [0], [1], [0, 0, 1, 1], [], []>} : vector<392x25xbf16>, vector<25x128xbf16>, vector<392x128xf32> -> vector<392x128xf32>
    %15 = arith.maximumf %11, %14 : vector<392x128xf32>
    %c0_13 = arith.constant 0 : index
    %c0_14 = arith.constant 0 : index
    %16 = vector.load %arg3[%c0_13, %c0_14] : memref<1x128xf32, #tpu.memory_space<vmem>>, vector<1x128xf32>
    %17 = vector.broadcast %16 : vector<1x128xf32> to vector<392x128xf32>
    %18 = arith.addf %15, %17 : vector<392x128xf32>
    %cst_15 = arith.constant 0.000000e+00 : f32
    %19 = vector.broadcast %cst_15 : f32 to vector<392x128xf32>
    %20 = arith.maximumf %18, %19 : vector<392x128xf32>
    %c0_16 = arith.constant 0 : index
    %c0_17 = arith.constant 0 : index
    %21 = vector.load %arg4[%c0_16, %c0_17] : memref<392x128xf32, #tpu.memory_space<vmem>>, vector<392x128xf32>
    tpu.vector_store %arg4[%c0_16, %c0_17], %20 {strides = array<i32>} : memref<392x128xf32, #tpu.memory_space<vmem>>, vector<392x128xf32>,
    return
  }
  func.func @transform_0(%arg0: i32) -> (i32, i32, i32) {
    %c0_i32 = arith.constant 0 : i32
    %c0_i32_0 = arith.constant 0 : i32
    %c0_i32_1 = arith.constant 0 : i32
    return %c0_i32, %arg0, %c0_i32_0 : i32, i32, i32
  }
  func.func @transform_1(%arg0: i32) -> (i32, i32) {
    %c0_i32 = arith.constant 0 : i32
    %c0_i32_0 = arith.constant 0 : i32
    %c0_i32_1 = arith.constant 0 : i32
    return %c0_i32, %c0_i32_0 : i32, i32
  }
  func.func @transform_2(%arg0: i32) -> (i32, i32) {
    %c0_i32 = arith.constant 0 : i32
    %c0_i32_0 = arith.constant 0 : i32
    %c0_i32_1 = arith.constant 0 : i32
    return %c0_i32, %c0_i32_0 : i32, i32
  }
  func.func @transform_3(%arg0: i32) -> (i32, i32) {
    %c0_i32 = arith.constant 0 : i32
    %c0_i32_0 = arith.constant 0 : i32
    return %arg0, %c0_i32 : i32, i32
  }
}

module attributes {stable_mosaic.version = 11 : i64} {
  func.func @_conv_bias_relu_pool_kernel(%arg0: i32, %arg1: memref<4x98x400xbf16, #tpu.memory_space<vmem>>, %arg2: memref<400x128xbf16, #tpu.memory_space<vmem>>, %arg3: memref<1x128xf32, #tpu.memory_space<vmem>>, %arg4: memref<98x128xf32, #tpu.memory_space<vmem>>) attributes {dimension_semantics = [#tpu.dimension_semantics<parallel>], iteration_bounds = array<i64: 1>, scalar_prefetch = 0 : i64, scratch_operands = 0 : i64, tpu.core_type = #tpu.core_type<tc>, window_params = [{transform_indices = @transform_0, window_bounds = array<i64: 4, 98, 400>}, {pipeline_mode = #tpu.pipeline_mode<synchronous>, transform_indices = @transform_1, window_bounds = array<i64: 400, 128>}, {pipeline_mode = #tpu.pipeline_mode<synchronous>, transform_indices = @transform_2, window_bounds = array<i64: 1, 128>}, {transform_indices = @transform_3, window_bounds = array<i64: 98, 128>}]} {
    %c0 = arith.constant 0 : index
    %c0_0 = arith.constant 0 : index
    %0 = vector.load %arg2[%c0, %c0_0] : memref<400x128xbf16, #tpu.memory_space<vmem>>, vector<400x128xbf16>
    %c0_1 = arith.constant 0 : index
    %c0_2 = arith.constant 0 : index
    %c0_3 = arith.constant 0 : index
    %1 = vector.load %arg1[%c0_1, %c0_2, %c0_3] : memref<4x98x400xbf16, #tpu.memory_space<vmem>>, vector<1x98x400xbf16>
    %2 = vector.shape_cast %1 : vector<1x98x400xbf16> to vector<98x400xbf16>
    %cst = arith.constant dense<0.000000e+00> : vector<98x128xf32>
    %3 = tpu.matmul %2, %0, %cst {dimension_numbers = #tpu.dot_dimension_numbers<[1], [0], [0], [1], [0, 0, 1, 1], [], []>} : vector<98x400xbf16>, vector<400x128xbf16>, vector<98x128xf32> -> vector<98x128xf32>
    %c1 = arith.constant 1 : index
    %c0_4 = arith.constant 0 : index
    %c0_5 = arith.constant 0 : index
    %4 = vector.load %arg1[%c1, %c0_4, %c0_5] : memref<4x98x400xbf16, #tpu.memory_space<vmem>>, vector<1x98x400xbf16>
    %5 = vector.shape_cast %4 : vector<1x98x400xbf16> to vector<98x400xbf16>
    %cst_6 = arith.constant dense<0.000000e+00> : vector<98x128xf32>
    %6 = tpu.matmul %5, %0, %cst_6 {dimension_numbers = #tpu.dot_dimension_numbers<[1], [0], [0], [1], [0, 0, 1, 1], [], []>} : vector<98x400xbf16>, vector<400x128xbf16>, vector<98x128xf32> -> vector<98x128xf32>
    %7 = arith.maximumf %3, %6 : vector<98x128xf32>
    %c2 = arith.constant 2 : index
    %c0_7 = arith.constant 0 : index
    %c0_8 = arith.constant 0 : index
    %8 = vector.load %arg1[%c2, %c0_7, %c0_8] : memref<4x98x400xbf16, #tpu.memory_space<vmem>>, vector<1x98x400xbf16>
    %9 = vector.shape_cast %8 : vector<1x98x400xbf16> to vector<98x400xbf16>
    %cst_9 = arith.constant dense<0.000000e+00> : vector<98x128xf32>
    %10 = tpu.matmul %9, %0, %cst_9 {dimension_numbers = #tpu.dot_dimension_numbers<[1], [0], [0], [1], [0, 0, 1, 1], [], []>} : vector<98x400xbf16>, vector<400x128xbf16>, vector<98x128xf32> -> vector<98x128xf32>
    %11 = arith.maximumf %7, %10 : vector<98x128xf32>
    %c3 = arith.constant 3 : index
    %c0_10 = arith.constant 0 : index
    %c0_11 = arith.constant 0 : index
    %12 = vector.load %arg1[%c3, %c0_10, %c0_11] : memref<4x98x400xbf16, #tpu.memory_space<vmem>>, vector<1x98x400xbf16>
    %13 = vector.shape_cast %12 : vector<1x98x400xbf16> to vector<98x400xbf16>
    %cst_12 = arith.constant dense<0.000000e+00> : vector<98x128xf32>
    %14 = tpu.matmul %13, %0, %cst_12 {dimension_numbers = #tpu.dot_dimension_numbers<[1], [0], [0], [1], [0, 0, 1, 1], [], []>} : vector<98x400xbf16>, vector<400x128xbf16>, vector<98x128xf32> -> vector<98x128xf32>
    %15 = arith.maximumf %11, %14 : vector<98x128xf32>
    %c0_13 = arith.constant 0 : index
    %c0_14 = arith.constant 0 : index
    %16 = vector.load %arg3[%c0_13, %c0_14] : memref<1x128xf32, #tpu.memory_space<vmem>>, vector<1x128xf32>
    %17 = vector.broadcast %16 : vector<1x128xf32> to vector<98x128xf32>
    %18 = arith.addf %15, %17 : vector<98x128xf32>
    %cst_15 = arith.constant 0.000000e+00 : f32
    %19 = vector.broadcast %cst_15 : f32 to vector<98x128xf32>
    %20 = arith.maximumf %18, %19 : vector<98x128xf32>
    %c0_16 = arith.constant 0 : index
    %c0_17 = arith.constant 0 : index
    %21 = vector.load %arg4[%c0_16, %c0_17] : memref<98x128xf32, #tpu.memory_space<vmem>>, vector<98x128xf32>
    tpu.vector_store %arg4[%c0_16, %c0_17], %20 {strides = array<i32>} : memref<98x128xf32, #tpu.memory_space<vmem>>, vector<98x128xf32>,
    return
  }
  func.func @transform_0(%arg0: i32) -> (i32, i32, i32) {
    %c0_i32 = arith.constant 0 : i32
    %c0_i32_0 = arith.constant 0 : i32
    %c0_i32_1 = arith.constant 0 : i32
    return %c0_i32, %arg0, %c0_i32_0 : i32, i32, i32
  }
  func.func @transform_1(%arg0: i32) -> (i32, i32) {
    %c0_i32 = arith.constant 0 : i32
    %c0_i32_0 = arith.constant 0 : i32
    %c0_i32_1 = arith.constant 0 : i32
    return %c0_i32, %c0_i32_0 : i32, i32
  }
  func.func @transform_2(%arg0: i32) -> (i32, i32) {
    %c0_i32 = arith.constant 0 : i32
    %c0_i32_0 = arith.constant 0 : i32
    %c0_i32_1 = arith.constant 0 : i32
    return %c0_i32, %c0_i32_0 : i32, i32
  }
  func.func @transform_3(%arg0: i32) -> (i32, i32) {
    %c0_i32 = arith.constant 0 : i32
    %c0_i32_0 = arith.constant 0 : i32
    return %arg0, %c0_i32 : i32, i32
  }
}

module attributes {stable_mosaic.version = 11 : i64} {
  func.func @_matmul_bias_kernel(%arg0: i32, %arg1: memref<2x6272xbf16, #tpu.memory_space<vmem>>, %arg2: memref<6272x128xbf16, #tpu.memory_space<vmem>>, %arg3: memref<1x128xf32, #tpu.memory_space<vmem>>, %arg4: memref<2x128xf32, #tpu.memory_space<vmem>>) attributes {dimension_semantics = [#tpu.dimension_semantics<parallel>], iteration_bounds = array<i64: 1>, scalar_prefetch = 0 : i64, scratch_operands = 0 : i64, tpu.core_type = #tpu.core_type<tc>, window_params = [{transform_indices = @transform_0, window_bounds = array<i64: 2, 6272>}, {pipeline_mode = #tpu.pipeline_mode<synchronous>, transform_indices = @transform_1, window_bounds = array<i64: 6272, 128>}, {pipeline_mode = #tpu.pipeline_mode<synchronous>, transform_indices = @transform_2, window_bounds = array<i64: 1, 128>}, {transform_indices = @transform_3, window_bounds = array<i64: 2, 128>}]} {
    %c0 = arith.constant 0 : index
    %c0_0 = arith.constant 0 : index
    %0 = vector.load %arg1[%c0, %c0_0] : memref<2x6272xbf16, #tpu.memory_space<vmem>>, vector<2x6272xbf16>
    %c0_1 = arith.constant 0 : index
    %c0_2 = arith.constant 0 : index
    %1 = vector.load %arg2[%c0_1, %c0_2] : memref<6272x128xbf16, #tpu.memory_space<vmem>>, vector<6272x128xbf16>
    %cst = arith.constant dense<0.000000e+00> : vector<2x128xf32>
    %2 = tpu.matmul %0, %1, %cst {dimension_numbers = #tpu.dot_dimension_numbers<[1], [0], [0], [1], [0, 0, 1, 1], [], []>} : vector<2x6272xbf16>, vector<6272x128xbf16>, vector<2x128xf32> -> vector<2x128xf32>
    %c0_3 = arith.constant 0 : index
    %c0_4 = arith.constant 0 : index
    %3 = vector.load %arg3[%c0_3, %c0_4] : memref<1x128xf32, #tpu.memory_space<vmem>>, vector<1x128xf32>
    %4 = vector.broadcast %3 : vector<1x128xf32> to vector<2x128xf32>
    %5 = arith.addf %2, %4 : vector<2x128xf32>
    %c0_5 = arith.constant 0 : index
    %c0_6 = arith.constant 0 : index
    %6 = vector.load %arg4[%c0_5, %c0_6] : memref<2x128xf32, #tpu.memory_space<vmem>>, vector<2x128xf32>
    tpu.vector_store %arg4[%c0_5, %c0_6], %5 {strides = array<i32>} : memref<2x128xf32, #tpu.memory_space<vmem>>, vector<2x128xf32>,
    return
  }
  func.func @transform_0(%arg0: i32) -> (i32, i32) {
    %c0_i32 = arith.constant 0 : i32
    %c0_i32_0 = arith.constant 0 : i32
    return %arg0, %c0_i32 : i32, i32
  }
  func.func @transform_1(%arg0: i32) -> (i32, i32) {
    %c0_i32 = arith.constant 0 : i32
    %c0_i32_0 = arith.constant 0 : i32
    %c0_i32_1 = arith.constant 0 : i32
    return %c0_i32, %c0_i32_0 : i32, i32
  }
  func.func @transform_2(%arg0: i32) -> (i32, i32) {
    %c0_i32 = arith.constant 0 : i32
    %c0_i32_0 = arith.constant 0 : i32
    %c0_i32_1 = arith.constant 0 : i32
    return %c0_i32, %c0_i32_0 : i32, i32
  }
  func.func @transform_3(%arg0: i32) -> (i32, i32) {
    %c0_i32 = arith.constant 0 : i32
    %c0_i32_0 = arith.constant 0 : i32
    return %arg0, %c0_i32 : i32, i32
  }
}

</mosaic_0001>

<llo_original>
// kernel: convnet_forward.3
$region0: #{convnet_forward.3}
  #allocation0 [shape = 'u32[]', space=smem, size = 0x4, offset = 0x4, fixed_abs, tag = 'smem constant byte address 0x4 - core index']
  #allocation1 [shape = 'u32[72,128]{1,0:T(1,128)}', space=vmem, size = 0x9000, scoped, tag = 'internal scratch']
  %s0 = inlined_call_operand.vmem [shape: bf16[4,392,25], index: 0, kind: input, shape index: {}]
  %s1 = inlined_call_operand.vmem [shape: bf16[25,128], index: 1, kind: input, shape index: {}]
  %s2 = inlined_call_operand.vmem [shape: f32[1,128], index: 2, kind: input, shape index: {}]
  %s3 = inlined_call_operand.vmem [shape: f32[392,128], index: 3, kind: output, shape index: {}]
  %s4 = sld [smem:[#allocation0]]
  $region22: #{convnet_forward.3} parent=0
    _
  %s6 = ssub.s32 1, %s4
  %s7 = scalar_select 0, %s6, %s4
  // Predicated region
  $region2: #{convnet_forward.3} parent=0 // pred_check
    _
  $region3: #{convnet_forward.3} parent=0 // pred_check_branch
    %9 = sbr.rel (0) target = $region5
  $region4: #{convnet_forward.3} parent=0 // pred_region
    _
  $region5: #{convnet_forward.3} parent=0 // pred_fallthru
    _
  // Predicated region
  $region6: #{convnet_forward.3} parent=0 // pred_check
    _
  $region7: #{convnet_forward.3} parent=0 // pred_check_branch
    %11 = sbr.rel (0) target = $region9
  $region8: #{convnet_forward.3} parent=0 // pred_region
    _
  $region9: #{convnet_forward.3} parent=0 // pred_fallthru
    _
  // Predicated region
  $region10: #{convnet_forward.3} parent=0 // pred_check
    _
  $region11: #{convnet_forward.3} parent=0 // pred_check_branch
    %13 = sbr.rel (0) target = $region13
  $region12: #{convnet_forward.3} parent=0 // pred_region
    _
  $region13: #{convnet_forward.3} parent=0 // pred_fallthru
    _
  %v15 = vld [vmem:[%s1] sm:$0xf]
  %v16 = vld [vmem:[%s1 + $0x4] sm:$0xf]
  %v17 = vld [vmem:[%s1 + $0x8] sm:$0xf]
  %v18 = vld [vmem:[%s1 + $0xc] sm:$0x1]
  %v19 = vld [vmem:[%s0] sm:$0xf]
  %v20 = vld [vmem:[%s0 + $0x4] sm:$0xf]
  %v21 = vld [vmem:[%s0 + $0x8] sm:$0xf]
  %v22 = vld [vmem:[%s0 + $0xc] sm:$0xf]
  %v23 = vld [vmem:[%s0 + $0x10] sm:$0xf]
  %v24 = vld [vmem:[%s0 + $0x14] sm:$0xf]
  %v25 = vld [vmem:[%s0 + $0x18] sm:$0xf]
  %v26 = vld [vmem:[%s0 + $0x1c] sm:$0xf]
  %v27 = vld [vmem:[%s0 + $0x20] sm:$0xf]
  %v28 = vld [vmem:[%s0 + $0x24] sm:$0xf]
  %v29 = vld [vmem:[%s0 + $0x28] sm:$0xf]
  %v30 = vld [vmem:[%s0 + $0x2c] sm:$0xf]
  %v31 = vld [vmem:[%s0 + $0x30] sm:$0xf]
  %v32 = vld [vmem:[%s0 + $0x34] sm:$0xf]
  %v33 = vld [vmem:[%s0 + $0x38] sm:$0xf]
  %v34 = vld [vmem:[%s0 + $0x3c] sm:$0xf]
  %v35 = vld [vmem:[%s0 + $0x40] sm:$0xf]
  %v36 = vld [vmem:[%s0 + $0x44] sm:$0xf]
  %v37 = vld [vmem:[%s0 + $0x48] sm:$0xf]
  %v38 = vld [vmem:[%s0 + $0x4c] sm:$0xf]
  %v39 = vld [vmem:[%s0 + $0x50] sm:$0xf]
  %v40 = vld [vmem:[%s0 + $0x54] sm:$0xf]
  %v41 = vld [vmem:[%s0 + $0x58] sm:$0xf]
  %v42 = vld [vmem:[%s0 + $0x5c] sm:$0xf]
  %v43 = vld [vmem:[%s0 + $0x60] sm:$0xf]
  %v44 = vld [vmem:[%s0 + $0x64] sm:$0xf]
  %v45 = vld [vmem:[%s0 + $0x68] sm:$0xf]
  %v46 = vld [vmem:[%s0 + $0x6c] sm:$0xf]
  %v47 = vld [vmem:[%s0 + $0x70] sm:$0xf]
  %v48 = vld [vmem:[%s0 + $0x74] sm:$0xf]
  %v49 = vld [vmem:[%s0 + $0x78] sm:$0xf]
  %v50 = vld [vmem:[%s0 + $0x7c] sm:$0xf]
  %v51 = vld [vmem:[%s0 + $0x80] sm:$0xf]
  %v52 = vld [vmem:[%s0 + $0x84] sm:$0xf]
  %v53 = vld [vmem:[%s0 + $0x88] sm:$0xf]
  %v54 = vld [vmem:[%s0 + $0x8c] sm:$0xf]
  %v55 = vld [vmem:[%s0 + $0x90] sm:$0xf]
  %v56 = vld [vmem:[%s0 + $0x94] sm:$0xf]
  %v57 = vld [vmem:[%s0 + $0x98] sm:$0xf]
  %v58 = vld [vmem:[%s0 + $0x9c] sm:$0xf]
  %v59 = vld [vmem:[%s0 + $0xa0] sm:$0xf]
  %v60 = vld [vmem:[%s0 + $0xa4] sm:$0xf]
  %v61 = vld [vmem:[%s0 + $0xa8] sm:$0xf]
  %v62 = vld [vmem:[%s0 + $0xac] sm:$0xf]
  %v63 = vld [vmem:[%s0 + $0xb0] sm:$0xf]
  %v64 = vld [vmem:[%s0 + $0xb4] sm:$0xf]
  %v65 = vld [vmem:[%s0 + $0xb8] sm:$0xf]
  %v66 = vld [vmem:[%s0 + $0xbc] sm:$0xf]
  %v67 = vld [vmem:[%s0 + $0xc0] sm:$0xf]
  %v117 = vunpack.c.l.b16 %v19
  %v118 = vunpack.c.l.b16 %v20
  %v119 = vunpack.c.l.b16 %v21
  %v120 = vunpack.c.l.b16 %v22
  %v121 = vunpack.c.l.b16 %v23
  %v122 = vunpack.c.l.b16 %v24
  %v123 = vunpack.c.l.b16 %v25
  %v124 = vunpack.c.l.b16 %v26
  %v125 = vunpack.c.l.b16 %v27
  %v126 = vunpack.c.l.b16 %v28
  %v127 = vunpack.c.l.b16 %v29
  %v128 = vunpack.c.l.b16 %v30
  %v129 = vunpack.c.l.b16 %v31
  %v130 = vunpack.c.l.b16 %v32
  %v131 = vunpack.c.l.b16 %v33
  %v132 = vunpack.c.l.b16 %v34
  %v133 = vunpack.c.l.b16 %v35
  %v134 = vunpack.c.l.b16 %v36
  %v135 = vunpack.c.l.b16 %v37
  %v136 = vunpack.c.l.b16 %v38
  %v137 = vunpack.c.l.b16 %v39
  %v138 = vunpack.c.l.b16 %v40
  %v139 = vunpack.c.l.b16 %v41
  %v140 = vunpack.c.l.b16 %v42
  %v141 = vunpack.c.l.b16 %v43
  %v142 = vunpack.c.l.b16 %v44
  %v143 = vunpack.c.l.b16 %v45
  %v144 = vunpack.c.l.b16 %v46
  %v145 = vunpack.c.l.b16 %v47
  %v146 = vunpack.c.l.b16 %v48
  %v147 = vunpack.c.l.b16 %v49
  %v148 = vunpack.c.l.b16 %v50
  %v149 = vunpack.c.l.b16 %v51
  %v150 = vunpack.c.l.b16 %v52
  %v151 = vunpack.c.l.b16 %v53
  %v152 = vunpack.c.l.b16 %v54
  %v153 = vunpack.c.l.b16 %v55
  %v154 = vunpack.c.l.b16 %v56
  %v155 = vunpack.c.l.b16 %v57
  %v156 = vunpack.c.l.b16 %v58
  %v157 = vunpack.c.l.b16 %v59
  %v158 = vunpack.c.l.b16 %v60
  %v159 = vunpack.c.l.b16 %v61
  %v160 = vunpack.c.l.b16 %v62
  %v161 = vunpack.c.l.b16 %v63
  %v162 = vunpack.c.l.b16 %v64
  %v163 = vunpack.c.l.b16 %v65
  %v164 = vunpack.c.l.b16 %v66
  %v165 = vunpack.c.l.b16 %v67
  %v166 = vpack.c.b16 %v118, %v117
  %v167 = vpack.c.b16 %v120, %v119
  %v168 = vpack.c.b16 %v122, %v121
  %v169 = vpack.c.b16 %v124, %v123
  %v170 = vpack.c.b16 %v126, %v125
  %v171 = vpack.c.b16 %v128, %v127
  %v172 = vpack.c.b16 %v130, %v129
  %v173 = vpack.c.b16 %v132, %v131
  %v174 = vpack.c.b16 %v134, %v133
  %v175 = vpack.c.b16 %v136, %v135
  %v176 = vpack.c.b16 %v138, %v137
  %v177 = vpack.c.b16 %v140, %v139
  %v178 = vpack.c.b16 %v142, %v141
  %v179 = vpack.c.b16 %v144, %v143
  %v180 = vpack.c.b16 %v146, %v145
  %v181 = vpack.c.b16 %v148, %v147
  %v182 = vpack.c.b16 %v150, %v149
  %v183 = vpack.c.b16 %v152, %v151
  %v184 = vpack.c.b16 %v154, %v153
  %v185 = vpack.c.b16 %v156, %v155
  %v186 = vpack.c.b16 %v158, %v157
  %v187 = vpack.c.b16 %v160, %v159
  %v188 = vpack.c.b16 %v162, %v161
  %v189 = vpack.c.b16 %v164, %v163
  %v190 = vpack.c.b16 %v165, %v165
  %v195 = vunpack.c.l.b16 %v15
  %v196 = vunpack.c.l.b16 %v16
  %v197 = vunpack.c.l.b16 %v17
  %v198 = vunpack.c.l.b16 %v18
  %v199 = vpack.c.b16 %v196, %v195
  %v200 = vpack.c.b16 %v198, %v197
  %vm202 = vcmask 203776
  %v204 = vsel %vm202, %v166, 0
  %v207 = vsel %vm202, %v167, 0
  %v210 = vsel %vm202, %v168, 0
  %v213 = vsel %vm202, %v169, 0
  %v216 = vsel %vm202, %v170, 0
  %v219 = vsel %vm202, %v171, 0
  %v222 = vsel %vm202, %v172, 0
  %v225 = vsel %vm202, %v173, 0
  %v228 = vsel %vm202, %v174, 0
  %v231 = vsel %vm202, %v175, 0
  %v234 = vsel %vm202, %v176, 0
  %v237 = vsel %vm202, %v177, 0
  %v240 = vsel %vm202, %v178, 0
  %v243 = vsel %vm202, %v179, 0
  %v246 = vsel %vm202, %v180, 0
  %v249 = vsel %vm202, %v181, 0
  %v252 = vsel %vm202, %v182, 0
  %v255 = vsel %vm202, %v183, 0
  %v258 = vsel %vm202, %v184, 0
  %v261 = vsel %vm202, %v185, 0
  %v264 = vsel %vm202, %v186, 0
  %v267 = vsel %vm202, %v187, 0
  %v270 = vsel %vm202, %v188, 0
  %v273 = vsel %vm202, %v189, 0
  %v276 = vsel %vm202, %v190, 0
  %vm278 = vcmask 1043456
  %vm279 = vcmask 1044480
  %v280 = vsel %vm278, 4294967295, 65535
  %v281 = vsel %vm279, %v280, 0
  %v283 = vand.u32 %v200, %v281
  %285 = vmatpush.bf16.msra.mxu0 0
  %286 = vmatpush.bf16.msra.mxu0 0
  %287 = vmatpush.bf16.msra.mxu0 0
  %288 = vmatpush.bf16.msra.mxu0 0
  %289 = vmatpush.bf16.msra.mxu0 0
  %290 = vmatpush.bf16.msra.mxu0 0
  %291 = vmatpush.bf16.msra.mxu0 %v283
  %292 = vmatpush.bf16.msra.mxu0 %v199
  %293 = vmatmul.bf16.gmra.mxu0 %v204
  %v294 = vpop.f32.mrf.mxu0
  %v295 = vadd.f32 0.0, %v294
  %v296 = vpop.f32.mrf.mxu0
  %v297 = vadd.f32 0.0, %v296
  %298 = vmatmul.bf16.gmra.mxu0 %v207
  %v299 = vpop.f32.mrf.mxu0
  %v300 = vadd.f32 0.0, %v299
  %v301 = vpop.f32.mrf.mxu0
  %v302 = vadd.f32 0.0, %v301
  %303 = vmatmul.bf16.gmra.mxu0 %v210
  %v304 = vpop.f32.mrf.mxu0
  %v305 = vadd.f32 0.0, %v304
  %v306 = vpop.f32.mrf.mxu0
  %v307 = vadd.f32 0.0, %v306
  %308 = vmatmul.bf16.gmra.mxu0 %v213
  %v309 = vpop.f32.mrf.mxu0
  %v310 = vadd.f32 0.0, %v309
  %v311 = vpop.f32.mrf.mxu0
  %v312 = vadd.f32 0.0, %v311
  %313 = vmatmul.bf16.gmra.mxu0 %v216
  %v314 = vpop.f32.mrf.mxu0
  %v315 = vadd.f32 0.0, %v314
  %v316 = vpop.f32.mrf.mxu0
  %v317 = vadd.f32 0.0, %v316
  %318 = vmatmul.bf16.gmra.mxu0 %v219
  %v319 = vpop.f32.mrf.mxu0
  %v320 = vadd.f32 0.0, %v319
  %v321 = vpop.f32.mrf.mxu0
  %v322 = vadd.f32 0.0, %v321
  %323 = vmatmul.bf16.gmra.mxu0 %v222
  %v324 = vpop.f32.mrf.mxu0
  %v325 = vadd.f32 0.0, %v324
  %v326 = vpop.f32.mrf.mxu0
  %v327 = vadd.f32 0.0, %v326
  %328 = vmatmul.bf16.gmra.mxu0 %v225
  %v329 = vpop.f32.mrf.mxu0
  %v330 = vadd.f32 0.0, %v329
  %v331 = vpop.f32.mrf.mxu0
  %v332 = vadd.f32 0.0, %v331
  %333 = vmatmul.bf16.gmra.mxu0 %v228
  %v334 = vpop.f32.mrf.mxu0
  %v335 = vadd.f32 0.0, %v334
  %v336 = vpop.f32.mrf.mxu0
  %v337 = vadd.f32 0.0, %v336
  %338 = vmatmul.bf16.gmra.mxu0 %v231
  %v339 = vpop.f32.mrf.mxu0
  %v340 = vadd.f32 0.0, %v339
  %v341 = vpop.f32.mrf.mxu0
  %v342 = vadd.f32 0.0, %v341
  %343 = vmatmul.bf16.gmra.mxu0 %v234
  %v344 = vpop.f32.mrf.mxu0
  %v345 = vadd.f32 0.0, %v344
  %v346 = vpop.f32.mrf.mxu0
  %v347 = vadd.f32 0.0, %v346
  %348 = vmatmul.bf16.gmra.mxu0 %v237
  %v349 = vpop.f32.mrf.mxu0
  %v350 = vadd.f32 0.0, %v349
  %v351 = vpop.f32.mrf.mxu0
  %v352 = vadd.f32 0.0, %v351
  %353 = vmatmul.bf16.gmra.mxu0 %v240
  %v354 = vpop.f32.mrf.mxu0
  %v355 = vadd.f32 0.0, %v354
  %v356 = vpop.f32.mrf.mxu0
  %v357 = vadd.f32 0.0, %v356
  %358 = vmatmul.bf16.gmra.mxu0 %v243
  %v359 = vpop.f32.mrf.mxu0
  %v360 = vadd.f32 0.0, %v359
  %v361 = vpop.f32.mrf.mxu0
  %v362 = vadd.f32 0.0, %v361
  %363 = vmatmul.bf16.gmra.mxu0 %v246
  %v364 = vpop.f32.mrf.mxu0
  %v365 = vadd.f32 0.0, %v364
  %v366 = vpop.f32.mrf.mxu0
  %v367 = vadd.f32 0.0, %v366
  %368 = vmatmul.bf16.gmra.mxu0 %v249
  %v369 = vpop.f32.mrf.mxu0
  %v370 = vadd.f32 0.0, %v369
  %v371 = vpop.f32.mrf.mxu0
  %v372 = vadd.f32 0.0, %v371
  %373 = vmatmul.bf16.gmra.mxu0 %v252
  %v374 = vpop.f32.mrf.mxu0
  %v375 = vadd.f32 0.0, %v374
  %v376 = vpop.f32.mrf.mxu0
  %v377 = vadd.f32 0.0, %v376
  %378 = vmatmul.bf16.gmra.mxu0 %v255
  %v379 = vpop.f32.mrf.mxu0
  %v380 = vadd.f32 0.0, %v379
  %v381 = vpop.f32.mrf.mxu0
  %v382 = vadd.f32 0.0, %v381
  %383 = vmatmul.bf16.gmra.mxu0 %v258
  %v384 = vpop.f32.mrf.mxu0
  %v385 = vadd.f32 0.0, %v384
  %v386 = vpop.f32.mrf.mxu0
  %v387 = vadd.f32 0.0, %v386
  %388 = vmatmul.bf16.gmra.mxu0 %v261
  %v389 = vpop.f32.mrf.mxu0
  %v390 = vadd.f32 0.0, %v389
  %v391 = vpop.f32.mrf.mxu0
  %v392 = vadd.f32 0.0, %v391
  %393 = vmatmul.bf16.gmra.mxu0 %v264
  %v394 = vpop.f32.mrf.mxu0
  %v395 = vadd.f32 0.0, %v394
  %v396 = vpop.f32.mrf.mxu0
  %v397 = vadd.f32 0.0, %v396
  %398 = vmatmul.bf16.gmra.mxu0 %v267
  %v399 = vpop.f32.mrf.mxu0
  %v400 = vadd.f32 0.0, %v399
  %v401 = vpop.f32.mrf.mxu0
  %v402 = vadd.f32 0.0, %v401
  %403 = vmatmul.bf16.gmra.mxu0 %v270
  %v404 = vpop.f32.mrf.mxu0
  %v405 = vadd.f32 0.0, %v404
  %v406 = vpop.f32.mrf.mxu0
  %v407 = vadd.f32 0.0, %v406
  %408 = vmatmul.bf16.gmra.mxu0 %v273
  %v409 = vpop.f32.mrf.mxu0
  %v410 = vadd.f32 0.0, %v409
  %v411 = vpop.f32.mrf.mxu0
  %v412 = vadd.f32 0.0, %v411
  %413 = vmatmul.bf16.gmra.mxu0 %v276
  %v414 = vpop.f32.mrf.mxu0
  %v415 = vadd.f32 0.0, %v414
  %v416 = vpop.f32.mrf.mxu0
  %417 = vdwg.mxu0
  %s418 = scalar_lea.vmem %s0, 196
  %v419 = vld [vmem:[%s418] sm:$0xf]
  %v420 = vld [vmem:[%s418 + $0x4] sm:$0xf]
  %v421 = vld [vmem:[%s418 + $0x8] sm:$0xf]
  %v422 = vld [vmem:[%s418 + $0xc] sm:$0xf]
  %v423 = vld [vmem:[%s418 + $0x10] sm:$0xf]
  %v424 = vld [vmem:[%s418 + $0x14] sm:$0xf]
  %v425 = vld [vmem:[%s418 + $0x18] sm:$0xf]
  %v426 = vld [vmem:[%s418 + $0x1c] sm:$0xf]
  %v427 = vld [vmem:[%s418 + $0x20] sm:$0xf]
  %v428 = vld [vmem:[%s418 + $0x24] sm:$0xf]
  %v429 = vld [vmem:[%s418 + $0x28] sm:$0xf]
  %v430 = vld [vmem:[%s418 + $0x2c] sm:$0xf]
  %v431 = vld [vmem:[%s418 + $0x30] sm:$0xf]
  %v432 = vld [vmem:[%s418 + $0x34] sm:$0xf]
  %v433 = vld [vmem:[%s418 + $0x38] sm:$0xf]
  %v434 = vld [vmem:[%s418 + $0x3c] sm:$0xf]
  %v435 = vld [vmem:[%s418 + $0x40] sm:$0xf]
  %v436 = vld [vmem:[%s418 + $0x44] sm:$0xf]
  %v437 = vld [vmem:[%s418 + $0x48] sm:$0xf]
  %v438 = vld [vmem:[%s418 + $0x4c] sm:$0xf]
  %v439 = vld [vmem:[%s418 + $0x50] sm:$0xf]
  %v440 = vld [vmem:[%s418 + $0x54] sm:$0xf]
  %v441 = vld [vmem:[%s418 + $0x58] sm:$0xf]
  %v442 = vld [vmem:[%s418 + $0x5c] sm:$0xf]
  %v443 = vld [vmem:[%s418 + $0x60] sm:$0xf]
  %v444 = vld [vmem:[%s418 + $0x64] sm:$0xf]
  %v445 = vld [vmem:[%s418 + $0x68] sm:$0xf]
  %v446 = vld [vmem:[%s418 + $0x6c] sm:$0xf]
  %v447 = vld [vmem:[%s418 + $0x70] sm:$0xf]
  %v448 = vld [vmem:[%s418 + $0x74] sm:$0xf]
  %v449 = vld [vmem:[%s418 + $0x78] sm:$0xf]
  %v450 = vld [vmem:[%s418 + $0x7c] sm:$0xf]
  %v451 = vld [vmem:[%s418 + $0x80] sm:$0xf]
  %v452 = vld [vmem:[%s418 + $0x84] sm:$0xf]
  %v453 = vld [vmem:[%s418 + $0x88] sm:$0xf]
  %v454 = vld [vmem:[%s418 + $0x8c] sm:$0xf]
  %v455 = vld [vmem:[%s418 + $0x90] sm:$0xf]
  %v456 = vld [vmem:[%s418 + $0x94] sm:$0xf]
  %v457 = vld [vmem:[%s418 + $0x98] sm:$0xf]
  %v458 = vld [vmem:[%s418 + $0x9c] sm:$0xf]
  %v459 = vld [vmem:[%s418 + $0xa0] sm:$0xf]
  %v460 = vld [vmem:[%s418 + $0xa4] sm:$0xf]
  %v461 = vld [vmem:[%s418 + $0xa8] sm:$0xf]
  %v462 = vld [vmem:[%s418 + $0xac] sm:$0xf]
  %v463 = vld [vmem:[%s418 + $0xb0] sm:$0xf]
  %v464 = vld [vmem:[%s418 + $0xb4] sm:$0xf]
  %v465 = vld [vmem:[%s418 + $0xb8] sm:$0xf]
  %v466 = vld [vmem:[%s418 + $0xbc] sm:$0xf]
  %v467 = vld [vmem:[%s418 + $0xc0] sm:$0xf]
  %v517 = vunpack.c.l.b16 %v419
  %v518 = vunpack.c.l.b16 %v420
  %v519 = vunpack.c.l.b16 %v421
  %v520 = vunpack.c.l.b16 %v422
  %v521 = vunpack.c.l.b16 %v423
  %v522 = vunpack.c.l.b16 %v424
  %v523 = vunpack.c.l.b16 %v425
  %v524 = vunpack.c.l.b16 %v426
  %v525 = vunpack.c.l.b16 %v427
  %v526 = vunpack.c.l.b16 %v428
  %v527 = vunpack.c.l.b16 %v429
  %v528 = vunpack.c.l.b16 %v430
  %v529 = vunpack.c.l.b16 %v431
  %v530 = vunpack.c.l.b16 %v432
  %v531 = vunpack.c.l.b16 %v433
  %v532 = vunpack.c.l.b16 %v434
  %v533 = vunpack.c.l.b16 %v435
  %v534 = vunpack.c.l.b16 %v436
  %v535 = vunpack.c.l.b16 %v437
  %v536 = vunpack.c.l.b16 %v438
  %v537 = vunpack.c.l.b16 %v439
  %v538 = vunpack.c.l.b16 %v440
  %v539 = vunpack.c.l.b16 %v441
  %v540 = vunpack.c.l.b16 %v442
  %v541 = vunpack.c.l.b16 %v443
  %v542 = vunpack.c.l.b16 %v444
  %v543 = vunpack.c.l.b16 %v445
  %v544 = vunpack.c.l.b16 %v446
  %v545 = vunpack.c.l.b16 %v447
  %v546 = vunpack.c.l.b16 %v448
  %v547 = vunpack.c.l.b16 %v449
  %v548 = vunpack.c.l.b16 %v450
  %v549 = vunpack.c.l.b16 %v451
  %v550 = vunpack.c.l.b16 %v452
  %v551 = vunpack.c.l.b16 %v453
  %v552 = vunpack.c.l.b16 %v454
  %v553 = vunpack.c.l.b16 %v455
  %v554 = vunpack.c.l.b16 %v456
  %v555 = vunpack.c.l.b16 %v457
  %v556 = vunpack.c.l.b16 %v458
  %v557 = vunpack.c.l.b16 %v459
  %v558 = vunpack.c.l.b16 %v460
  %v559 = vunpack.c.l.b16 %v461
  %v560 = vunpack.c.l.b16 %v462
  %v561 = vunpack.c.l.b16 %v463
  %v562 = vunpack.c.l.b16 %v464
  %v563 = vunpack.c.l.b16 %v465
  %v564 = vunpack.c.l.b16 %v466
  %v565 = vunpack.c.l.b16 %v467
  %v566 = vpack.c.b16 %v518, %v517
  %v567 = vpack.c.b16 %v520, %v519
  %v568 = vpack.c.b16 %v522, %v521
  %v569 = vpack.c.b16 %v524, %v523
  %v570 = vpack.c.b16 %v526, %v525
  %v571 = vpack.c.b16 %v528, %v527
  %v572 = vpack.c.b16 %v530, %v529
  %v573 = vpack.c.b16 %v532, %v531
  %v574 = vpack.c.b16 %v534, %v533
  %v575 = vpack.c.b16 %v536, %v535
  %v576 = vpack.c.b16 %v538, %v537
  %v577 = vpack.c.b16 %v540, %v539
  %v578 = vpack.c.b16 %v542, %v541
  %v579 = vpack.c.b16 %v544, %v543
  %v580 = vpack.c.b16 %v546, %v545
  %v581 = vpack.c.b16 %v548, %v547
  %v582 = vpack.c.b16 %v550, %v549
  %v583 = vpack.c.b16 %v552, %v551
  %v584 = vpack.c.b16 %v554, %v553
  %v585 = vpack.c.b16 %v556, %v555
  %v586 = vpack.c.b16 %v558, %v557
  %v587 = vpack.c.b16 %v560, %v559
  %v588 = vpack.c.b16 %v562, %v561
  %v589 = vpack.c.b16 %v564, %v563
  %v590 = vpack.c.b16 %v565, %v565
  %v592 = vsel %vm202, %v566, 0
  %v595 = vsel %vm202, %v567, 0
  %v598 = vsel %vm202, %v568, 0
  %v601 = vsel %vm202, %v569, 0
  %v604 = vsel %vm202, %v570, 0
  %v607 = vsel %vm202, %v571, 0
  %v610 = vsel %vm202, %v572, 0
  %v613 = vsel %vm202, %v573, 0
  %v616 = vsel %vm202, %v574, 0
  %v619 = vsel %vm202, %v575, 0
  %v622 = vsel %vm202, %v576, 0
  %v625 = vsel %vm202, %v577, 0
  %v628 = vsel %vm202, %v578, 0
  %v631 = vsel %vm202, %v579, 0
  %v634 = vsel %vm202, %v580, 0
  %v637 = vsel %vm202, %v581, 0
  %v640 = vsel %vm202, %v582, 0
  %v643 = vsel %vm202, %v583, 0
  %v646 = vsel %vm202, %v584, 0
  %v649 = vsel %vm202, %v585, 0
  %v652 = vsel %vm202, %v586, 0
  %v655 = vsel %vm202, %v587, 0
  %v658 = vsel %vm202, %v588, 0
  %v661 = vsel %vm202, %v589, 0
  %v664 = vsel %vm202, %v590, 0
  %666 = vmatpush.bf16.msra.mxu0 0
  %667 = vmatpush.bf16.msra.mxu0 0
  %668 = vmatpush.bf16.msra.mxu0 0
  %669 = vmatpush.bf16.msra.mxu0 0
  %670 = vmatpush.bf16.msra.mxu0 0
  %671 = vmatpush.bf16.msra.mxu0 0
  %672 = vmatpush.bf16.msra.mxu0 %v283
  %673 = vmatpush.bf16.msra.mxu0 %v199
  %674 = vmatmul.bf16.gmra.mxu0 %v592
  %v675 = vpop.f32.mrf.mxu0
  %v676 = vadd.f32 0.0, %v675
  %v677 = vpop.f32.mrf.mxu0
  %v678 = vadd.f32 0.0, %v677
  %679 = vmatmul.bf16.gmra.mxu0 %v595
  %v680 = vpop.f32.mrf.mxu0
  %v681 = vadd.f32 0.0, %v680
  %v682 = vpop.f32.mrf.mxu0
  %v683 = vadd.f32 0.0, %v682
  %684 = vmatmul.bf16.gmra.mxu0 %v598
  %v685 = vpop.f32.mrf.mxu0
  %v686 = vadd.f32 0.0, %v685
  %v687 = vpop.f32.mrf.mxu0
  %v688 = vadd.f32 0.0, %v687
  %689 = vmatmul.bf16.gmra.mxu0 %v601
  %v690 = vpop.f32.mrf.mxu0
  %v691 = vadd.f32 0.0, %v690
  %v692 = vpop.f32.mrf.mxu0
  %v693 = vadd.f32 0.0, %v692
  %694 = vmatmul.bf16.gmra.mxu0 %v604
  %v695 = vpop.f32.mrf.mxu0
  %v696 = vadd.f32 0.0, %v695
  %v697 = vpop.f32.mrf.mxu0
  %v698 = vadd.f32 0.0, %v697
  %699 = vmatmul.bf16.gmra.mxu0 %v607
  %v700 = vpop.f32.mrf.mxu0
  %v701 = vadd.f32 0.0, %v700
  %v702 = vpop.f32.mrf.mxu0
  %v703 = vadd.f32 0.0, %v702
  %704 = vmatmul.bf16.gmra.mxu0 %v610
  %v705 = vpop.f32.mrf.mxu0
  %v706 = vadd.f32 0.0, %v705
  %v707 = vpop.f32.mrf.mxu0
  %v708 = vadd.f32 0.0, %v707
  %709 = vmatmul.bf16.gmra.mxu0 %v613
  %v710 = vpop.f32.mrf.mxu0
  %v711 = vadd.f32 0.0, %v710
  %v712 = vpop.f32.mrf.mxu0
  %v713 = vadd.f32 0.0, %v712
  %714 = vmatmul.bf16.gmra.mxu0 %v616
  %v715 = vpop.f32.mrf.mxu0
  %v716 = vadd.f32 0.0, %v715
  %v717 = vpop.f32.mrf.mxu0
  %v718 = vadd.f32 0.0, %v717
  %719 = vmatmul.bf16.gmra.mxu0 %v619
  %v720 = vpop.f32.mrf.mxu0
  %v721 = vadd.f32 0.0, %v720
  %v722 = vpop.f32.mrf.mxu0
  %v723 = vadd.f32 0.0, %v722
  %724 = vmatmul.bf16.gmra.mxu0 %v622
  %v725 = vpop.f32.mrf.mxu0
  %v726 = vadd.f32 0.0, %v725
  %v727 = vpop.f32.mrf.mxu0
  %v728 = vadd.f32 0.0, %v727
  %729 = vmatmul.bf16.gmra.mxu0 %v625
  %v730 = vpop.f32.mrf.mxu0
  %v731 = vadd.f32 0.0, %v730
  %v732 = vpop.f32.mrf.mxu0
  %v733 = vadd.f32 0.0, %v732
  %734 = vmatmul.bf16.gmra.mxu0 %v628
  %v735 = vpop.f32.mrf.mxu0
  %v736 = vadd.f32 0.0, %v735
  %v737 = vpop.f32.mrf.mxu0
  %v738 = vadd.f32 0.0, %v737
  %739 = vmatmul.bf16.gmra.mxu0 %v631
  %v740 = vpop.f32.mrf.mxu0
  %v741 = vadd.f32 0.0, %v740
  %v742 = vpop.f32.mrf.mxu0
  %v743 = vadd.f32 0.0, %v742
  %744 = vmatmul.bf16.gmra.mxu0 %v634
  %v745 = vpop.f32.mrf.mxu0
  %v746 = vadd.f32 0.0, %v745
  %v747 = vpop.f32.mrf.mxu0
  %v748 = vadd.f32 0.0, %v747
  %749 = vmatmul.bf16.gmra.mxu0 %v637
  %v750 = vpop.f32.mrf.mxu0
  %v751 = vadd.f32 0.0, %v750
  %v752 = vpop.f32.mrf.mxu0
  %v753 = vadd.f32 0.0, %v752
  %754 = vmatmul.bf16.gmra.mxu0 %v640
  %v755 = vpop.f32.mrf.mxu0
  %v756 = vadd.f32 0.0, %v755
  %v757 = vpop.f32.mrf.mxu0
  %v758 = vadd.f32 0.0, %v757
  %759 = vmatmul.bf16.gmra.mxu0 %v643
  %v760 = vpop.f32.mrf.mxu0
  %v761 = vadd.f32 0.0, %v760
  %v762 = vpop.f32.mrf.mxu0
  %v763 = vadd.f32 0.0, %v762
  %764 = vmatmul.bf16.gmra.mxu0 %v646
  %v765 = vpop.f32.mrf.mxu0
  %v766 = vadd.f32 0.0, %v765
  %v767 = vpop.f32.mrf.mxu0
  %v768 = vadd.f32 0.0, %v767
  %769 = vmatmul.bf16.gmra.mxu0 %v649
  %v770 = vpop.f32.mrf.mxu0
  %v771 = vadd.f32 0.0, %v770
  %v772 = vpop.f32.mrf.mxu0
  %v773 = vadd.f32 0.0, %v772
  %774 = vmatmul.bf16.gmra.mxu0 %v652
  %v775 = vpop.f32.mrf.mxu0
  %v776 = vadd.f32 0.0, %v775
  %v777 = vpop.f32.mrf.mxu0
  %v778 = vadd.f32 0.0, %v777
  %779 = vmatmul.bf16.gmra.mxu0 %v655
  %v780 = vpop.f32.mrf.mxu0
  %v781 = vadd.f32 0.0, %v780
  %v782 = vpop.f32.mrf.mxu0
  %v783 = vadd.f32 0.0, %v782
  %784 = vmatmul.bf16.gmra.mxu0 %v658
  %v785 = vpop.f32.mrf.mxu0
  %v786 = vadd.f32 0.0, %v785
  %v787 = vpop.f32.mrf.mxu0
  %v788 = vadd.f32 0.0, %v787
  %789 = vmatmul.bf16.gmra.mxu0 %v661
  %v790 = vpop.f32.mrf.mxu0
  %v791 = vadd.f32 0.0, %v790
  %v792 = vpop.f32.mrf.mxu0
  %v793 = vadd.f32 0.0, %v792
  %794 = vmatmul.bf16.gmra.mxu0 %v664
  %v795 = vpop.f32.mrf.mxu0
  %v796 = vadd.f32 0.0, %v795
  %v797 = vpop.f32.mrf.mxu0
  %798 = vdwg.mxu0
  %v799 = vmax.f32 %v295, %v676
  %v800 = vmax.f32 %v297, %v678
  %v801 = vmax.f32 %v300, %v681
  %v802 = vmax.f32 %v302, %v683
  %v803 = vmax.f32 %v305, %v686
  %v804 = vmax.f32 %v307, %v688
  %v805 = vmax.f32 %v310, %v691
  %v806 = vmax.f32 %v312, %v693
  %v807 = vmax.f32 %v315, %v696
  %v808 = vmax.f32 %v317, %v698
  %v809 = vmax.f32 %v320, %v701
  %v810 = vmax.f32 %v322, %v703
  %v811 = vmax.f32 %v325, %v706
  %v812 = vmax.f32 %v327, %v708
  %v813 = vmax.f32 %v330, %v711
  %v814 = vmax.f32 %v332, %v713
  %v815 = vmax.f32 %v335, %v716
  %v816 = vmax.f32 %v337, %v718
  %v817 = vmax.f32 %v340, %v721
  %v818 = vmax.f32 %v342, %v723
  %v819 = vmax.f32 %v345, %v726
  %v820 = vmax.f32 %v347, %v728
  %v821 = vmax.f32 %v350, %v731
  %v822 = vmax.f32 %v352, %v733
  %v823 = vmax.f32 %v355, %v736
  %v824 = vmax.f32 %v357, %v738
  %v825 = vmax.f32 %v360, %v741
  %v826 = vmax.f32 %v362, %v743
  %v827 = vmax.f32 %v365, %v746
  %v828 = vmax.f32 %v367, %v748
  %v829 = vmax.f32 %v370, %v751
  %v830 = vmax.f32 %v372, %v753
  %v831 = vmax.f32 %v375, %v756
  %v832 = vmax.f32 %v377, %v758
  %v833 = vmax.f32 %v380, %v761
  %v834 = vmax.f32 %v382, %v763
  %v835 = vmax.f32 %v385, %v766
  %v836 = vmax.f32 %v387, %v768
  %v837 = vmax.f32 %v390, %v771
  %v838 = vmax.f32 %v392, %v773
  %v839 = vmax.f32 %v395, %v776
  %v840 = vmax.f32 %v397, %v778
  %v841 = vmax.f32 %v400, %v781
  %v842 = vmax.f32 %v402, %v783
  %v843 = vmax.f32 %v405, %v786
  %v844 = vmax.f32 %v407, %v788
  %v845 = vmax.f32 %v410, %v791
  %v846 = vmax.f32 %v412, %v793
  %v847 = vmax.f32 %v415, %v796
  %s848 = scalar_lea.vmem %s0, 392
  %v849 = vld [vmem:[%s848] sm:$0xf]
  %v850 = vld [vmem:[%s848 + $0x4] sm:$0xf]
  %v851 = vld [vmem:[%s848 + $0x8] sm:$0xf]
  %v852 = vld [vmem:[%s848 + $0xc] sm:$0xf]
  %v853 = vld [vmem:[%s848 + $0x10] sm:$0xf]
  %v854 = vld [vmem:[%s848 + $0x14] sm:$0xf]
  %v855 = vld [vmem:[%s848 + $0x18] sm:$0xf]
  %v856 = vld [vmem:[%s848 + $0x1c] sm:$0xf]
  %v857 = vld [vmem:[%s848 + $0x20] sm:$0xf]
  %v858 = vld [vmem:[%s848 + $0x24] sm:$0xf]
  %v859 = vld [vmem:[%s848 + $0x28] sm:$0xf]
  %v860 = vld [vmem:[%s848 + $0x2c] sm:$0xf]
  %v861 = vld [vmem:[%s848 + $0x30] sm:$0xf]
  %v862 = vld [vmem:[%s848 + $0x34] sm:$0xf]
  %v863 = vld [vmem:[%s848 + $0x38] sm:$0xf]
  %v864 = vld [vmem:[%s848 + $0x3c] sm:$0xf]
  %v865 = vld [vmem:[%s848 + $0x40] sm:$0xf]
  %v866 = vld [vmem:[%s848 + $0x44] sm:$0xf]
  %v867 = vld [vmem:[%s848 + $0x48] sm:$0xf]
  %v868 = vld [vmem:[%s848 + $0x4c] sm:$0xf]
  %v869 = vld [vmem:[%s848 + $0x50] sm:$0xf]
  %v870 = vld [vmem:[%s848 + $0x54] sm:$0xf]
  %v871 = vld [vmem:[%s848 + $0x58] sm:$0xf]
  %v872 = vld [vmem:[%s848 + $0x5c] sm:$0xf]
  %v873 = vld [vmem:[%s848 + $0x60] sm:$0xf]
  %v874 = vld [vmem:[%s848 + $0x64] sm:$0xf]
  %v875 = vld [vmem:[%s848 + $0x68] sm:$0xf]
  %v876 = vld [vmem:[%s848 + $0x6c] sm:$0xf]
  %v877 = vld [vmem:[%s848 + $0x70] sm:$0xf]
  %v878 = vld [vmem:[%s848 + $0x74] sm:$0xf]
  %v879 = vld [vmem:[%s848 + $0x78] sm:$0xf]
  %v880 = vld [vmem:[%s848 + $0x7c] sm:$0xf]
  %v881 = vld [vmem:[%s848 + $0x80] sm:$0xf]
  %v882 = vld [vmem:[%s848 + $0x84] sm:$0xf]
  %v883 = vld [vmem:[%s848 + $0x88] sm:$0xf]
  %v884 = vld [vmem:[%s848 + $0x8c] sm:$0xf]
  %v885 = vld [vmem:[%s848 + $0x90] sm:$0xf]
  %v886 = vld [vmem:[%s848 + $0x94] sm:$0xf]
  %v887 = vld [vmem:[%s848 + $0x98] sm:$0xf]
  %v888 = vld [vmem:[%s848 + $0x9c] sm:$0xf]
  %v889 = vld [vmem:[%s848 + $0xa0] sm:$0xf]
  %v890 = vld [vmem:[%s848 + $0xa4] sm:$0xf]
  %v891 = vld [vmem:[%s848 + $0xa8] sm:$0xf]
  %v892 = vld [vmem:[%s848 + $0xac] sm:$0xf]
  %v893 = vld [vmem:[%s848 + $0xb0] sm:$0xf]
  %v894 = vld [vmem:[%s848 + $0xb4] sm:$0xf]
  %v895 = vld [vmem:[%s848 + $0xb8] sm:$0xf]
  %v896 = vld [vmem:[%s848 + $0xbc] sm:$0xf]
  %v897 = vld [vmem:[%s848 + $0xc0] sm:$0xf]
  %v947 = vunpack.c.l.b16 %v849
  %v948 = vunpack.c.l.b16 %v850
  %v949 = vunpack.c.l.b16 %v851
  %v950 = vunpack.c.l.b16 %v852
  %v951 = vunpack.c.l.b16 %v853
  %v952 = vunpack.c.l.b16 %v854
  %v953 = vunpack.c.l.b16 %v855
  %v954 = vunpack.c.l.b16 %v856
  %v955 = vunpack.c.l.b16 %v857
  %v956 = vunpack.c.l.b16 %v858
  %v957 = vunpack.c.l.b16 %v859
  %v958 = vunpack.c.l.b16 %v860
  %v959 = vunpack.c.l.b16 %v861
  %v960 = vunpack.c.l.b16 %v862
  %v961 = vunpack.c.l.b16 %v863
  %v962 = vunpack.c.l.b16 %v864
  %v963 = vunpack.c.l.b16 %v865
  %v964 = vunpack.c.l.b16 %v866
  %v965 = vunpack.c.l.b16 %v867
  %v966 = vunpack.c.l.b16 %v868
  %v967 = vunpack.c.l.b16 %v869
  %v968 = vunpack.c.l.b16 %v870
  %v969 = vunpack.c.l.b16 %v871
  %v970 = vunpack.c.l.b16 %v872
  %v971 = vunpack.c.l.b16 %v873
  %v972 = vunpack.c.l.b16 %v874
  %v973 = vunpack.c.l.b16 %v875
  %v974 = vunpack.c.l.b16 %v876
  %v975 = vunpack.c.l.b16 %v877
  %v976 = vunpack.c.l.b16 %v878
  %v977 = vunpack.c.l.b16 %v879
  %v978 = vunpack.c.l.b16 %v880
  %v979 = vunpack.c.l.b16 %v881
  %v980 = vunpack.c.l.b16 %v882
  %v981 = vunpack.c.l.b16 %v883
  %v982 = vunpack.c.l.b16 %v884
  %v983 = vunpack.c.l.b16 %v885
  %v984 = vunpack.c.l.b16 %v886
  %v985 = vunpack.c.l.b16 %v887
  %v986 = vunpack.c.l.b16 %v888
  %v987 = vunpack.c.l.b16 %v889
  %v988 = vunpack.c.l.b16 %v890
  %v989 = vunpack.c.l.b16 %v891
  %v990 = vunpack.c.l.b16 %v892
  %v991 = vunpack.c.l.b16 %v893
  %v992 = vunpack.c.l.b16 %v894
  %v993 = vunpack.c.l.b16 %v895
  %v994 = vunpack.c.l.b16 %v896
  %v995 = vunpack.c.l.b16 %v897
  %v996 = vpack.c.b16 %v948, %v947
  %v997 = vpack.c.b16 %v950, %v949
  %v998 = vpack.c.b16 %v952, %v951
  %v999 = vpack.c.b16 %v954, %v953
  %v1000 = vpack.c.b16 %v956, %v955
  %v1001 = vpack.c.b16 %v958, %v957
  %v1002 = vpack.c.b16 %v960, %v959
  %v1003 = vpack.c.b16 %v962, %v961
  %v1004 = vpack.c.b16 %v964, %v963
  %v1005 = vpack.c.b16 %v966, %v965
  %v1006 = vpack.c.b16 %v968, %v967
  %v1007 = vpack.c.b16 %v970, %v969
  %v1008 = vpack.c.b16 %v972, %v971
  %v1009 = vpack.c.b16 %v974, %v973
  %v1010 = vpack.c.b16 %v976, %v975
  %v1011 = vpack.c.b16 %v978, %v977
  %v1012 = vpack.c.b16 %v980, %v979
  %v1013 = vpack.c.b16 %v982, %v981
  %v1014 = vpack.c.b16 %v984, %v983
  %v1015 = vpack.c.b16 %v986, %v985
  %v1016 = vpack.c.b16 %v988, %v987
  %v1017 = vpack.c.b16 %v990, %v989
  %v1018 = vpack.c.b16 %v992, %v991
  %v1019 = vpack.c.b16 %v994, %v993
  %v1020 = vpack.c.b16 %v995, %v995
  %v1022 = vsel %vm202, %v996, 0
  %v1025 = vsel %vm202, %v997, 0
  %v1028 = vsel %vm202, %v998, 0
  %v1031 = vsel %vm202, %v999, 0
  %v1034 = vsel %vm202, %v1000, 0
  %v1037 = vsel %vm202, %v1001, 0
  %v1040 = vsel %vm202, %v1002, 0
  %v1043 = vsel %vm202, %v1003, 0
  %v1046 = vsel %vm202, %v1004, 0
  %v1049 = vsel %vm202, %v1005, 0
  %v1052 = vsel %vm202, %v1006, 0
  %v1055 = vsel %vm202, %v1007, 0
  %v1058 = vsel %vm202, %v1008, 0
  %v1061 = vsel %vm202, %v1009, 0
  %v1064 = vsel %vm202, %v1010, 0
  %v1067 = vsel %vm202, %v1011, 0
  %v1070 = vsel %vm202, %v1012, 0
  %v1073 = vsel %vm202, %v1013, 0
  %v1076 = vsel %vm202, %v1014, 0
  %v1079 = vsel %vm202, %v1015, 0
  %v1082 = vsel %vm202, %v1016, 0
  %v1085 = vsel %vm202, %v1017, 0
  %v1088 = vsel %vm202, %v1018, 0
  %v1091 = vsel %vm202, %v1019, 0
  %v1094 = vsel %vm202, %v1020, 0
  %1096 = vmatpush.bf16.msra.mxu0 0
  %1097 = vmatpush.bf16.msra.mxu0 0
  %1098 = vmatpush.bf16.msra.mxu0 0
  %1099 = vmatpush.bf16.msra.mxu0 0
  %1100 = vmatpush.bf16.msra.mxu0 0
  %1101 = vmatpush.bf16.msra.mxu0 0
  %1102 = vmatpush.bf16.msra.mxu0 %v283
  %1103 = vmatpush.bf16.msra.mxu0 %v199
  %1104 = vmatmul.bf16.gmra.mxu0 %v1022
  %v1105 = vpop.f32.mrf.mxu0
  %v1106 = vadd.f32 0.0, %v1105
  %v1107 = vpop.f32.mrf.mxu0
  %v1108 = vadd.f32 0.0, %v1107
  %1109 = vmatmul.bf16.gmra.mxu0 %v1025
  %v1110 = vpop.f32.mrf.mxu0
  %v1111 = vadd.f32 0.0, %v1110
  %v1112 = vpop.f32.mrf.mxu0
  %v1113 = vadd.f32 0.0, %v1112
  %1114 = vmatmul.bf16.gmra.mxu0 %v1028
  %v1115 = vpop.f32.mrf.mxu0
  %v1116 = vadd.f32 0.0, %v1115
  %v1117 = vpop.f32.mrf.mxu0
  %v1118 = vadd.f32 0.0, %v1117
  %1119 = vmatmul.bf16.gmra.mxu0 %v1031
  %v1120 = vpop.f32.mrf.mxu0
  %v1121 = vadd.f32 0.0, %v1120
  %v1122 = vpop.f32.mrf.mxu0
  %v1123 = vadd.f32 0.0, %v1122
  %1124 = vmatmul.bf16.gmra.mxu0 %v1034
  %v1125 = vpop.f32.mrf.mxu0
  %v1126 = vadd.f32 0.0, %v1125
  %v1127 = vpop.f32.mrf.mxu0
  %v1128 = vadd.f32 0.0, %v1127
  %1129 = vmatmul.bf16.gmra.mxu0 %v1037
  %v1130 = vpop.f32.mrf.mxu0
  %v1131 = vadd.f32 0.0, %v1130
  %v1132 = vpop.f32.mrf.mxu0
  %v1133 = vadd.f32 0.0, %v1132
  %1134 = vmatmul.bf16.gmra.mxu0 %v1040
  %v1135 = vpop.f32.mrf.mxu0
  %v1136 = vadd.f32 0.0, %v1135
  %v1137 = vpop.f32.mrf.mxu0
  %v1138 = vadd.f32 0.0, %v1137
  %1139 = vmatmul.bf16.gmra.mxu0 %v1043
  %v1140 = vpop.f32.mrf.mxu0
  %v1141 = vadd.f32 0.0, %v1140
  %v1142 = vpop.f32.mrf.mxu0
  %v1143 = vadd.f32 0.0, %v1142
  %1144 = vmatmul.bf16.gmra.mxu0 %v1046
  %v1145 = vpop.f32.mrf.mxu0
  %v1146 = vadd.f32 0.0, %v1145
  %v1147 = vpop.f32.mrf.mxu0
  %v1148 = vadd.f32 0.0, %v1147
  %1149 = vmatmul.bf16.gmra.mxu0 %v1049
  %v1150 = vpop.f32.mrf.mxu0
  %v1151 = vadd.f32 0.0, %v1150
  %v1152 = vpop.f32.mrf.mxu0
  %v1153 = vadd.f32 0.0, %v1152
  %1154 = vmatmul.bf16.gmra.mxu0 %v1052
  %v1155 = vpop.f32.mrf.mxu0
  %v1156 = vadd.f32 0.0, %v1155
  %v1157 = vpop.f32.mrf.mxu0
  %v1158 = vadd.f32 0.0, %v1157
  %1159 = vmatmul.bf16.gmra.mxu0 %v1055
  %v1160 = vpop.f32.mrf.mxu0
  %v1161 = vadd.f32 0.0, %v1160
  %v1162 = vpop.f32.mrf.mxu0
  %v1163 = vadd.f32 0.0, %v1162
  %1164 = vmatmul.bf16.gmra.mxu0 %v1058
  %v1165 = vpop.f32.mrf.mxu0
  %v1166 = vadd.f32 0.0, %v1165
  %v1167 = vpop.f32.mrf.mxu0
  %v1168 = vadd.f32 0.0, %v1167
  %1169 = vmatmul.bf16.gmra.mxu0 %v1061
  %v1170 = vpop.f32.mrf.mxu0
  %v1171 = vadd.f32 0.0, %v1170
  %v1172 = vpop.f32.mrf.mxu0
  %v1173 = vadd.f32 0.0, %v1172
  %1174 = vmatmul.bf16.gmra.mxu0 %v1064
  %v1175 = vpop.f32.mrf.mxu0
  %v1176 = vadd.f32 0.0, %v1175
  %v1177 = vpop.f32.mrf.mxu0
  %v1178 = vadd.f32 0.0, %v1177
  %1179 = vmatmul.bf16.gmra.mxu0 %v1067
  %v1180 = vpop.f32.mrf.mxu0
  %v1181 = vadd.f32 0.0, %v1180
  %v1182 = vpop.f32.mrf.mxu0
  %v1183 = vadd.f32 0.0, %v1182
  %1184 = vmatmul.bf16.gmra.mxu0 %v1070
  %v1185 = vpop.f32.mrf.mxu0
  %v1186 = vadd.f32 0.0, %v1185
  %v1187 = vpop.f32.mrf.mxu0
  %v1188 = vadd.f32 0.0, %v1187
  %1189 = vmatmul.bf16.gmra.mxu0 %v1073
  %v1190 = vpop.f32.mrf.mxu0
  %v1191 = vadd.f32 0.0, %v1190
  %v1192 = vpop.f32.mrf.mxu0
  %v1193 = vadd.f32 0.0, %v1192
  %1194 = vmatmul.bf16.gmra.mxu0 %v1076
  %v1195 = vpop.f32.mrf.mxu0
  %v1196 = vadd.f32 0.0, %v1195
  %v1197 = vpop.f32.mrf.mxu0
  %v1198 = vadd.f32 0.0, %v1197
  %1199 = vmatmul.bf16.gmra.mxu0 %v1079
  %v1200 = vpop.f32.mrf.mxu0
  %v1201 = vadd.f32 0.0, %v1200
  %v1202 = vpop.f32.mrf.mxu0
  %v1203 = vadd.f32 0.0, %v1202
  %1204 = vmatmul.bf16.gmra.mxu0 %v1082
  %v1205 = vpop.f32.mrf.mxu0
  %v1206 = vadd.f32 0.0, %v1205
  %v1207 = vpop.f32.mrf.mxu0
  %v1208 = vadd.f32 0.0, %v1207
  %1209 = vmatmul.bf16.gmra.mxu0 %v1085
  %v1210 = vpop.f32.mrf.mxu0
  %v1211 = vadd.f32 0.0, %v1210
  %v1212 = vpop.f32.mrf.mxu0
  %v1213 = vadd.f32 0.0, %v1212
  %1214 = vmatmul.bf16.gmra.mxu0 %v1088
  %v1215 = vpop.f32.mrf.mxu0
  %v1216 = vadd.f32 0.0, %v1215
  %v1217 = vpop.f32.mrf.mxu0
  %v1218 = vadd.f32 0.0, %v1217
  %1219 = vmatmul.bf16.gmra.mxu0 %v1091
  %v1220 = vpop.f32.mrf.mxu0
  %v1221 = vadd.f32 0.0, %v1220
  %v1222 = vpop.f32.mrf.mxu0
  %v1223 = vadd.f32 0.0, %v1222
  %1224 = vmatmul.bf16.gmra.mxu0 %v1094
  %v1225 = vpop.f32.mrf.mxu0
  %v1226 = vadd.f32 0.0, %v1225
  %v1227 = vpop.f32.mrf.mxu0
  %1228 = vdwg.mxu0
  %v1229 = vmax.f32 %v799, %v1106
  %v1230 = vmax.f32 %v800, %v1108
  %v1231 = vmax.f32 %v801, %v1111
  %v1232 = vmax.f32 %v802, %v1113
  %v1233 = vmax.f32 %v803, %v1116
  %v1234 = vmax.f32 %v804, %v1118
  %v1235 = vmax.f32 %v805, %v1121
  %v1236 = vmax.f32 %v806, %v1123
  %v1237 = vmax.f32 %v807, %v1126
  %v1238 = vmax.f32 %v808, %v1128
  %v1239 = vmax.f32 %v809, %v1131
  %v1240 = vmax.f32 %v810, %v1133
  %v1241 = vmax.f32 %v811, %v1136
  %v1242 = vmax.f32 %v812, %v1138
  %v1243 = vmax.f32 %v813, %v1141
  %v1244 = vmax.f32 %v814, %v1143
  %v1245 = vmax.f32 %v815, %v1146
  %v1246 = vmax.f32 %v816, %v1148
  %v1247 = vmax.f32 %v817, %v1151
  %v1248 = vmax.f32 %v818, %v1153
  %v1249 = vmax.f32 %v819, %v1156
  %v1250 = vmax.f32 %v820, %v1158
  %v1251 = vmax.f32 %v821, %v1161
  %v1252 = vmax.f32 %v822, %v1163
  %v1253 = vmax.f32 %v823, %v1166
  %v1254 = vmax.f32 %v824, %v1168
  %v1255 = vmax.f32 %v825, %v1171
  %v1256 = vmax.f32 %v826, %v1173
  %v1257 = vmax.f32 %v827, %v1176
  %v1258 = vmax.f32 %v828, %v1178
  %v1259 = vmax.f32 %v829, %v1181
  %v1260 = vmax.f32 %v830, %v1183
  %v1261 = vmax.f32 %v831, %v1186
  %v1262 = vmax.f32 %v832, %v1188
  %v1263 = vmax.f32 %v833, %v1191
  %v1264 = vmax.f32 %v834, %v1193
  %v1265 = vmax.f32 %v835, %v1196
  %v1266 = vmax.f32 %v836, %v1198
  %v1267 = vmax.f32 %v837, %v1201
  %v1268 = vmax.f32 %v838, %v1203
  %v1269 = vmax.f32 %v839, %v1206
  %v1270 = vmax.f32 %v840, %v1208
  %v1271 = vmax.f32 %v841, %v1211
  %v1272 = vmax.f32 %v842, %v1213
  %v1273 = vmax.f32 %v843, %v1216
  %v1274 = vmax.f32 %v844, %v1218
  %v1275 = vmax.f32 %v845, %v1221
  %v1276 = vmax.f32 %v846, %v1223
  %v1277 = vmax.f32 %v847, %v1226
  %s1278 = scalar_lea.vmem %s0, 588
  %v1279 = vld [vmem:[%s1278] sm:$0xf]
  %v1280 = vld [vmem:[%s1278 + $0x4] sm:$0xf]
  %v1281 = vld [vmem:[%s1278 + $0x8] sm:$0xf]
  %v1282 = vld [vmem:[%s1278 + $0xc] sm:$0xf]
  %v1283 = vld [vmem:[%s1278 + $0x10] sm:$0xf]
  %v1284 = vld [vmem:[%s1278 + $0x14] sm:$0xf]
  %v1285 = vld [vmem:[%s1278 + $0x18] sm:$0xf]
  %v1286 = vld [vmem:[%s1278 + $0x1c] sm:$0xf]
  %v1287 = vld [vmem:[%s1278 + $0x20] sm:$0xf]
  %v1288 = vld [vmem:[%s1278 + $0x24] sm:$0xf]
  %v1289 = vld [vmem:[%s1278 + $0x28] sm:$0xf]
  %v1290 = vld [vmem:[%s1278 + $0x2c] sm:$0xf]
  %v1291 = vld [vmem:[%s1278 + $0x30] sm:$0xf]
  %v1292 = vld [vmem:[%s1278 + $0x34] sm:$0xf]
  %v1293 = vld [vmem:[%s1278 + $0x38] sm:$0xf]
  %v1294 = vld [vmem:[%s1278 + $0x3c] sm:$0xf]
  %v1295 = vld [vmem:[%s1278 + $0x40] sm:$0xf]
  %v1296 = vld [vmem:[%s1278 + $0x44] sm:$0xf]
  %v1297 = vld [vmem:[%s1278 + $0x48] sm:$0xf]
  %v1298 = vld [vmem:[%s1278 + $0x4c] sm:$0xf]
  %v1299 = vld [vmem:[%s1278 + $0x50] sm:$0xf]
  %v1300 = vld [vmem:[%s1278 + $0x54] sm:$0xf]
  %v1301 = vld [vmem:[%s1278 + $0x58] sm:$0xf]
  %v1302 = vld [vmem:[%s1278 + $0x5c] sm:$0xf]
  %v1303 = vld [vmem:[%s1278 + $0x60] sm:$0xf]
  %v1304 = vld [vmem:[%s1278 + $0x64] sm:$0xf]
  %v1305 = vld [vmem:[%s1278 + $0x68] sm:$0xf]
  %v1306 = vld [vmem:[%s1278 + $0x6c] sm:$0xf]
  %v1307 = vld [vmem:[%s1278 + $0x70] sm:$0xf]
  %v1308 = vld [vmem:[%s1278 + $0x74] sm:$0xf]
  %v1309 = vld [vmem:[%s1278 + $0x78] sm:$0xf]
  %v1310 = vld [vmem:[%s1278 + $0x7c] sm:$0xf]
  %v1311 = vld [vmem:[%s1278 + $0x80] sm:$0xf]
  %v1312 = vld [vmem:[%s1278 + $0x84] sm:$0xf]
  %v1313 = vld [vmem:[%s1278 + $0x88] sm:$0xf]
  %v1314 = vld [vmem:[%s1278 + $0x8c] sm:$0xf]
  %v1315 = vld [vmem:[%s1278 + $0x90] sm:$0xf]
  %v1316 = vld [vmem:[%s1278 + $0x94] sm:$0xf]
  %v1317 = vld [vmem:[%s1278 + $0x98] sm:$0xf]
  %v1318 = vld [vmem:[%s1278 + $0x9c] sm:$0xf]
  %v1319 = vld [vmem:[%s1278 + $0xa0] sm:$0xf]
  %v1320 = vld [vmem:[%s1278 + $0xa4] sm:$0xf]
  %v1321 = vld [vmem:[%s1278 + $0xa8] sm:$0xf]
  %v1322 = vld [vmem:[%s1278 + $0xac] sm:$0xf]
  %v1323 = vld [vmem:[%s1278 + $0xb0] sm:$0xf]
  %v1324 = vld [vmem:[%s1278 + $0xb4] sm:$0xf]
  %v1325 = vld [vmem:[%s1278 + $0xb8] sm:$0xf]
  %v1326 = vld [vmem:[%s1278 + $0xbc] sm:$0xf]
  %v1327 = vld [vmem:[%s1278 + $0xc0] sm:$0xf]
  %v1377 = vunpack.c.l.b16 %v1279
  %v1378 = vunpack.c.l.b16 %v1280
  %v1379 = vunpack.c.l.b16 %v1281
  %v1380 = vunpack.c.l.b16 %v1282
  %v1381 = vunpack.c.l.b16 %v1283
  %v1382 = vunpack.c.l.b16 %v1284
  %v1383 = vunpack.c.l.b16 %v1285
  %v1384 = vunpack.c.l.b16 %v1286
  %v1385 = vunpack.c.l.b16 %v1287
  %v1386 = vunpack.c.l.b16 %v1288
  %v1387 = vunpack.c.l.b16 %v1289
  %v1388 = vunpack.c.l.b16 %v1290
  %v1389 = vunpack.c.l.b16 %v1291
  %v1390 = vunpack.c.l.b16 %v1292
  %v1391 = vunpack.c.l.b16 %v1293
  %v1392 = vunpack.c.l.b16 %v1294
  %v1393 = vunpack.c.l.b16 %v1295
  %v1394 = vunpack.c.l.b16 %v1296
  %v1395 = vunpack.c.l.b16 %v1297
  %v1396 = vunpack.c.l.b16 %v1298
  %v1397 = vunpack.c.l.b16 %v1299
  %v1398 = vunpack.c.l.b16 %v1300
  %v1399 = vunpack.c.l.b16 %v1301
  %v1400 = vunpack.c.l.b16 %v1302
  %v1401 = vunpack.c.l.b16 %v1303
  %v1402 = vunpack.c.l.b16 %v1304
  %v1403 = vunpack.c.l.b16 %v1305
  %v1404 = vunpack.c.l.b16 %v1306
  %v1405 = vunpack.c.l.b16 %v1307
  %v1406 = vunpack.c.l.b16 %v1308
  %v1407 = vunpack.c.l.b16 %v1309
  %v1408 = vunpack.c.l.b16 %v1310
  %v1409 = vunpack.c.l.b16 %v1311
  %v1410 = vunpack.c.l.b16 %v1312
  %v1411 = vunpack.c.l.b16 %v1313
  %v1412 = vunpack.c.l.b16 %v1314
  %v1413 = vunpack.c.l.b16 %v1315
  %v1414 = vunpack.c.l.b16 %v1316
  %v1415 = vunpack.c.l.b16 %v1317
  %v1416 = vunpack.c.l.b16 %v1318
  %v1417 = vunpack.c.l.b16 %v1319
  %v1418 = vunpack.c.l.b16 %v1320
  %v1419 = vunpack.c.l.b16 %v1321
  %v1420 = vunpack.c.l.b16 %v1322
  %v1421 = vunpack.c.l.b16 %v1323
  %v1422 = vunpack.c.l.b16 %v1324
  %v1423 = vunpack.c.l.b16 %v1325
  %v1424 = vunpack.c.l.b16 %v1326
  %v1425 = vunpack.c.l.b16 %v1327
  %v1426 = vpack.c.b16 %v1378, %v1377
  %v1427 = vpack.c.b16 %v1380, %v1379
  %v1428 = vpack.c.b16 %v1382, %v1381
  %v1429 = vpack.c.b16 %v1384, %v1383
  %v1430 = vpack.c.b16 %v1386, %v1385
  %v1431 = vpack.c.b16 %v1388, %v1387
  %v1432 = vpack.c.b16 %v1390, %v1389
  %v1433 = vpack.c.b16 %v1392, %v1391
  %v1434 = vpack.c.b16 %v1394, %v1393
  %v1435 = vpack.c.b16 %v1396, %v1395
  %v1436 = vpack.c.b16 %v1398, %v1397
  %v1437 = vpack.c.b16 %v1400, %v1399
  %v1438 = vpack.c.b16 %v1402, %v1401
  %v1439 = vpack.c.b16 %v1404, %v1403
  %v1440 = vpack.c.b16 %v1406, %v1405
  %v1441 = vpack.c.b16 %v1408, %v1407
  %v1442 = vpack.c.b16 %v1410, %v1409
  %v1443 = vpack.c.b16 %v1412, %v1411
  %v1444 = vpack.c.b16 %v1414, %v1413
  %v1445 = vpack.c.b16 %v1416, %v1415
  %v1446 = vpack.c.b16 %v1418, %v1417
  %v1447 = vpack.c.b16 %v1420, %v1419
  %v1448 = vpack.c.b16 %v1422, %v1421
  %v1449 = vpack.c.b16 %v1424, %v1423
  %v1450 = vpack.c.b16 %v1425, %v1425
  %v1452 = vsel %vm202, %v1426, 0
  %v1455 = vsel %vm202, %v1427, 0
  %v1458 = vsel %vm202, %v1428, 0
  %v1461 = vsel %vm202, %v1429, 0
  %v1464 = vsel %vm202, %v1430, 0
  %v1467 = vsel %vm202, %v1431, 0
  %v1470 = vsel %vm202, %v1432, 0
  %v1473 = vsel %vm202, %v1433, 0
  %v1476 = vsel %vm202, %v1434, 0
  %v1479 = vsel %vm202, %v1435, 0
  %v1482 = vsel %vm202, %v1436, 0
  %v1485 = vsel %vm202, %v1437, 0
  %v1488 = vsel %vm202, %v1438, 0
  %v1491 = vsel %vm202, %v1439, 0
  %v1494 = vsel %vm202, %v1440, 0
  %v1497 = vsel %vm202, %v1441, 0
  %v1500 = vsel %vm202, %v1442, 0
  %v1503 = vsel %vm202, %v1443, 0
  %v1506 = vsel %vm202, %v1444, 0
  %v1509 = vsel %vm202, %v1445, 0
  %v1512 = vsel %vm202, %v1446, 0
  %v1515 = vsel %vm202, %v1447, 0
  %v1518 = vsel %vm202, %v1448, 0
  %v1521 = vsel %vm202, %v1449, 0
  %v1524 = vsel %vm202, %v1450, 0
  %1526 = vmatpush.bf16.msra.mxu0 0
  %1527 = vmatpush.bf16.msra.mxu0 0
  %1528 = vmatpush.bf16.msra.mxu0 0
  %1529 = vmatpush.bf16.msra.mxu0 0
  %1530 = vmatpush.bf16.msra.mxu0 0
  %1531 = vmatpush.bf16.msra.mxu0 0
  %1532 = vmatpush.bf16.msra.mxu0 %v283
  %1533 = vmatpush.bf16.msra.mxu0 %v199
  %1534 = vmatmul.bf16.gmra.mxu0 %v1452
  %v1535 = vpop.f32.mrf.mxu0
  %v1536 = vadd.f32 0.0, %v1535
  %v1537 = vpop.f32.mrf.mxu0
  %v1538 = vadd.f32 0.0, %v1537
  %1539 = vmatmul.bf16.gmra.mxu0 %v1455
  %v1540 = vpop.f32.mrf.mxu0
  %v1541 = vadd.f32 0.0, %v1540
  %v1542 = vpop.f32.mrf.mxu0
  %v1543 = vadd.f32 0.0, %v1542
  %1544 = vmatmul.bf16.gmra.mxu0 %v1458
  %v1545 = vpop.f32.mrf.mxu0
  %v1546 = vadd.f32 0.0, %v1545
  %v1547 = vpop.f32.mrf.mxu0
  %v1548 = vadd.f32 0.0, %v1547
  %1549 = vmatmul.bf16.gmra.mxu0 %v1461
  %v1550 = vpop.f32.mrf.mxu0
  %v1551 = vadd.f32 0.0, %v1550
  %v1552 = vpop.f32.mrf.mxu0
  %v1553 = vadd.f32 0.0, %v1552
  %1554 = vmatmul.bf16.gmra.mxu0 %v1464
  %v1555 = vpop.f32.mrf.mxu0
  %v1556 = vadd.f32 0.0, %v1555
  %v1557 = vpop.f32.mrf.mxu0
  %v1558 = vadd.f32 0.0, %v1557
  %1559 = vmatmul.bf16.gmra.mxu0 %v1467
  %v1560 = vpop.f32.mrf.mxu0
  %v1561 = vadd.f32 0.0, %v1560
  %v1562 = vpop.f32.mrf.mxu0
  %v1563 = vadd.f32 0.0, %v1562
  %1564 = vmatmul.bf16.gmra.mxu0 %v1470
  %v1565 = vpop.f32.mrf.mxu0
  %v1566 = vadd.f32 0.0, %v1565
  %v1567 = vpop.f32.mrf.mxu0
  %v1568 = vadd.f32 0.0, %v1567
  %1569 = vmatmul.bf16.gmra.mxu0 %v1473
  %v1570 = vpop.f32.mrf.mxu0
  %v1571 = vadd.f32 0.0, %v1570
  %v1572 = vpop.f32.mrf.mxu0
  %v1573 = vadd.f32 0.0, %v1572
  %1574 = vmatmul.bf16.gmra.mxu0 %v1476
  %v1575 = vpop.f32.mrf.mxu0
  %v1576 = vadd.f32 0.0, %v1575
  %v1577 = vpop.f32.mrf.mxu0
  %v1578 = vadd.f32 0.0, %v1577
  %1579 = vmatmul.bf16.gmra.mxu0 %v1479
  %v1580 = vpop.f32.mrf.mxu0
  %v1581 = vadd.f32 0.0, %v1580
  %v1582 = vpop.f32.mrf.mxu0
  %v1583 = vadd.f32 0.0, %v1582
  %1584 = vmatmul.bf16.gmra.mxu0 %v1482
  %v1585 = vpop.f32.mrf.mxu0
  %v1586 = vadd.f32 0.0, %v1585
  %v1587 = vpop.f32.mrf.mxu0
  %v1588 = vadd.f32 0.0, %v1587
  %1589 = vmatmul.bf16.gmra.mxu0 %v1485
  %v1590 = vpop.f32.mrf.mxu0
  %v1591 = vadd.f32 0.0, %v1590
  %v1592 = vpop.f32.mrf.mxu0
  %v1593 = vadd.f32 0.0, %v1592
  %1594 = vmatmul.bf16.gmra.mxu0 %v1488
  %v1595 = vpop.f32.mrf.mxu0
  %v1596 = vadd.f32 0.0, %v1595
  %v1597 = vpop.f32.mrf.mxu0
  %v1598 = vadd.f32 0.0, %v1597
  %1599 = vmatmul.bf16.gmra.mxu0 %v1491
  %v1600 = vpop.f32.mrf.mxu0
  %v1601 = vadd.f32 0.0, %v1600
  %v1602 = vpop.f32.mrf.mxu0
  %v1603 = vadd.f32 0.0, %v1602
  %1604 = vmatmul.bf16.gmra.mxu0 %v1494
  %v1605 = vpop.f32.mrf.mxu0
  %v1606 = vadd.f32 0.0, %v1605
  %v1607 = vpop.f32.mrf.mxu0
  %v1608 = vadd.f32 0.0, %v1607
  %1609 = vmatmul.bf16.gmra.mxu0 %v1497
  %v1610 = vpop.f32.mrf.mxu0
  %v1611 = vadd.f32 0.0, %v1610
  %v1612 = vpop.f32.mrf.mxu0
  %v1613 = vadd.f32 0.0, %v1612
  %1614 = vmatmul.bf16.gmra.mxu0 %v1500
  %v1615 = vpop.f32.mrf.mxu0
  %v1616 = vadd.f32 0.0, %v1615
  %v1617 = vpop.f32.mrf.mxu0
  %v1618 = vadd.f32 0.0, %v1617
  %1619 = vmatmul.bf16.gmra.mxu0 %v1503
  %v1620 = vpop.f32.mrf.mxu0
  %v1621 = vadd.f32 0.0, %v1620
  %v1622 = vpop.f32.mrf.mxu0
  %v1623 = vadd.f32 0.0, %v1622
  %1624 = vmatmul.bf16.gmra.mxu0 %v1506
  %v1625 = vpop.f32.mrf.mxu0
  %v1626 = vadd.f32 0.0, %v1625
  %v1627 = vpop.f32.mrf.mxu0
  %v1628 = vadd.f32 0.0, %v1627
  %1629 = vmatmul.bf16.gmra.mxu0 %v1509
  %v1630 = vpop.f32.mrf.mxu0
  %v1631 = vadd.f32 0.0, %v1630
  %v1632 = vpop.f32.mrf.mxu0
  %v1633 = vadd.f32 0.0, %v1632
  %1634 = vmatmul.bf16.gmra.mxu0 %v1512
  %v1635 = vpop.f32.mrf.mxu0
  %v1636 = vadd.f32 0.0, %v1635
  %v1637 = vpop.f32.mrf.mxu0
  %v1638 = vadd.f32 0.0, %v1637
  %1639 = vmatmul.bf16.gmra.mxu0 %v1515
  %v1640 = vpop.f32.mrf.mxu0
  %v1641 = vadd.f32 0.0, %v1640
  %v1642 = vpop.f32.mrf.mxu0
  %v1643 = vadd.f32 0.0, %v1642
  %1644 = vmatmul.bf16.gmra.mxu0 %v1518
  %v1645 = vpop.f32.mrf.mxu0
  %v1646 = vadd.f32 0.0, %v1645
  %v1647 = vpop.f32.mrf.mxu0
  %v1648 = vadd.f32 0.0, %v1647
  %1649 = vmatmul.bf16.gmra.mxu0 %v1521
  %v1650 = vpop.f32.mrf.mxu0
  %v1651 = vadd.f32 0.0, %v1650
  %v1652 = vpop.f32.mrf.mxu0
  %v1653 = vadd.f32 0.0, %v1652
  %1654 = vmatmul.bf16.gmra.mxu0 %v1524
  %v1655 = vpop.f32.mrf.mxu0
  %v1656 = vadd.f32 0.0, %v1655
  %v1657 = vpop.f32.mrf.mxu0
  %1658 = vdwg.mxu0
  %v1659 = vmax.f32 %v1229, %v1536
  %v1660 = vmax.f32 %v1230, %v1538
  %v1661 = vmax.f32 %v1231, %v1541
  %v1662 = vmax.f32 %v1232, %v1543
  %v1663 = vmax.f32 %v1233, %v1546
  %v1664 = vmax.f32 %v1234, %v1548
  %v1665 = vmax.f32 %v1235, %v1551
  %v1666 = vmax.f32 %v1236, %v1553
  %v1667 = vmax.f32 %v1237, %v1556
  %v1668 = vmax.f32 %v1238, %v1558
  %v1669 = vmax.f32 %v1239, %v1561
  %v1670 = vmax.f32 %v1240, %v1563
  %v1671 = vmax.f32 %v1241, %v1566
  %v1672 = vmax.f32 %v1242, %v1568
  %v1673 = vmax.f32 %v1243, %v1571
  %v1674 = vmax.f32 %v1244, %v1573
  %v1675 = vmax.f32 %v1245, %v1576
  %v1676 = vmax.f32 %v1246, %v1578
  %v1677 = vmax.f32 %v1247, %v1581
  %v1678 = vmax.f32 %v1248, %v1583
  %v1679 = vmax.f32 %v1249, %v1586
  %v1680 = vmax.f32 %v1250, %v1588
  %v1681 = vmax.f32 %v1251, %v1591
  %v1682 = vmax.f32 %v1252, %v1593
  %v1683 = vmax.f32 %v1253, %v1596
  %v1684 = vmax.f32 %v1254, %v1598
  %v1685 = vmax.f32 %v1255, %v1601
  %v1686 = vmax.f32 %v1256, %v1603
  %v1687 = vmax.f32 %v1257, %v1606
  %v1688 = vmax.f32 %v1258, %v1608
  %v1689 = vmax.f32 %v1259, %v1611
  %v1690 = vmax.f32 %v1260, %v1613
  %v1691 = vmax.f32 %v1261, %v1616
  %v1692 = vmax.f32 %v1262, %v1618
  %v1693 = vmax.f32 %v1263, %v1621
  %v1694 = vmax.f32 %v1264, %v1623
  %v1695 = vmax.f32 %v1265, %v1626
  %v1696 = vmax.f32 %v1266, %v1628
  %v1697 = vmax.f32 %v1267, %v1631
  %v1698 = vmax.f32 %v1268, %v1633
  %v1699 = vmax.f32 %v1269, %v1636
  %v1700 = vmax.f32 %v1270, %v1638
  %v1701 = vmax.f32 %v1271, %v1641
  %v1702 = vmax.f32 %v1272, %v1643
  %v1703 = vmax.f32 %v1273, %v1646
  %v1704 = vmax.f32 %v1274, %v1648
  %v1705 = vmax.f32 %v1275, %v1651
  %v1706 = vmax.f32 %v1276, %v1653
  %v1707 = vmax.f32 %v1277, %v1656
  %v1708 = vld [vmem:[%s2] sm:$0x1]
  %v1710 = vperm.slane %v1708, 0
  %v1712 = vadd.f32 %v1659, %v1710
  %v1713 = vadd.f32 %v1660, %v1710
  %v1714 = vadd.f32 %v1661, %v1710
  %v1715 = vadd.f32 %v1662, %v1710
  %v1716 = vadd.f32 %v1663, %v1710
  %v1717 = vadd.f32 %v1664, %v1710
  %v1718 = vadd.f32 %v1665, %v1710
  %v1719 = vadd.f32 %v1666, %v1710
  %v1720 = vadd.f32 %v1667, %v1710
  %v1721 = vadd.f32 %v1668, %v1710
  %v1722 = vadd.f32 %v1669, %v1710
  %v1723 = vadd.f32 %v1670, %v1710
  %v1724 = vadd.f32 %v1671, %v1710
  %v1725 = vadd.f32 %v1672, %v1710
  %v1726 = vadd.f32 %v1673, %v1710
  %v1727 = vadd.f32 %v1674, %v1710
  %v1728 = vadd.f32 %v1675, %v1710
  %v1729 = vadd.f32 %v1676, %v1710
  %v1730 = vadd.f32 %v1677, %v1710
  %v1731 = vadd.f32 %v1678, %v1710
  %v1732 = vadd.f32 %v1679, %v1710
  %v1733 = vadd.f32 %v1680, %v1710
  %v1734 = vadd.f32 %v1681, %v1710
  %v1735 = vadd.f32 %v1682, %v1710
  %v1736 = vadd.f32 %v1683, %v1710
  %v1737 = vadd.f32 %v1684, %v1710
  %v1738 = vadd.f32 %v1685, %v1710
  %v1739 = vadd.f32 %v1686, %v1710
  %v1740 = vadd.f32 %v1687, %v1710
  %v1741 = vadd.f32 %v1688, %v1710
  %v1742 = vadd.f32 %v1689, %v1710
  %v1743 = vadd.f32 %v1690, %v1710
  %v1744 = vadd.f32 %v1691, %v1710
  %v1745 = vadd.f32 %v1692, %v1710
  %v1746 = vadd.f32 %v1693, %v1710
  %v1747 = vadd.f32 %v1694, %v1710
  %v1748 = vadd.f32 %v1695, %v1710
  %v1749 = vadd.f32 %v1696, %v1710
  %v1750 = vadd.f32 %v1697, %v1710
  %v1751 = vadd.f32 %v1698, %v1710
  %v1752 = vadd.f32 %v1699, %v1710
  %v1753 = vadd.f32 %v1700, %v1710
  %v1754 = vadd.f32 %v1701, %v1710
  %v1755 = vadd.f32 %v1702, %v1710
  %v1756 = vadd.f32 %v1703, %v1710
  %v1757 = vadd.f32 %v1704, %v1710
  %v1758 = vadd.f32 %v1705, %v1710
  %v1759 = vadd.f32 %v1706, %v1710
  %v1760 = vadd.f32 %v1707, %v1710
  %v1761 = vmax.f32 %v1712, 0.0
  %v1762 = vmax.f32 %v1713, 0.0
  %v1763 = vmax.f32 %v1714, 0.0
  %v1764 = vmax.f32 %v1715, 0.0
  %v1765 = vmax.f32 %v1716, 0.0
  %v1766 = vmax.f32 %v1717, 0.0
  %v1767 = vmax.f32 %v1718, 0.0
  %v1768 = vmax.f32 %v1719, 0.0
  %v1769 = vmax.f32 %v1720, 0.0
  %v1770 = vmax.f32 %v1721, 0.0
  %v1771 = vmax.f32 %v1722, 0.0
  %v1772 = vmax.f32 %v1723, 0.0
  %v1773 = vmax.f32 %v1724, 0.0
  %v1774 = vmax.f32 %v1725, 0.0
  %v1775 = vmax.f32 %v1726, 0.0
  %v1776 = vmax.f32 %v1727, 0.0
  %v1777 = vmax.f32 %v1728, 0.0
  %v1778 = vmax.f32 %v1729, 0.0
  %v1779 = vmax.f32 %v1730, 0.0
  %v1780 = vmax.f32 %v1731, 0.0
  %v1781 = vmax.f32 %v1732, 0.0
  %v1782 = vmax.f32 %v1733, 0.0
  %v1783 = vmax.f32 %v1734, 0.0
  %v1784 = vmax.f32 %v1735, 0.0
  %v1785 = vmax.f32 %v1736, 0.0
  %v1786 = vmax.f32 %v1737, 0.0
  %v1787 = vmax.f32 %v1738, 0.0
  %v1788 = vmax.f32 %v1739, 0.0
  %v1789 = vmax.f32 %v1740, 0.0
  %v1790 = vmax.f32 %v1741, 0.0
  %v1791 = vmax.f32 %v1742, 0.0
  %v1792 = vmax.f32 %v1743, 0.0
  %v1793 = vmax.f32 %v1744, 0.0
  %v1794 = vmax.f32 %v1745, 0.0
  %v1795 = vmax.f32 %v1746, 0.0
  %v1796 = vmax.f32 %v1747, 0.0
  %v1797 = vmax.f32 %v1748, 0.0
  %v1798 = vmax.f32 %v1749, 0.0
  %v1799 = vmax.f32 %v1750, 0.0
  %v1800 = vmax.f32 %v1751, 0.0
  %v1801 = vmax.f32 %v1752, 0.0
  %v1802 = vmax.f32 %v1753, 0.0
  %v1803 = vmax.f32 %v1754, 0.0
  %v1804 = vmax.f32 %v1755, 0.0
  %v1805 = vmax.f32 %v1756, 0.0
  %v1806 = vmax.f32 %v1757, 0.0
  %v1807 = vmax.f32 %v1758, 0.0
  %v1808 = vmax.f32 %v1759, 0.0
  %v1809 = vmax.f32 %v1760, 0.0
  %1810 = vst [vmem:[%s3] sm:$0xff] %v1761
  %1811 = vst [vmem:[%s3 + $0x8] sm:$0xff] %v1762
  %1812 = vst [vmem:[%s3 + $0x10] sm:$0xff] %v1763
  %1813 = vst [vmem:[%s3 + $0x18] sm:$0xff] %v1764
  %1814 = vst [vmem:[%s3 + $0x20] sm:$0xff] %v1765
  %1815 = vst [vmem:[%s3 + $0x28] sm:$0xff] %v1766
  %1816 = vst [vmem:[%s3 + $0x30] sm:$0xff] %v1767
  %1817 = vst [vmem:[%s3 + $0x38] sm:$0xff] %v1768
  %1818 = vst [vmem:[%s3 + $0x40] sm:$0xff] %v1769
  %1819 = vst [vmem:[%s3 + $0x48] sm:$0xff] %v1770
  %1820 = vst [vmem:[%s3 + $0x50] sm:$0xff] %v1771
  %1821 = vst [vmem:[%s3 + $0x58] sm:$0xff] %v1772
  %1822 = vst [vmem:[%s3 + $0x60] sm:$0xff] %v1773
  %1823 = vst [vmem:[%s3 + $0x68] sm:$0xff] %v1774
  %1824 = vst [vmem:[%s3 + $0x70] sm:$0xff] %v1775
  %1825 = vst [vmem:[%s3 + $0x78] sm:$0xff] %v1776
  %1826 = vst [vmem:[%s3 + $0x80] sm:$0xff] %v1777
  %1827 = vst [vmem:[%s3 + $0x88] sm:$0xff] %v1778
  %1828 = vst [vmem:[%s3 + $0x90] sm:$0xff] %v1779
  %1829 = vst [vmem:[%s3 + $0x98] sm:$0xff] %v1780
  %1830 = vst [vmem:[%s3 + $0xa0] sm:$0xff] %v1781
  %1831 = vst [vmem:[%s3 + $0xa8] sm:$0xff] %v1782
  %1832 = vst [vmem:[%s3 + $0xb0] sm:$0xff] %v1783
  %1833 = vst [vmem:[%s3 + $0xb8] sm:$0xff] %v1784
  %1834 = vst [vmem:[%s3 + $0xc0] sm:$0xff] %v1785
  %1835 = vst [vmem:[%s3 + $0xc8] sm:$0xff] %v1786
  %1836 = vst [vmem:[%s3 + $0xd0] sm:$0xff] %v1787
  %1837 = vst [vmem:[%s3 + $0xd8] sm:$0xff] %v1788
  %1838 = vst [vmem:[%s3 + $0xe0] sm:$0xff] %v1789
  %1839 = vst [vmem:[%s3 + $0xe8] sm:$0xff] %v1790
  %1840 = vst [vmem:[%s3 + $0xf0] sm:$0xff] %v1791
  %1841 = vst [vmem:[%s3 + $0xf8] sm:$0xff] %v1792
  %1842 = vst [vmem:[%s3 + $0x100] sm:$0xff] %v1793
  %1843 = vst [vmem:[%s3 + $0x108] sm:$0xff] %v1794
  %1844 = vst [vmem:[%s3 + $0x110] sm:$0xff] %v1795
  %1845 = vst [vmem:[%s3 + $0x118] sm:$0xff] %v1796
  %1846 = vst [vmem:[%s3 + $0x120] sm:$0xff] %v1797
  %1847 = vst [vmem:[%s3 + $0x128] sm:$0xff] %v1798
  %1848 = vst [vmem:[%s3 + $0x130] sm:$0xff] %v1799
  %1849 = vst [vmem:[%s3 + $0x138] sm:$0xff] %v1800
  %1850 = vst [vmem:[%s3 + $0x140] sm:$0xff] %v1801
  %1851 = vst [vmem:[%s3 + $0x148] sm:$0xff] %v1802
  %1852 = vst [vmem:[%s3 + $0x150] sm:$0xff] %v1803
  %1853 = vst [vmem:[%s3 + $0x158] sm:$0xff] %v1804
  %1854 = vst [vmem:[%s3 + $0x160] sm:$0xff] %v1805
  %1855 = vst [vmem:[%s3 + $0x168] sm:$0xff] %v1806
  %1856 = vst [vmem:[%s3 + $0x170] sm:$0xff] %v1807
  %1857 = vst [vmem:[%s3 + $0x178] sm:$0xff] %v1808
  %1858 = vst [vmem:[%s3 + $0x180] sm:$0xff] %v1809
  // Predicated region
  $region14: #{convnet_forward.3} parent=0 // pred_check
    _
  $region15: #{convnet_forward.3} parent=0 // pred_check_branch
    %1860 = sbr.rel (0) target = $region17
  $region16: #{convnet_forward.3} parent=0 // pred_region
    _
  $region17: #{convnet_forward.3} parent=0 // pred_fallthru
    _
  // Predicated region
  $region18: #{convnet_forward.3} parent=0 // pred_check
    _
  $region19: #{convnet_forward.3} parent=0 // pred_check_branch
    %1862 = sbr.rel (0) target = $region21
  $region20: #{convnet_forward.3} parent=0 // pred_region
    _
  $region21: #{convnet_forward.3} parent=0 // pred_fallthru
    _

// kernel: convnet_forward.4
$region0: #{convnet_forward.4}
  #allocation0 [shape = 'u32[]', space=smem, size = 0x4, offset = 0x4, fixed_abs, tag = 'smem constant byte address 0x4 - core index']
  #allocation1 [shape = 'u32[72,128]{1,0:T(1,128)}', space=vmem, size = 0x9000, scoped, tag = 'internal scratch']
  %s0 = inlined_call_operand.vmem [shape: bf16[4,98,400], index: 0, kind: input, shape index: {}]
  %s1 = inlined_call_operand.vmem [shape: bf16[400,128], index: 1, kind: input, shape index: {}]
  %s2 = inlined_call_operand.vmem [shape: f32[1,128], index: 2, kind: input, shape index: {}]
  %s3 = inlined_call_operand.vmem [shape: f32[98,128], index: 3, kind: output, shape index: {}]
  %s4 = sld [smem:[#allocation0]]
  $region22: #{convnet_forward.4} parent=0
    _
  %s6 = ssub.s32 1, %s4
  %s7 = scalar_select 0, %s6, %s4
  // Predicated region
  $region2: #{convnet_forward.4} parent=0 // pred_check
    _
  $region3: #{convnet_forward.4} parent=0 // pred_check_branch
    %9 = sbr.rel (0) target = $region5
  $region4: #{convnet_forward.4} parent=0 // pred_region
    _
  $region5: #{convnet_forward.4} parent=0 // pred_fallthru
    _
  // Predicated region
  $region6: #{convnet_forward.4} parent=0 // pred_check
    _
  $region7: #{convnet_forward.4} parent=0 // pred_check_branch
    %11 = sbr.rel (0) target = $region9
  $region8: #{convnet_forward.4} parent=0 // pred_region
    _
  $region9: #{convnet_forward.4} parent=0 // pred_fallthru
    _
  // Predicated region
  $region10: #{convnet_forward.4} parent=0 // pred_check
    _
  $region11: #{convnet_forward.4} parent=0 // pred_check_branch
    %13 = sbr.rel (0) target = $region13
  $region12: #{convnet_forward.4} parent=0 // pred_region
    _
  $region13: #{convnet_forward.4} parent=0 // pred_fallthru
    _
  %v15 = vld [vmem:[%s1] sm:$0xf]
  %v16 = vld [vmem:[%s1 + $0x4] sm:$0xf]
  %v17 = vld [vmem:[%s1 + $0x8] sm:$0xf]
  %v18 = vld [vmem:[%s1 + $0xc] sm:$0xf]
  %v19 = vld [vmem:[%s1 + $0x10] sm:$0xf]
  %v20 = vld [vmem:[%s1 + $0x14] sm:$0xf]
  %v21 = vld [vmem:[%s1 + $0x18] sm:$0xf]
  %v22 = vld [vmem:[%s1 + $0x1c] sm:$0xf]
  %v23 = vld [vmem:[%s1 + $0x20] sm:$0xf]
  %v24 = vld [vmem:[%s1 + $0x24] sm:$0xf]
  %v25 = vld [vmem:[%s1 + $0x28] sm:$0xf]
  %v26 = vld [vmem:[%s1 + $0x2c] sm:$0xf]
  %v27 = vld [vmem:[%s1 + $0x30] sm:$0xf]
  %v28 = vld [vmem:[%s1 + $0x34] sm:$0xf]
  %v29 = vld [vmem:[%s1 + $0x38] sm:$0xf]
  %v30 = vld [vmem:[%s1 + $0x3c] sm:$0xf]
  %v31 = vld [vmem:[%s1 + $0x40] sm:$0xf]
  %v32 = vld [vmem:[%s1 + $0x44] sm:$0xf]
  %v33 = vld [vmem:[%s1 + $0x48] sm:$0xf]
  %v34 = vld [vmem:[%s1 + $0x4c] sm:$0xf]
  %v35 = vld [vmem:[%s1 + $0x50] sm:$0xf]
  %v36 = vld [vmem:[%s1 + $0x54] sm:$0xf]
  %v37 = vld [vmem:[%s1 + $0x58] sm:$0xf]
  %v38 = vld [vmem:[%s1 + $0x5c] sm:$0xf]
  %v39 = vld [vmem:[%s1 + $0x60] sm:$0xf]
  %v40 = vld [vmem:[%s1 + $0x64] sm:$0xf]
  %v41 = vld [vmem:[%s1 + $0x68] sm:$0xf]
  %v42 = vld [vmem:[%s1 + $0x6c] sm:$0xf]
  %v43 = vld [vmem:[%s1 + $0x70] sm:$0xf]
  %v44 = vld [vmem:[%s1 + $0x74] sm:$0xf]
  %v45 = vld [vmem:[%s1 + $0x78] sm:$0xf]
  %v46 = vld [vmem:[%s1 + $0x7c] sm:$0xf]
  %v47 = vld [vmem:[%s1 + $0x80] sm:$0xf]
  %v48 = vld [vmem:[%s1 + $0x84] sm:$0xf]
  %v49 = vld [vmem:[%s1 + $0x88] sm:$0xf]
  %v50 = vld [vmem:[%s1 + $0x8c] sm:$0xf]
  %v51 = vld [vmem:[%s1 + $0x90] sm:$0xf]
  %v52 = vld [vmem:[%s1 + $0x94] sm:$0xf]
  %v53 = vld [vmem:[%s1 + $0x98] sm:$0xf]
  %v54 = vld [vmem:[%s1 + $0x9c] sm:$0xf]
  %v55 = vld [vmem:[%s1 + $0xa0] sm:$0xf]
  %v56 = vld [vmem:[%s1 + $0xa4] sm:$0xf]
  %v57 = vld [vmem:[%s1 + $0xa8] sm:$0xf]
  %v58 = vld [vmem:[%s1 + $0xac] sm:$0xf]
  %v59 = vld [vmem:[%s1 + $0xb0] sm:$0xf]
  %v60 = vld [vmem:[%s1 + $0xb4] sm:$0xf]
  %v61 = vld [vmem:[%s1 + $0xb8] sm:$0xf]
  %v62 = vld [vmem:[%s1 + $0xbc] sm:$0xf]
  %v63 = vld [vmem:[%s1 + $0xc0] sm:$0xf]
  %v64 = vld [vmem:[%s1 + $0xc4] sm:$0xf]
  %v65 = vld [vmem:[%s0] sm:$0xff]
  %v66 = vld [vmem:[%s0 + $0x8] sm:$0xff]
  %v67 = vld [vmem:[%s0 + $0x10] sm:$0xff]
  %v68 = vld [vmem:[%s0 + $0x18] sm:$0xff]
  %v69 = vld [vmem:[%s0 + $0x20] sm:$0xff]
  %v70 = vld [vmem:[%s0 + $0x28] sm:$0xff]
  %v71 = vld [vmem:[%s0 + $0x30] sm:$0xff]
  %v72 = vld [vmem:[%s0 + $0x38] sm:$0xff]
  %v73 = vld [vmem:[%s0 + $0x40] sm:$0xff]
  %v74 = vld [vmem:[%s0 + $0x48] sm:$0xff]
  %v75 = vld [vmem:[%s0 + $0x50] sm:$0xff]
  %v76 = vld [vmem:[%s0 + $0x58] sm:$0xff]
  %v77 = vld [vmem:[%s0 + $0x60] sm:$0xff]
  %v78 = vld [vmem:[%s0 + $0x68] sm:$0xff]
  %v79 = vld [vmem:[%s0 + $0x70] sm:$0xff]
  %v80 = vld [vmem:[%s0 + $0x78] sm:$0xff]
  %v81 = vld [vmem:[%s0 + $0x80] sm:$0xff]
  %v82 = vld [vmem:[%s0 + $0x88] sm:$0xff]
  %v83 = vld [vmem:[%s0 + $0x90] sm:$0xff]
  %v84 = vld [vmem:[%s0 + $0x98] sm:$0xff]
  %v85 = vld [vmem:[%s0 + $0xa0] sm:$0xff]
  %v86 = vld [vmem:[%s0 + $0xa8] sm:$0xff]
  %v87 = vld [vmem:[%s0 + $0xb0] sm:$0xff]
  %v88 = vld [vmem:[%s0 + $0xb8] sm:$0xff]
  %v89 = vld [vmem:[%s0 + $0xc0] sm:$0x11]
  %v90 = vld [vmem:[%s0 + $0xc8] sm:$0x11]
  %v117 = vunpack.c.l.b16 %v65
  %v118 = vunpack.c.h.b16 %v65
  %v119 = vunpack.c.l.b16 %v66
  %v120 = vunpack.c.h.b16 %v66
  %v121 = vunpack.c.l.b16 %v67
  %v122 = vunpack.c.h.b16 %v67
  %v123 = vunpack.c.l.b16 %v68
  %v124 = vunpack.c.h.b16 %v68
  %v125 = vunpack.c.l.b16 %v69
  %v126 = vunpack.c.h.b16 %v69
  %v127 = vunpack.c.l.b16 %v70
  %v128 = vunpack.c.h.b16 %v70
  %v129 = vunpack.c.l.b16 %v71
  %v130 = vunpack.c.h.b16 %v71
  %v131 = vunpack.c.l.b16 %v72
  %v132 = vunpack.c.h.b16 %v72
  %v133 = vunpack.c.l.b16 %v73
  %v134 = vunpack.c.h.b16 %v73
  %v135 = vunpack.c.l.b16 %v74
  %v136 = vunpack.c.h.b16 %v74
  %v137 = vunpack.c.l.b16 %v75
  %v138 = vunpack.c.h.b16 %v75
  %v139 = vunpack.c.l.b16 %v76
  %v140 = vunpack.c.h.b16 %v76
  %v141 = vunpack.c.l.b16 %v77
  %v142 = vunpack.c.h.b16 %v77
  %v143 = vunpack.c.l.b16 %v78
  %v144 = vunpack.c.h.b16 %v78
  %v145 = vunpack.c.l.b16 %v79
  %v146 = vunpack.c.h.b16 %v79
  %v147 = vunpack.c.l.b16 %v80
  %v148 = vunpack.c.h.b16 %v80
  %v149 = vunpack.c.l.b16 %v81
  %v150 = vunpack.c.h.b16 %v81
  %v151 = vunpack.c.l.b16 %v82
  %v152 = vunpack.c.h.b16 %v82
  %v153 = vunpack.c.l.b16 %v83
  %v154 = vunpack.c.h.b16 %v83
  %v155 = vunpack.c.l.b16 %v84
  %v156 = vunpack.c.h.b16 %v84
  %v157 = vunpack.c.l.b16 %v85
  %v158 = vunpack.c.h.b16 %v85
  %v159 = vunpack.c.l.b16 %v86
  %v160 = vunpack.c.h.b16 %v86
  %v161 = vunpack.c.l.b16 %v87
  %v162 = vunpack.c.h.b16 %v87
  %v163 = vunpack.c.l.b16 %v88
  %v164 = vunpack.c.h.b16 %v88
  %v165 = vunpack.c.l.b16 %v89
  %v166 = vunpack.c.h.b16 %v89
  %v167 = vunpack.c.l.b16 %v90
  %v168 = vunpack.c.h.b16 %v90
  %v169 = vpack.c.b16 %v121, %v117
  %v170 = vpack.c.b16 %v122, %v118
  %v171 = vpack.c.b16 %v123, %v119
  %v172 = vpack.c.b16 %v124, %v120
  %v173 = vpack.c.b16 %v129, %v125
  %v174 = vpack.c.b16 %v130, %v126
  %v175 = vpack.c.b16 %v131, %v127
  %v176 = vpack.c.b16 %v132, %v128
  %v177 = vpack.c.b16 %v137, %v133
  %v178 = vpack.c.b16 %v138, %v134
  %v179 = vpack.c.b16 %v139, %v135
  %v180 = vpack.c.b16 %v140, %v136
  %v181 = vpack.c.b16 %v145, %v141
  %v182 = vpack.c.b16 %v146, %v142
  %v183 = vpack.c.b16 %v147, %v143
  %v184 = vpack.c.b16 %v148, %v144
  %v185 = vpack.c.b16 %v153, %v149
  %v186 = vpack.c.b16 %v154, %v150
  %v187 = vpack.c.b16 %v155, %v151
  %v188 = vpack.c.b16 %v156, %v152
  %v189 = vpack.c.b16 %v161, %v157
  %v190 = vpack.c.b16 %v162, %v158
  %v191 = vpack.c.b16 %v163, %v159
  %v192 = vpack.c.b16 %v164, %v160
  %v193 = vpack.c.b16 %v165, %v165
  %v194 = vpack.c.b16 %v166, %v166
  %v195 = vpack.c.b16 %v167, %v167
  %v196 = vpack.c.b16 %v168, %v168
  %v268 = vunpack.c.l.b16 %v15
  %v269 = vunpack.c.l.b16 %v16
  %v270 = vunpack.c.l.b16 %v17
  %v271 = vunpack.c.l.b16 %v18
  %v272 = vunpack.c.l.b16 %v19
  %v273 = vunpack.c.l.b16 %v20
  %v274 = vunpack.c.l.b16 %v21
  %v275 = vunpack.c.l.b16 %v22
  %v276 = vunpack.c.l.b16 %v23
  %v277 = vunpack.c.l.b16 %v24
  %v278 = vunpack.c.l.b16 %v25
  %v279 = vunpack.c.l.b16 %v26
  %v280 = vunpack.c.l.b16 %v27
  %v281 = vunpack.c.l.b16 %v28
  %v282 = vunpack.c.l.b16 %v29
  %v283 = vunpack.c.l.b16 %v30
  %v284 = vunpack.c.l.b16 %v31
  %v285 = vunpack.c.l.b16 %v32
  %v286 = vunpack.c.l.b16 %v33
  %v287 = vunpack.c.l.b16 %v34
  %v288 = vunpack.c.l.b16 %v35
  %v289 = vunpack.c.l.b16 %v36
  %v290 = vunpack.c.l.b16 %v37
  %v291 = vunpack.c.l.b16 %v38
  %v292 = vunpack.c.l.b16 %v39
  %v293 = vunpack.c.l.b16 %v40
  %v294 = vunpack.c.l.b16 %v41
  %v295 = vunpack.c.l.b16 %v42
  %v296 = vunpack.c.l.b16 %v43
  %v297 = vunpack.c.l.b16 %v44
  %v298 = vunpack.c.l.b16 %v45
  %v299 = vunpack.c.l.b16 %v46
  %v300 = vunpack.c.l.b16 %v47
  %v301 = vunpack.c.l.b16 %v48
  %v302 = vunpack.c.l.b16 %v49
  %v303 = vunpack.c.l.b16 %v50
  %v304 = vunpack.c.l.b16 %v51
  %v305 = vunpack.c.l.b16 %v52
  %v306 = vunpack.c.l.b16 %v53
  %v307 = vunpack.c.l.b16 %v54
  %v308 = vunpack.c.l.b16 %v55
  %v309 = vunpack.c.l.b16 %v56
  %v310 = vunpack.c.l.b16 %v57
  %v311 = vunpack.c.l.b16 %v58
  %v312 = vunpack.c.l.b16 %v59
  %v313 = vunpack.c.l.b16 %v60
  %v314 = vunpack.c.l.b16 %v61
  %v315 = vunpack.c.l.b16 %v62
  %v316 = vunpack.c.l.b16 %v63
  %v317 = vunpack.c.l.b16 %v64
  %v318 = vpack.c.b16 %v269, %v268
  %v319 = vpack.c.b16 %v271, %v270
  %v320 = vpack.c.b16 %v273, %v272
  %v321 = vpack.c.b16 %v275, %v274
  %v322 = vpack.c.b16 %v277, %v276
  %v323 = vpack.c.b16 %v279, %v278
  %v324 = vpack.c.b16 %v281, %v280
  %v325 = vpack.c.b16 %v283, %v282
  %v326 = vpack.c.b16 %v285, %v284
  %v327 = vpack.c.b16 %v287, %v286
  %v328 = vpack.c.b16 %v289, %v288
  %v329 = vpack.c.b16 %v291, %v290
  %v330 = vpack.c.b16 %v293, %v292
  %v331 = vpack.c.b16 %v295, %v294
  %v332 = vpack.c.b16 %v297, %v296
  %v333 = vpack.c.b16 %v299, %v298
  %v334 = vpack.c.b16 %v301, %v300
  %v335 = vpack.c.b16 %v303, %v302
  %v336 = vpack.c.b16 %v305, %v304
  %v337 = vpack.c.b16 %v307, %v306
  %v338 = vpack.c.b16 %v309, %v308
  %v339 = vpack.c.b16 %v311, %v310
  %v340 = vpack.c.b16 %v313, %v312
  %v341 = vpack.c.b16 %v315, %v314
  %v342 = vpack.c.b16 %v317, %v316
  %vm368 = vcmask 130048
  %v370 = vsel %vm368, %v172, 0
  %v373 = vsel %vm368, %v176, 0
  %v376 = vsel %vm368, %v180, 0
  %v379 = vsel %vm368, %v184, 0
  %v382 = vsel %vm368, %v188, 0
  %v385 = vsel %vm368, %v192, 0
  %v388 = vsel %vm368, %v196, 0
  %390 = vmatpush.bf16.msra.mxu0 %v325
  %391 = vmatpush.bf16.msra.mxu0 %v324
  %392 = vmatpush.bf16.msra.mxu0 %v323
  %393 = vmatpush.bf16.msra.mxu0 %v322
  %394 = vmatpush.bf16.msra.mxu0 %v321
  %395 = vmatpush.bf16.msra.mxu0 %v320
  %396 = vmatpush.bf16.msra.mxu0 %v319
  %397 = vmatpush.bf16.msra.mxu0 %v318
  %398 = vmatmul.bf16.gmra.mxu0 %v169
  %v399 = vpop.f32.mrf.mxu0
  %v400 = vadd.f32 0.0, %v399
  %v401 = vpop.f32.mrf.mxu0
  %v402 = vadd.f32 0.0, %v401
  %403 = vmatmul.bf16.gmra.mxu0 %v173
  %v404 = vpop.f32.mrf.mxu0
  %v405 = vadd.f32 0.0, %v404
  %v406 = vpop.f32.mrf.mxu0
  %v407 = vadd.f32 0.0, %v406
  %408 = vmatmul.bf16.gmra.mxu0 %v177
  %v409 = vpop.f32.mrf.mxu0
  %v410 = vadd.f32 0.0, %v409
  %v411 = vpop.f32.mrf.mxu0
  %v412 = vadd.f32 0.0, %v411
  %413 = vmatmul.bf16.gmra.mxu0 %v181
  %v414 = vpop.f32.mrf.mxu0
  %v415 = vadd.f32 0.0, %v414
  %v416 = vpop.f32.mrf.mxu0
  %v417 = vadd.f32 0.0, %v416
  %418 = vmatmul.bf16.gmra.mxu0 %v185
  %v419 = vpop.f32.mrf.mxu0
  %v420 = vadd.f32 0.0, %v419
  %v421 = vpop.f32.mrf.mxu0
  %v422 = vadd.f32 0.0, %v421
  %423 = vmatmul.bf16.gmra.mxu0 %v189
  %v424 = vpop.f32.mrf.mxu0
  %v425 = vadd.f32 0.0, %v424
  %v426 = vpop.f32.mrf.mxu0
  %v427 = vadd.f32 0.0, %v426
  %428 = vmatmul.bf16.gmra.mxu0 %v193
  %v429 = vpop.f32.mrf.mxu0
  %v430 = vadd.f32 0.0, %v429
  %v431 = vpop.f32.mrf.mxu0
  %432 = vdwg.mxu0
  %433 = vmatpush.bf16.msra.mxu0 %v333
  %434 = vmatpush.bf16.msra.mxu0 %v332
  %435 = vmatpush.bf16.msra.mxu0 %v331
  %436 = vmatpush.bf16.msra.mxu0 %v330
  %437 = vmatpush.bf16.msra.mxu0 %v329
  %438 = vmatpush.bf16.msra.mxu0 %v328
  %439 = vmatpush.bf16.msra.mxu0 %v327
  %440 = vmatpush.bf16.msra.mxu0 %v326
  %441 = vmatmul.bf16.gmra.mxu0 %v170
  %v442 = vpop.f32.mrf.mxu0
  %v443 = vadd.f32 %v400, %v442
  %v444 = vpop.f32.mrf.mxu0
  %v445 = vadd.f32 %v402, %v444
  %446 = vmatmul.bf16.gmra.mxu0 %v174
  %v447 = vpop.f32.mrf.mxu0
  %v448 = vadd.f32 %v405, %v447
  %v449 = vpop.f32.mrf.mxu0
  %v450 = vadd.f32 %v407, %v449
  %451 = vmatmul.bf16.gmra.mxu0 %v178
  %v452 = vpop.f32.mrf.mxu0
  %v453 = vadd.f32 %v410, %v452
  %v454 = vpop.f32.mrf.mxu0
  %v455 = vadd.f32 %v412, %v454
  %456 = vmatmul.bf16.gmra.mxu0 %v182
  %v457 = vpop.f32.mrf.mxu0
  %v458 = vadd.f32 %v415, %v457
  %v459 = vpop.f32.mrf.mxu0
  %v460 = vadd.f32 %v417, %v459
  %461 = vmatmul.bf16.gmra.mxu0 %v186
  %v462 = vpop.f32.mrf.mxu0
  %v463 = vadd.f32 %v420, %v462
  %v464 = vpop.f32.mrf.mxu0
  %v465 = vadd.f32 %v422, %v464
  %466 = vmatmul.bf16.gmra.mxu0 %v190
  %v467 = vpop.f32.mrf.mxu0
  %v468 = vadd.f32 %v425, %v467
  %v469 = vpop.f32.mrf.mxu0
  %v470 = vadd.f32 %v427, %v469
  %471 = vmatmul.bf16.gmra.mxu0 %v194
  %v472 = vpop.f32.mrf.mxu0
  %v473 = vadd.f32 %v430, %v472
  %v474 = vpop.f32.mrf.mxu0
  %475 = vdwg.mxu0
  %476 = vmatpush.bf16.msra.mxu0 %v341
  %477 = vmatpush.bf16.msra.mxu0 %v340
  %478 = vmatpush.bf16.msra.mxu0 %v339
  %479 = vmatpush.bf16.msra.mxu0 %v338
  %480 = vmatpush.bf16.msra.mxu0 %v337
  %481 = vmatpush.bf16.msra.mxu0 %v336
  %482 = vmatpush.bf16.msra.mxu0 %v335
  %483 = vmatpush.bf16.msra.mxu0 %v334
  %484 = vmatmul.bf16.gmra.mxu0 %v171
  %v485 = vpop.f32.mrf.mxu0
  %v486 = vadd.f32 %v443, %v485
  %v487 = vpop.f32.mrf.mxu0
  %v488 = vadd.f32 %v445, %v487
  %489 = vmatmul.bf16.gmra.mxu0 %v175
  %v490 = vpop.f32.mrf.mxu0
  %v491 = vadd.f32 %v448, %v490
  %v492 = vpop.f32.mrf.mxu0
  %v493 = vadd.f32 %v450, %v492
  %494 = vmatmul.bf16.gmra.mxu0 %v179
  %v495 = vpop.f32.mrf.mxu0
  %v496 = vadd.f32 %v453, %v495
  %v497 = vpop.f32.mrf.mxu0
  %v498 = vadd.f32 %v455, %v497
  %499 = vmatmul.bf16.gmra.mxu0 %v183
  %v500 = vpop.f32.mrf.mxu0
  %v501 = vadd.f32 %v458, %v500
  %v502 = vpop.f32.mrf.mxu0
  %v503 = vadd.f32 %v460, %v502
  %504 = vmatmul.bf16.gmra.mxu0 %v187
  %v505 = vpop.f32.mrf.mxu0
  %v506 = vadd.f32 %v463, %v505
  %v507 = vpop.f32.mrf.mxu0
  %v508 = vadd.f32 %v465, %v507
  %509 = vmatmul.bf16.gmra.mxu0 %v191
  %v510 = vpop.f32.mrf.mxu0
  %v511 = vadd.f32 %v468, %v510
  %v512 = vpop.f32.mrf.mxu0
  %v513 = vadd.f32 %v470, %v512
  %514 = vmatmul.bf16.gmra.mxu0 %v195
  %v515 = vpop.f32.mrf.mxu0
  %v516 = vadd.f32 %v473, %v515
  %v517 = vpop.f32.mrf.mxu0
  %518 = vdwg.mxu0
  %519 = vmatpush.bf16.msra.mxu0 0
  %520 = vmatpush.bf16.msra.mxu0 0
  %521 = vmatpush.bf16.msra.mxu0 0
  %522 = vmatpush.bf16.msra.mxu0 0
  %523 = vmatpush.bf16.msra.mxu0 0
  %524 = vmatpush.bf16.msra.mxu0 0
  %525 = vmatpush.bf16.msra.mxu0 0
  %526 = vmatpush.bf16.msra.mxu0 %v342
  %527 = vmatmul.bf16.gmra.mxu0 %v370
  %v528 = vpop.f32.mrf.mxu0
  %v529 = vadd.f32 %v486, %v528
  %v530 = vpop.f32.mrf.mxu0
  %v531 = vadd.f32 %v488, %v530
  %532 = vmatmul.bf16.gmra.mxu0 %v373
  %v533 = vpop.f32.mrf.mxu0
  %v534 = vadd.f32 %v491, %v533
  %v535 = vpop.f32.mrf.mxu0
  %v536 = vadd.f32 %v493, %v535
  %537 = vmatmul.bf16.gmra.mxu0 %v376
  %v538 = vpop.f32.mrf.mxu0
  %v539 = vadd.f32 %v496, %v538
  %v540 = vpop.f32.mrf.mxu0
  %v541 = vadd.f32 %v498, %v540
  %542 = vmatmul.bf16.gmra.mxu0 %v379
  %v543 = vpop.f32.mrf.mxu0
  %v544 = vadd.f32 %v501, %v543
  %v545 = vpop.f32.mrf.mxu0
  %v546 = vadd.f32 %v503, %v545
  %547 = vmatmul.bf16.gmra.mxu0 %v382
  %v548 = vpop.f32.mrf.mxu0
  %v549 = vadd.f32 %v506, %v548
  %v550 = vpop.f32.mrf.mxu0
  %v551 = vadd.f32 %v508, %v550
  %552 = vmatmul.bf16.gmra.mxu0 %v385
  %v553 = vpop.f32.mrf.mxu0
  %v554 = vadd.f32 %v511, %v553
  %v555 = vpop.f32.mrf.mxu0
  %v556 = vadd.f32 %v513, %v555
  %557 = vmatmul.bf16.gmra.mxu0 %v388
  %v558 = vpop.f32.mrf.mxu0
  %v559 = vadd.f32 %v516, %v558
  %v560 = vpop.f32.mrf.mxu0
  %561 = vdwg.mxu0
  %s562 = scalar_lea.vmem %s0, 208
  %v563 = vld [vmem:[%s562] sm:$0xff]
  %v564 = vld [vmem:[%s562 + $0x8] sm:$0xff]
  %v565 = vld [vmem:[%s562 + $0x10] sm:$0xff]
  %v566 = vld [vmem:[%s562 + $0x18] sm:$0xff]
  %v567 = vld [vmem:[%s562 + $0x20] sm:$0xff]
  %v568 = vld [vmem:[%s562 + $0x28] sm:$0xff]
  %v569 = vld [vmem:[%s562 + $0x30] sm:$0xff]
  %v570 = vld [vmem:[%s562 + $0x38] sm:$0xff]
  %v571 = vld [vmem:[%s562 + $0x40] sm:$0xff]
  %v572 = vld [vmem:[%s562 + $0x48] sm:$0xff]
  %v573 = vld [vmem:[%s562 + $0x50] sm:$0xff]
  %v574 = vld [vmem:[%s562 + $0x58] sm:$0xff]
  %v575 = vld [vmem:[%s562 + $0x60] sm:$0xff]
  %v576 = vld [vmem:[%s562 + $0x68] sm:$0xff]
  %v577 = vld [vmem:[%s562 + $0x70] sm:$0xff]
  %v578 = vld [vmem:[%s562 + $0x78] sm:$0xff]
  %v579 = vld [vmem:[%s562 + $0x80] sm:$0xff]
  %v580 = vld [vmem:[%s562 + $0x88] sm:$0xff]
  %v581 = vld [vmem:[%s562 + $0x90] sm:$0xff]
  %v582 = vld [vmem:[%s562 + $0x98] sm:$0xff]
  %v583 = vld [vmem:[%s562 + $0xa0] sm:$0xff]
  %v584 = vld [vmem:[%s562 + $0xa8] sm:$0xff]
  %v585 = vld [vmem:[%s562 + $0xb0] sm:$0xff]
  %v586 = vld [vmem:[%s562 + $0xb8] sm:$0xff]
  %v587 = vld [vmem:[%s562 + $0xc0] sm:$0x11]
  %v588 = vld [vmem:[%s562 + $0xc8] sm:$0x11]
  %v615 = vunpack.c.l.b16 %v563
  %v616 = vunpack.c.h.b16 %v563
  %v617 = vunpack.c.l.b16 %v564
  %v618 = vunpack.c.h.b16 %v564
  %v619 = vunpack.c.l.b16 %v565
  %v620 = vunpack.c.h.b16 %v565
  %v621 = vunpack.c.l.b16 %v566
  %v622 = vunpack.c.h.b16 %v566
  %v623 = vunpack.c.l.b16 %v567
  %v624 = vunpack.c.h.b16 %v567
  %v625 = vunpack.c.l.b16 %v568
  %v626 = vunpack.c.h.b16 %v568
  %v627 = vunpack.c.l.b16 %v569
  %v628 = vunpack.c.h.b16 %v569
  %v629 = vunpack.c.l.b16 %v570
  %v630 = vunpack.c.h.b16 %v570
  %v631 = vunpack.c.l.b16 %v571
  %v632 = vunpack.c.h.b16 %v571
  %v633 = vunpack.c.l.b16 %v572
  %v634 = vunpack.c.h.b16 %v572
  %v635 = vunpack.c.l.b16 %v573
  %v636 = vunpack.c.h.b16 %v573
  %v637 = vunpack.c.l.b16 %v574
  %v638 = vunpack.c.h.b16 %v574
  %v639 = vunpack.c.l.b16 %v575
  %v640 = vunpack.c.h.b16 %v575
  %v641 = vunpack.c.l.b16 %v576
  %v642 = vunpack.c.h.b16 %v576
  %v643 = vunpack.c.l.b16 %v577
  %v644 = vunpack.c.h.b16 %v577
  %v645 = vunpack.c.l.b16 %v578
  %v646 = vunpack.c.h.b16 %v578
  %v647 = vunpack.c.l.b16 %v579
  %v648 = vunpack.c.h.b16 %v579
  %v649 = vunpack.c.l.b16 %v580
  %v650 = vunpack.c.h.b16 %v580
  %v651 = vunpack.c.l.b16 %v581
  %v652 = vunpack.c.h.b16 %v581
  %v653 = vunpack.c.l.b16 %v582
  %v654 = vunpack.c.h.b16 %v582
  %v655 = vunpack.c.l.b16 %v583
  %v656 = vunpack.c.h.b16 %v583
  %v657 = vunpack.c.l.b16 %v584
  %v658 = vunpack.c.h.b16 %v584
  %v659 = vunpack.c.l.b16 %v585
  %v660 = vunpack.c.h.b16 %v585
  %v661 = vunpack.c.l.b16 %v586
  %v662 = vunpack.c.h.b16 %v586
  %v663 = vunpack.c.l.b16 %v587
  %v664 = vunpack.c.h.b16 %v587
  %v665 = vunpack.c.l.b16 %v588
  %v666 = vunpack.c.h.b16 %v588
  %v667 = vpack.c.b16 %v619, %v615
  %v668 = vpack.c.b16 %v620, %v616
  %v669 = vpack.c.b16 %v621, %v617
  %v670 = vpack.c.b16 %v622, %v618
  %v671 = vpack.c.b16 %v627, %v623
  %v672 = vpack.c.b16 %v628, %v624
  %v673 = vpack.c.b16 %v629, %v625
  %v674 = vpack.c.b16 %v630, %v626
  %v675 = vpack.c.b16 %v635, %v631
  %v676 = vpack.c.b16 %v636, %v632
  %v677 = vpack.c.b16 %v637, %v633
  %v678 = vpack.c.b16 %v638, %v634
  %v679 = vpack.c.b16 %v643, %v639
  %v680 = vpack.c.b16 %v644, %v640
  %v681 = vpack.c.b16 %v645, %v641
  %v682 = vpack.c.b16 %v646, %v642
  %v683 = vpack.c.b16 %v651, %v647
  %v684 = vpack.c.b16 %v652, %v648
  %v685 = vpack.c.b16 %v653, %v649
  %v686 = vpack.c.b16 %v654, %v650
  %v687 = vpack.c.b16 %v659, %v655
  %v688 = vpack.c.b16 %v660, %v656
  %v689 = vpack.c.b16 %v661, %v657
  %v690 = vpack.c.b16 %v662, %v658
  %v691 = vpack.c.b16 %v663, %v663
  %v692 = vpack.c.b16 %v664, %v664
  %v693 = vpack.c.b16 %v665, %v665
  %v694 = vpack.c.b16 %v666, %v666
  %v717 = vsel %vm368, %v670, 0
  %v720 = vsel %vm368, %v674, 0
  %v723 = vsel %vm368, %v678, 0
  %v726 = vsel %vm368, %v682, 0
  %v729 = vsel %vm368, %v686, 0
  %v732 = vsel %vm368, %v690, 0
  %v735 = vsel %vm368, %v694, 0
  %737 = vmatpush.bf16.msra.mxu0 %v325
  %738 = vmatpush.bf16.msra.mxu0 %v324
  %739 = vmatpush.bf16.msra.mxu0 %v323
  %740 = vmatpush.bf16.msra.mxu0 %v322
  %741 = vmatpush.bf16.msra.mxu0 %v321
  %742 = vmatpush.bf16.msra.mxu0 %v320
  %743 = vmatpush.bf16.msra.mxu0 %v319
  %744 = vmatpush.bf16.msra.mxu0 %v318
  %745 = vmatmul.bf16.gmra.mxu0 %v667
  %v746 = vpop.f32.mrf.mxu0
  %v747 = vadd.f32 0.0, %v746
  %v748 = vpop.f32.mrf.mxu0
  %v749 = vadd.f32 0.0, %v748
  %750 = vmatmul.bf16.gmra.mxu0 %v671
  %v751 = vpop.f32.mrf.mxu0
  %v752 = vadd.f32 0.0, %v751
  %v753 = vpop.f32.mrf.mxu0
  %v754 = vadd.f32 0.0, %v753
  %755 = vmatmul.bf16.gmra.mxu0 %v675
  %v756 = vpop.f32.mrf.mxu0
  %v757 = vadd.f32 0.0, %v756
  %v758 = vpop.f32.mrf.mxu0
  %v759 = vadd.f32 0.0, %v758
  %760 = vmatmul.bf16.gmra.mxu0 %v679
  %v761 = vpop.f32.mrf.mxu0
  %v762 = vadd.f32 0.0, %v761
  %v763 = vpop.f32.mrf.mxu0
  %v764 = vadd.f32 0.0, %v763
  %765 = vmatmul.bf16.gmra.mxu0 %v683
  %v766 = vpop.f32.mrf.mxu0
  %v767 = vadd.f32 0.0, %v766
  %v768 = vpop.f32.mrf.mxu0
  %v769 = vadd.f32 0.0, %v768
  %770 = vmatmul.bf16.gmra.mxu0 %v687
  %v771 = vpop.f32.mrf.mxu0
  %v772 = vadd.f32 0.0, %v771
  %v773 = vpop.f32.mrf.mxu0
  %v774 = vadd.f32 0.0, %v773
  %775 = vmatmul.bf16.gmra.mxu0 %v691
  %v776 = vpop.f32.mrf.mxu0
  %v777 = vadd.f32 0.0, %v776
  %v778 = vpop.f32.mrf.mxu0
  %779 = vdwg.mxu0
  %780 = vmatpush.bf16.msra.mxu0 %v333
  %781 = vmatpush.bf16.msra.mxu0 %v332
  %782 = vmatpush.bf16.msra.mxu0 %v331
  %783 = vmatpush.bf16.msra.mxu0 %v330
  %784 = vmatpush.bf16.msra.mxu0 %v329
  %785 = vmatpush.bf16.msra.mxu0 %v328
  %786 = vmatpush.bf16.msra.mxu0 %v327
  %787 = vmatpush.bf16.msra.mxu0 %v326
  %788 = vmatmul.bf16.gmra.mxu0 %v668
  %v789 = vpop.f32.mrf.mxu0
  %v790 = vadd.f32 %v747, %v789
  %v791 = vpop.f32.mrf.mxu0
  %v792 = vadd.f32 %v749, %v791
  %793 = vmatmul.bf16.gmra.mxu0 %v672
  %v794 = vpop.f32.mrf.mxu0
  %v795 = vadd.f32 %v752, %v794
  %v796 = vpop.f32.mrf.mxu0
  %v797 = vadd.f32 %v754, %v796
  %798 = vmatmul.bf16.gmra.mxu0 %v676
  %v799 = vpop.f32.mrf.mxu0
  %v800 = vadd.f32 %v757, %v799
  %v801 = vpop.f32.mrf.mxu0
  %v802 = vadd.f32 %v759, %v801
  %803 = vmatmul.bf16.gmra.mxu0 %v680
  %v804 = vpop.f32.mrf.mxu0
  %v805 = vadd.f32 %v762, %v804
  %v806 = vpop.f32.mrf.mxu0
  %v807 = vadd.f32 %v764, %v806
  %808 = vmatmul.bf16.gmra.mxu0 %v684
  %v809 = vpop.f32.mrf.mxu0
  %v810 = vadd.f32 %v767, %v809
  %v811 = vpop.f32.mrf.mxu0
  %v812 = vadd.f32 %v769, %v811
  %813 = vmatmul.bf16.gmra.mxu0 %v688
  %v814 = vpop.f32.mrf.mxu0
  %v815 = vadd.f32 %v772, %v814
  %v816 = vpop.f32.mrf.mxu0
  %v817 = vadd.f32 %v774, %v816
  %818 = vmatmul.bf16.gmra.mxu0 %v692
  %v819 = vpop.f32.mrf.mxu0
  %v820 = vadd.f32 %v777, %v819
  %v821 = vpop.f32.mrf.mxu0
  %822 = vdwg.mxu0
  %823 = vmatpush.bf16.msra.mxu0 %v341
  %824 = vmatpush.bf16.msra.mxu0 %v340
  %825 = vmatpush.bf16.msra.mxu0 %v339
  %826 = vmatpush.bf16.msra.mxu0 %v338
  %827 = vmatpush.bf16.msra.mxu0 %v337
  %828 = vmatpush.bf16.msra.mxu0 %v336
  %829 = vmatpush.bf16.msra.mxu0 %v335
  %830 = vmatpush.bf16.msra.mxu0 %v334
  %831 = vmatmul.bf16.gmra.mxu0 %v669
  %v832 = vpop.f32.mrf.mxu0
  %v833 = vadd.f32 %v790, %v832
  %v834 = vpop.f32.mrf.mxu0
  %v835 = vadd.f32 %v792, %v834
  %836 = vmatmul.bf16.gmra.mxu0 %v673
  %v837 = vpop.f32.mrf.mxu0
  %v838 = vadd.f32 %v795, %v837
  %v839 = vpop.f32.mrf.mxu0
  %v840 = vadd.f32 %v797, %v839
  %841 = vmatmul.bf16.gmra.mxu0 %v677
  %v842 = vpop.f32.mrf.mxu0
  %v843 = vadd.f32 %v800, %v842
  %v844 = vpop.f32.mrf.mxu0
  %v845 = vadd.f32 %v802, %v844
  %846 = vmatmul.bf16.gmra.mxu0 %v681
  %v847 = vpop.f32.mrf.mxu0
  %v848 = vadd.f32 %v805, %v847
  %v849 = vpop.f32.mrf.mxu0
  %v850 = vadd.f32 %v807, %v849
  %851 = vmatmul.bf16.gmra.mxu0 %v685
  %v852 = vpop.f32.mrf.mxu0
  %v853 = vadd.f32 %v810, %v852
  %v854 = vpop.f32.mrf.mxu0
  %v855 = vadd.f32 %v812, %v854
  %856 = vmatmul.bf16.gmra.mxu0 %v689
  %v857 = vpop.f32.mrf.mxu0
  %v858 = vadd.f32 %v815, %v857
  %v859 = vpop.f32.mrf.mxu0
  %v860 = vadd.f32 %v817, %v859
  %861 = vmatmul.bf16.gmra.mxu0 %v693
  %v862 = vpop.f32.mrf.mxu0
  %v863 = vadd.f32 %v820, %v862
  %v864 = vpop.f32.mrf.mxu0
  %865 = vdwg.mxu0
  %866 = vmatpush.bf16.msra.mxu0 0
  %867 = vmatpush.bf16.msra.mxu0 0
  %868 = vmatpush.bf16.msra.mxu0 0
  %869 = vmatpush.bf16.msra.mxu0 0
  %870 = vmatpush.bf16.msra.mxu0 0
  %871 = vmatpush.bf16.msra.mxu0 0
  %872 = vmatpush.bf16.msra.mxu0 0
  %873 = vmatpush.bf16.msra.mxu0 %v342
  %874 = vmatmul.bf16.gmra.mxu0 %v717
  %v875 = vpop.f32.mrf.mxu0
  %v876 = vadd.f32 %v833, %v875
  %v877 = vpop.f32.mrf.mxu0
  %v878 = vadd.f32 %v835, %v877
  %879 = vmatmul.bf16.gmra.mxu0 %v720
  %v880 = vpop.f32.mrf.mxu0
  %v881 = vadd.f32 %v838, %v880
  %v882 = vpop.f32.mrf.mxu0
  %v883 = vadd.f32 %v840, %v882
  %884 = vmatmul.bf16.gmra.mxu0 %v723
  %v885 = vpop.f32.mrf.mxu0
  %v886 = vadd.f32 %v843, %v885
  %v887 = vpop.f32.mrf.mxu0
  %v888 = vadd.f32 %v845, %v887
  %889 = vmatmul.bf16.gmra.mxu0 %v726
  %v890 = vpop.f32.mrf.mxu0
  %v891 = vadd.f32 %v848, %v890
  %v892 = vpop.f32.mrf.mxu0
  %v893 = vadd.f32 %v850, %v892
  %894 = vmatmul.bf16.gmra.mxu0 %v729
  %v895 = vpop.f32.mrf.mxu0
  %v896 = vadd.f32 %v853, %v895
  %v897 = vpop.f32.mrf.mxu0
  %v898 = vadd.f32 %v855, %v897
  %899 = vmatmul.bf16.gmra.mxu0 %v732
  %v900 = vpop.f32.mrf.mxu0
  %v901 = vadd.f32 %v858, %v900
  %v902 = vpop.f32.mrf.mxu0
  %v903 = vadd.f32 %v860, %v902
  %904 = vmatmul.bf16.gmra.mxu0 %v735
  %v905 = vpop.f32.mrf.mxu0
  %v906 = vadd.f32 %v863, %v905
  %v907 = vpop.f32.mrf.mxu0
  %908 = vdwg.mxu0
  %v909 = vmax.f32 %v529, %v876
  %v910 = vmax.f32 %v531, %v878
  %v911 = vmax.f32 %v534, %v881
  %v912 = vmax.f32 %v536, %v883
  %v913 = vmax.f32 %v539, %v886
  %v914 = vmax.f32 %v541, %v888
  %v915 = vmax.f32 %v544, %v891
  %v916 = vmax.f32 %v546, %v893
  %v917 = vmax.f32 %v549, %v896
  %v918 = vmax.f32 %v551, %v898
  %v919 = vmax.f32 %v554, %v901
  %v920 = vmax.f32 %v556, %v903
  %v921 = vmax.f32 %v559, %v906
  %s922 = scalar_lea.vmem %s0, 416
  %v923 = vld [vmem:[%s922] sm:$0xff]
  %v924 = vld [vmem:[%s922 + $0x8] sm:$0xff]
  %v925 = vld [vmem:[%s922 + $0x10] sm:$0xff]
  %v926 = vld [vmem:[%s922 + $0x18] sm:$0xff]
  %v927 = vld [vmem:[%s922 + $0x20] sm:$0xff]
  %v928 = vld [vmem:[%s922 + $0x28] sm:$0xff]
  %v929 = vld [vmem:[%s922 + $0x30] sm:$0xff]
  %v930 = vld [vmem:[%s922 + $0x38] sm:$0xff]
  %v931 = vld [vmem:[%s922 + $0x40] sm:$0xff]
  %v932 = vld [vmem:[%s922 + $0x48] sm:$0xff]
  %v933 = vld [vmem:[%s922 + $0x50] sm:$0xff]
  %v934 = vld [vmem:[%s922 + $0x58] sm:$0xff]
  %v935 = vld [vmem:[%s922 + $0x60] sm:$0xff]
  %v936 = vld [vmem:[%s922 + $0x68] sm:$0xff]
  %v937 = vld [vmem:[%s922 + $0x70] sm:$0xff]
  %v938 = vld [vmem:[%s922 + $0x78] sm:$0xff]
  %v939 = vld [vmem:[%s922 + $0x80] sm:$0xff]
  %v940 = vld [vmem:[%s922 + $0x88] sm:$0xff]
  %v941 = vld [vmem:[%s922 + $0x90] sm:$0xff]
  %v942 = vld [vmem:[%s922 + $0x98] sm:$0xff]
  %v943 = vld [vmem:[%s922 + $0xa0] sm:$0xff]
  %v944 = vld [vmem:[%s922 + $0xa8] sm:$0xff]
  %v945 = vld [vmem:[%s922 + $0xb0] sm:$0xff]
  %v946 = vld [vmem:[%s922 + $0xb8] sm:$0xff]
  %v947 = vld [vmem:[%s922 + $0xc0] sm:$0x11]
  %v948 = vld [vmem:[%s922 + $0xc8] sm:$0x11]
  %v975 = vunpack.c.l.b16 %v923
  %v976 = vunpack.c.h.b16 %v923
  %v977 = vunpack.c.l.b16 %v924
  %v978 = vunpack.c.h.b16 %v924
  %v979 = vunpack.c.l.b16 %v925
  %v980 = vunpack.c.h.b16 %v925
  %v981 = vunpack.c.l.b16 %v926
  %v982 = vunpack.c.h.b16 %v926
  %v983 = vunpack.c.l.b16 %v927
  %v984 = vunpack.c.h.b16 %v927
  %v985 = vunpack.c.l.b16 %v928
  %v986 = vunpack.c.h.b16 %v928
  %v987 = vunpack.c.l.b16 %v929
  %v988 = vunpack.c.h.b16 %v929
  %v989 = vunpack.c.l.b16 %v930
  %v990 = vunpack.c.h.b16 %v930
  %v991 = vunpack.c.l.b16 %v931
  %v992 = vunpack.c.h.b16 %v931
  %v993 = vunpack.c.l.b16 %v932
  %v994 = vunpack.c.h.b16 %v932
  %v995 = vunpack.c.l.b16 %v933
  %v996 = vunpack.c.h.b16 %v933
  %v997 = vunpack.c.l.b16 %v934
  %v998 = vunpack.c.h.b16 %v934
  %v999 = vunpack.c.l.b16 %v935
  %v1000 = vunpack.c.h.b16 %v935
  %v1001 = vunpack.c.l.b16 %v936
  %v1002 = vunpack.c.h.b16 %v936
  %v1003 = vunpack.c.l.b16 %v937
  %v1004 = vunpack.c.h.b16 %v937
  %v1005 = vunpack.c.l.b16 %v938
  %v1006 = vunpack.c.h.b16 %v938
  %v1007 = vunpack.c.l.b16 %v939
  %v1008 = vunpack.c.h.b16 %v939
  %v1009 = vunpack.c.l.b16 %v940
  %v1010 = vunpack.c.h.b16 %v940
  %v1011 = vunpack.c.l.b16 %v941
  %v1012 = vunpack.c.h.b16 %v941
  %v1013 = vunpack.c.l.b16 %v942
  %v1014 = vunpack.c.h.b16 %v942
  %v1015 = vunpack.c.l.b16 %v943
  %v1016 = vunpack.c.h.b16 %v943
  %v1017 = vunpack.c.l.b16 %v944
  %v1018 = vunpack.c.h.b16 %v944
  %v1019 = vunpack.c.l.b16 %v945
  %v1020 = vunpack.c.h.b16 %v945
  %v1021 = vunpack.c.l.b16 %v946
  %v1022 = vunpack.c.h.b16 %v946
  %v1023 = vunpack.c.l.b16 %v947
  %v1024 = vunpack.c.h.b16 %v947
  %v1025 = vunpack.c.l.b16 %v948
  %v1026 = vunpack.c.h.b16 %v948
  %v1027 = vpack.c.b16 %v979, %v975
  %v1028 = vpack.c.b16 %v980, %v976
  %v1029 = vpack.c.b16 %v981, %v977
  %v1030 = vpack.c.b16 %v982, %v978
  %v1031 = vpack.c.b16 %v987, %v983
  %v1032 = vpack.c.b16 %v988, %v984
  %v1033 = vpack.c.b16 %v989, %v985
  %v1034 = vpack.c.b16 %v990, %v986
  %v1035 = vpack.c.b16 %v995, %v991
  %v1036 = vpack.c.b16 %v996, %v992
  %v1037 = vpack.c.b16 %v997, %v993
  %v1038 = vpack.c.b16 %v998, %v994
  %v1039 = vpack.c.b16 %v1003, %v999
  %v1040 = vpack.c.b16 %v1004, %v1000
  %v1041 = vpack.c.b16 %v1005, %v1001
  %v1042 = vpack.c.b16 %v1006, %v1002
  %v1043 = vpack.c.b16 %v1011, %v1007
  %v1044 = vpack.c.b16 %v1012, %v1008
  %v1045 = vpack.c.b16 %v1013, %v1009
  %v1046 = vpack.c.b16 %v1014, %v1010
  %v1047 = vpack.c.b16 %v1019, %v1015
  %v1048 = vpack.c.b16 %v1020, %v1016
  %v1049 = vpack.c.b16 %v1021, %v1017
  %v1050 = vpack.c.b16 %v1022, %v1018
  %v1051 = vpack.c.b16 %v1023, %v1023
  %v1052 = vpack.c.b16 %v1024, %v1024
  %v1053 = vpack.c.b16 %v1025, %v1025
  %v1054 = vpack.c.b16 %v1026, %v1026
  %v1077 = vsel %vm368, %v1030, 0
  %v1080 = vsel %vm368, %v1034, 0
  %v1083 = vsel %vm368, %v1038, 0
  %v1086 = vsel %vm368, %v1042, 0
  %v1089 = vsel %vm368, %v1046, 0
  %v1092 = vsel %vm368, %v1050, 0
  %v1095 = vsel %vm368, %v1054, 0
  %1097 = vmatpush.bf16.msra.mxu0 %v325
  %1098 = vmatpush.bf16.msra.mxu0 %v324
  %1099 = vmatpush.bf16.msra.mxu0 %v323
  %1100 = vmatpush.bf16.msra.mxu0 %v322
  %1101 = vmatpush.bf16.msra.mxu0 %v321
  %1102 = vmatpush.bf16.msra.mxu0 %v320
  %1103 = vmatpush.bf16.msra.mxu0 %v319
  %1104 = vmatpush.bf16.msra.mxu0 %v318
  %1105 = vmatmul.bf16.gmra.mxu0 %v1027
  %v1106 = vpop.f32.mrf.mxu0
  %v1107 = vadd.f32 0.0, %v1106
  %v1108 = vpop.f32.mrf.mxu0
  %v1109 = vadd.f32 0.0, %v1108
  %1110 = vmatmul.bf16.gmra.mxu0 %v1031
  %v1111 = vpop.f32.mrf.mxu0
  %v1112 = vadd.f32 0.0, %v1111
  %v1113 = vpop.f32.mrf.mxu0
  %v1114 = vadd.f32 0.0, %v1113
  %1115 = vmatmul.bf16.gmra.mxu0 %v1035
  %v1116 = vpop.f32.mrf.mxu0
  %v1117 = vadd.f32 0.0, %v1116
  %v1118 = vpop.f32.mrf.mxu0
  %v1119 = vadd.f32 0.0, %v1118
  %1120 = vmatmul.bf16.gmra.mxu0 %v1039
  %v1121 = vpop.f32.mrf.mxu0
  %v1122 = vadd.f32 0.0, %v1121
  %v1123 = vpop.f32.mrf.mxu0
  %v1124 = vadd.f32 0.0, %v1123
  %1125 = vmatmul.bf16.gmra.mxu0 %v1043
  %v1126 = vpop.f32.mrf.mxu0
  %v1127 = vadd.f32 0.0, %v1126
  %v1128 = vpop.f32.mrf.mxu0
  %v1129 = vadd.f32 0.0, %v1128
  %1130 = vmatmul.bf16.gmra.mxu0 %v1047
  %v1131 = vpop.f32.mrf.mxu0
  %v1132 = vadd.f32 0.0, %v1131
  %v1133 = vpop.f32.mrf.mxu0
  %v1134 = vadd.f32 0.0, %v1133
  %1135 = vmatmul.bf16.gmra.mxu0 %v1051
  %v1136 = vpop.f32.mrf.mxu0
  %v1137 = vadd.f32 0.0, %v1136
  %v1138 = vpop.f32.mrf.mxu0
  %1139 = vdwg.mxu0
  %1140 = vmatpush.bf16.msra.mxu0 %v333
  %1141 = vmatpush.bf16.msra.mxu0 %v332
  %1142 = vmatpush.bf16.msra.mxu0 %v331
  %1143 = vmatpush.bf16.msra.mxu0 %v330
  %1144 = vmatpush.bf16.msra.mxu0 %v329
  %1145 = vmatpush.bf16.msra.mxu0 %v328
  %1146 = vmatpush.bf16.msra.mxu0 %v327
  %1147 = vmatpush.bf16.msra.mxu0 %v326
  %1148 = vmatmul.bf16.gmra.mxu0 %v1028
  %v1149 = vpop.f32.mrf.mxu0
  %v1150 = vadd.f32 %v1107, %v1149
  %v1151 = vpop.f32.mrf.mxu0
  %v1152 = vadd.f32 %v1109, %v1151
  %1153 = vmatmul.bf16.gmra.mxu0 %v1032
  %v1154 = vpop.f32.mrf.mxu0
  %v1155 = vadd.f32 %v1112, %v1154
  %v1156 = vpop.f32.mrf.mxu0
  %v1157 = vadd.f32 %v1114, %v1156
  %1158 = vmatmul.bf16.gmra.mxu0 %v1036
  %v1159 = vpop.f32.mrf.mxu0
  %v1160 = vadd.f32 %v1117, %v1159
  %v1161 = vpop.f32.mrf.mxu0
  %v1162 = vadd.f32 %v1119, %v1161
  %1163 = vmatmul.bf16.gmra.mxu0 %v1040
  %v1164 = vpop.f32.mrf.mxu0
  %v1165 = vadd.f32 %v1122, %v1164
  %v1166 = vpop.f32.mrf.mxu0
  %v1167 = vadd.f32 %v1124, %v1166
  %1168 = vmatmul.bf16.gmra.mxu0 %v1044
  %v1169 = vpop.f32.mrf.mxu0
  %v1170 = vadd.f32 %v1127, %v1169
  %v1171 = vpop.f32.mrf.mxu0
  %v1172 = vadd.f32 %v1129, %v1171
  %1173 = vmatmul.bf16.gmra.mxu0 %v1048
  %v1174 = vpop.f32.mrf.mxu0
  %v1175 = vadd.f32 %v1132, %v1174
  %v1176 = vpop.f32.mrf.mxu0
  %v1177 = vadd.f32 %v1134, %v1176
  %1178 = vmatmul.bf16.gmra.mxu0 %v1052
  %v1179 = vpop.f32.mrf.mxu0
  %v1180 = vadd.f32 %v1137, %v1179
  %v1181 = vpop.f32.mrf.mxu0
  %1182 = vdwg.mxu0
  %1183 = vmatpush.bf16.msra.mxu0 %v341
  %1184 = vmatpush.bf16.msra.mxu0 %v340
  %1185 = vmatpush.bf16.msra.mxu0 %v339
  %1186 = vmatpush.bf16.msra.mxu0 %v338
  %1187 = vmatpush.bf16.msra.mxu0 %v337
  %1188 = vmatpush.bf16.msra.mxu0 %v336
  %1189 = vmatpush.bf16.msra.mxu0 %v335
  %1190 = vmatpush.bf16.msra.mxu0 %v334
  %1191 = vmatmul.bf16.gmra.mxu0 %v1029
  %v1192 = vpop.f32.mrf.mxu0
  %v1193 = vadd.f32 %v1150, %v1192
  %v1194 = vpop.f32.mrf.mxu0
  %v1195 = vadd.f32 %v1152, %v1194
  %1196 = vmatmul.bf16.gmra.mxu0 %v1033
  %v1197 = vpop.f32.mrf.mxu0
  %v1198 = vadd.f32 %v1155, %v1197
  %v1199 = vpop.f32.mrf.mxu0
  %v1200 = vadd.f32 %v1157, %v1199
  %1201 = vmatmul.bf16.gmra.mxu0 %v1037
  %v1202 = vpop.f32.mrf.mxu0
  %v1203 = vadd.f32 %v1160, %v1202
  %v1204 = vpop.f32.mrf.mxu0
  %v1205 = vadd.f32 %v1162, %v1204
  %1206 = vmatmul.bf16.gmra.mxu0 %v1041
  %v1207 = vpop.f32.mrf.mxu0
  %v1208 = vadd.f32 %v1165, %v1207
  %v1209 = vpop.f32.mrf.mxu0
  %v1210 = vadd.f32 %v1167, %v1209
  %1211 = vmatmul.bf16.gmra.mxu0 %v1045
  %v1212 = vpop.f32.mrf.mxu0
  %v1213 = vadd.f32 %v1170, %v1212
  %v1214 = vpop.f32.mrf.mxu0
  %v1215 = vadd.f32 %v1172, %v1214
  %1216 = vmatmul.bf16.gmra.mxu0 %v1049
  %v1217 = vpop.f32.mrf.mxu0
  %v1218 = vadd.f32 %v1175, %v1217
  %v1219 = vpop.f32.mrf.mxu0
  %v1220 = vadd.f32 %v1177, %v1219
  %1221 = vmatmul.bf16.gmra.mxu0 %v1053
  %v1222 = vpop.f32.mrf.mxu0
  %v1223 = vadd.f32 %v1180, %v1222
  %v1224 = vpop.f32.mrf.mxu0
  %1225 = vdwg.mxu0
  %1226 = vmatpush.bf16.msra.mxu0 0
  %1227 = vmatpush.bf16.msra.mxu0 0
  %1228 = vmatpush.bf16.msra.mxu0 0
  %1229 = vmatpush.bf16.msra.mxu0 0
  %1230 = vmatpush.bf16.msra.mxu0 0
  %1231 = vmatpush.bf16.msra.mxu0 0
  %1232 = vmatpush.bf16.msra.mxu0 0
  %1233 = vmatpush.bf16.msra.mxu0 %v342
  %1234 = vmatmul.bf16.gmra.mxu0 %v1077
  %v1235 = vpop.f32.mrf.mxu0
  %v1236 = vadd.f32 %v1193, %v1235
  %v1237 = vpop.f32.mrf.mxu0
  %v1238 = vadd.f32 %v1195, %v1237
  %1239 = vmatmul.bf16.gmra.mxu0 %v1080
  %v1240 = vpop.f32.mrf.mxu0
  %v1241 = vadd.f32 %v1198, %v1240
  %v1242 = vpop.f32.mrf.mxu0
  %v1243 = vadd.f32 %v1200, %v1242
  %1244 = vmatmul.bf16.gmra.mxu0 %v1083
  %v1245 = vpop.f32.mrf.mxu0
  %v1246 = vadd.f32 %v1203, %v1245
  %v1247 = vpop.f32.mrf.mxu0
  %v1248 = vadd.f32 %v1205, %v1247
  %1249 = vmatmul.bf16.gmra.mxu0 %v1086
  %v1250 = vpop.f32.mrf.mxu0
  %v1251 = vadd.f32 %v1208, %v1250
  %v1252 = vpop.f32.mrf.mxu0
  %v1253 = vadd.f32 %v1210, %v1252
  %1254 = vmatmul.bf16.gmra.mxu0 %v1089
  %v1255 = vpop.f32.mrf.mxu0
  %v1256 = vadd.f32 %v1213, %v1255
  %v1257 = vpop.f32.mrf.mxu0
  %v1258 = vadd.f32 %v1215, %v1257
  %1259 = vmatmul.bf16.gmra.mxu0 %v1092
  %v1260 = vpop.f32.mrf.mxu0
  %v1261 = vadd.f32 %v1218, %v1260
  %v1262 = vpop.f32.mrf.mxu0
  %v1263 = vadd.f32 %v1220, %v1262
  %1264 = vmatmul.bf16.gmra.mxu0 %v1095
  %v1265 = vpop.f32.mrf.mxu0
  %v1266 = vadd.f32 %v1223, %v1265
  %v1267 = vpop.f32.mrf.mxu0
  %1268 = vdwg.mxu0
  %v1269 = vmax.f32 %v909, %v1236
  %v1270 = vmax.f32 %v910, %v1238
  %v1271 = vmax.f32 %v911, %v1241
  %v1272 = vmax.f32 %v912, %v1243
  %v1273 = vmax.f32 %v913, %v1246
  %v1274 = vmax.f32 %v914, %v1248
  %v1275 = vmax.f32 %v915, %v1251
  %v1276 = vmax.f32 %v916, %v1253
  %v1277 = vmax.f32 %v917, %v1256
  %v1278 = vmax.f32 %v918, %v1258
  %v1279 = vmax.f32 %v919, %v1261
  %v1280 = vmax.f32 %v920, %v1263
  %v1281 = vmax.f32 %v921, %v1266
  %s1282 = scalar_lea.vmem %s0, 624
  %v1283 = vld [vmem:[%s1282] sm:$0xff]
  %v1284 = vld [vmem:[%s1282 + $0x8] sm:$0xff]
  %v1285 = vld [vmem:[%s1282 + $0x10] sm:$0xff]
  %v1286 = vld [vmem:[%s1282 + $0x18] sm:$0xff]
  %v1287 = vld [vmem:[%s1282 + $0x20] sm:$0xff]
  %v1288 = vld [vmem:[%s1282 + $0x28] sm:$0xff]
  %v1289 = vld [vmem:[%s1282 + $0x30] sm:$0xff]
  %v1290 = vld [vmem:[%s1282 + $0x38] sm:$0xff]
  %v1291 = vld [vmem:[%s1282 + $0x40] sm:$0xff]
  %v1292 = vld [vmem:[%s1282 + $0x48] sm:$0xff]
  %v1293 = vld [vmem:[%s1282 + $0x50] sm:$0xff]
  %v1294 = vld [vmem:[%s1282 + $0x58] sm:$0xff]
  %v1295 = vld [vmem:[%s1282 + $0x60] sm:$0xff]
  %v1296 = vld [vmem:[%s1282 + $0x68] sm:$0xff]
  %v1297 = vld [vmem:[%s1282 + $0x70] sm:$0xff]
  %v1298 = vld [vmem:[%s1282 + $0x78] sm:$0xff]
  %v1299 = vld [vmem:[%s1282 + $0x80] sm:$0xff]
  %v1300 = vld [vmem:[%s1282 + $0x88] sm:$0xff]
  %v1301 = vld [vmem:[%s1282 + $0x90] sm:$0xff]
  %v1302 = vld [vmem:[%s1282 + $0x98] sm:$0xff]
  %v1303 = vld [vmem:[%s1282 + $0xa0] sm:$0xff]
  %v1304 = vld [vmem:[%s1282 + $0xa8] sm:$0xff]
  %v1305 = vld [vmem:[%s1282 + $0xb0] sm:$0xff]
  %v1306 = vld [vmem:[%s1282 + $0xb8] sm:$0xff]
  %v1307 = vld [vmem:[%s1282 + $0xc0] sm:$0x11]
  %v1308 = vld [vmem:[%s1282 + $0xc8] sm:$0x11]
  %v1335 = vunpack.c.l.b16 %v1283
  %v1336 = vunpack.c.h.b16 %v1283
  %v1337 = vunpack.c.l.b16 %v1284
  %v1338 = vunpack.c.h.b16 %v1284
  %v1339 = vunpack.c.l.b16 %v1285
  %v1340 = vunpack.c.h.b16 %v1285
  %v1341 = vunpack.c.l.b16 %v1286
  %v1342 = vunpack.c.h.b16 %v1286
  %v1343 = vunpack.c.l.b16 %v1287
  %v1344 = vunpack.c.h.b16 %v1287
  %v1345 = vunpack.c.l.b16 %v1288
  %v1346 = vunpack.c.h.b16 %v1288
  %v1347 = vunpack.c.l.b16 %v1289
  %v1348 = vunpack.c.h.b16 %v1289
  %v1349 = vunpack.c.l.b16 %v1290
  %v1350 = vunpack.c.h.b16 %v1290
  %v1351 = vunpack.c.l.b16 %v1291
  %v1352 = vunpack.c.h.b16 %v1291
  %v1353 = vunpack.c.l.b16 %v1292
  %v1354 = vunpack.c.h.b16 %v1292
  %v1355 = vunpack.c.l.b16 %v1293
  %v1356 = vunpack.c.h.b16 %v1293
  %v1357 = vunpack.c.l.b16 %v1294
  %v1358 = vunpack.c.h.b16 %v1294
  %v1359 = vunpack.c.l.b16 %v1295
  %v1360 = vunpack.c.h.b16 %v1295
  %v1361 = vunpack.c.l.b16 %v1296
  %v1362 = vunpack.c.h.b16 %v1296
  %v1363 = vunpack.c.l.b16 %v1297
  %v1364 = vunpack.c.h.b16 %v1297
  %v1365 = vunpack.c.l.b16 %v1298
  %v1366 = vunpack.c.h.b16 %v1298
  %v1367 = vunpack.c.l.b16 %v1299
  %v1368 = vunpack.c.h.b16 %v1299
  %v1369 = vunpack.c.l.b16 %v1300
  %v1370 = vunpack.c.h.b16 %v1300
  %v1371 = vunpack.c.l.b16 %v1301
  %v1372 = vunpack.c.h.b16 %v1301
  %v1373 = vunpack.c.l.b16 %v1302
  %v1374 = vunpack.c.h.b16 %v1302
  %v1375 = vunpack.c.l.b16 %v1303
  %v1376 = vunpack.c.h.b16 %v1303
  %v1377 = vunpack.c.l.b16 %v1304
  %v1378 = vunpack.c.h.b16 %v1304
  %v1379 = vunpack.c.l.b16 %v1305
  %v1380 = vunpack.c.h.b16 %v1305
  %v1381 = vunpack.c.l.b16 %v1306
  %v1382 = vunpack.c.h.b16 %v1306
  %v1383 = vunpack.c.l.b16 %v1307
  %v1384 = vunpack.c.h.b16 %v1307
  %v1385 = vunpack.c.l.b16 %v1308
  %v1386 = vunpack.c.h.b16 %v1308
  %v1387 = vpack.c.b16 %v1339, %v1335
  %v1388 = vpack.c.b16 %v1340, %v1336
  %v1389 = vpack.c.b16 %v1341, %v1337
  %v1390 = vpack.c.b16 %v1342, %v1338
  %v1391 = vpack.c.b16 %v1347, %v1343
  %v1392 = vpack.c.b16 %v1348, %v1344
  %v1393 = vpack.c.b16 %v1349, %v1345
  %v1394 = vpack.c.b16 %v1350, %v1346
  %v1395 = vpack.c.b16 %v1355, %v1351
  %v1396 = vpack.c.b16 %v1356, %v1352
  %v1397 = vpack.c.b16 %v1357, %v1353
  %v1398 = vpack.c.b16 %v1358, %v1354
  %v1399 = vpack.c.b16 %v1363, %v1359
  %v1400 = vpack.c.b16 %v1364, %v1360
  %v1401 = vpack.c.b16 %v1365, %v1361
  %v1402 = vpack.c.b16 %v1366, %v1362
  %v1403 = vpack.c.b16 %v1371, %v1367
  %v1404 = vpack.c.b16 %v1372, %v1368
  %v1405 = vpack.c.b16 %v1373, %v1369
  %v1406 = vpack.c.b16 %v1374, %v1370
  %v1407 = vpack.c.b16 %v1379, %v1375
  %v1408 = vpack.c.b16 %v1380, %v1376
  %v1409 = vpack.c.b16 %v1381, %v1377
  %v1410 = vpack.c.b16 %v1382, %v1378
  %v1411 = vpack.c.b16 %v1383, %v1383
  %v1412 = vpack.c.b16 %v1384, %v1384
  %v1413 = vpack.c.b16 %v1385, %v1385
  %v1414 = vpack.c.b16 %v1386, %v1386
  %v1437 = vsel %vm368, %v1390, 0
  %v1440 = vsel %vm368, %v1394, 0
  %v1443 = vsel %vm368, %v1398, 0
  %v1446 = vsel %vm368, %v1402, 0
  %v1449 = vsel %vm368, %v1406, 0
  %v1452 = vsel %vm368, %v1410, 0
  %v1455 = vsel %vm368, %v1414, 0
  %1457 = vmatpush.bf16.msra.mxu0 %v325
  %1458 = vmatpush.bf16.msra.mxu0 %v324
  %1459 = vmatpush.bf16.msra.mxu0 %v323
  %1460 = vmatpush.bf16.msra.mxu0 %v322
  %1461 = vmatpush.bf16.msra.mxu0 %v321
  %1462 = vmatpush.bf16.msra.mxu0 %v320
  %1463 = vmatpush.bf16.msra.mxu0 %v319
  %1464 = vmatpush.bf16.msra.mxu0 %v318
  %1465 = vmatmul.bf16.gmra.mxu0 %v1387
  %v1466 = vpop.f32.mrf.mxu0
  %v1467 = vadd.f32 0.0, %v1466
  %v1468 = vpop.f32.mrf.mxu0
  %v1469 = vadd.f32 0.0, %v1468
  %1470 = vmatmul.bf16.gmra.mxu0 %v1391
  %v1471 = vpop.f32.mrf.mxu0
  %v1472 = vadd.f32 0.0, %v1471
  %v1473 = vpop.f32.mrf.mxu0
  %v1474 = vadd.f32 0.0, %v1473
  %1475 = vmatmul.bf16.gmra.mxu0 %v1395
  %v1476 = vpop.f32.mrf.mxu0
  %v1477 = vadd.f32 0.0, %v1476
  %v1478 = vpop.f32.mrf.mxu0
  %v1479 = vadd.f32 0.0, %v1478
  %1480 = vmatmul.bf16.gmra.mxu0 %v1399
  %v1481 = vpop.f32.mrf.mxu0
  %v1482 = vadd.f32 0.0, %v1481
  %v1483 = vpop.f32.mrf.mxu0
  %v1484 = vadd.f32 0.0, %v1483
  %1485 = vmatmul.bf16.gmra.mxu0 %v1403
  %v1486 = vpop.f32.mrf.mxu0
  %v1487 = vadd.f32 0.0, %v1486
  %v1488 = vpop.f32.mrf.mxu0
  %v1489 = vadd.f32 0.0, %v1488
  %1490 = vmatmul.bf16.gmra.mxu0 %v1407
  %v1491 = vpop.f32.mrf.mxu0
  %v1492 = vadd.f32 0.0, %v1491
  %v1493 = vpop.f32.mrf.mxu0
  %v1494 = vadd.f32 0.0, %v1493
  %1495 = vmatmul.bf16.gmra.mxu0 %v1411
  %v1496 = vpop.f32.mrf.mxu0
  %v1497 = vadd.f32 0.0, %v1496
  %v1498 = vpop.f32.mrf.mxu0
  %1499 = vdwg.mxu0
  %1500 = vmatpush.bf16.msra.mxu0 %v333
  %1501 = vmatpush.bf16.msra.mxu0 %v332
  %1502 = vmatpush.bf16.msra.mxu0 %v331
  %1503 = vmatpush.bf16.msra.mxu0 %v330
  %1504 = vmatpush.bf16.msra.mxu0 %v329
  %1505 = vmatpush.bf16.msra.mxu0 %v328
  %1506 = vmatpush.bf16.msra.mxu0 %v327
  %1507 = vmatpush.bf16.msra.mxu0 %v326
  %1508 = vmatmul.bf16.gmra.mxu0 %v1388
  %v1509 = vpop.f32.mrf.mxu0
  %v1510 = vadd.f32 %v1467, %v1509
  %v1511 = vpop.f32.mrf.mxu0
  %v1512 = vadd.f32 %v1469, %v1511
  %1513 = vmatmul.bf16.gmra.mxu0 %v1392
  %v1514 = vpop.f32.mrf.mxu0
  %v1515 = vadd.f32 %v1472, %v1514
  %v1516 = vpop.f32.mrf.mxu0
  %v1517 = vadd.f32 %v1474, %v1516
  %1518 = vmatmul.bf16.gmra.mxu0 %v1396
  %v1519 = vpop.f32.mrf.mxu0
  %v1520 = vadd.f32 %v1477, %v1519
  %v1521 = vpop.f32.mrf.mxu0
  %v1522 = vadd.f32 %v1479, %v1521
  %1523 = vmatmul.bf16.gmra.mxu0 %v1400
  %v1524 = vpop.f32.mrf.mxu0
  %v1525 = vadd.f32 %v1482, %v1524
  %v1526 = vpop.f32.mrf.mxu0
  %v1527 = vadd.f32 %v1484, %v1526
  %1528 = vmatmul.bf16.gmra.mxu0 %v1404
  %v1529 = vpop.f32.mrf.mxu0
  %v1530 = vadd.f32 %v1487, %v1529
  %v1531 = vpop.f32.mrf.mxu0
  %v1532 = vadd.f32 %v1489, %v1531
  %1533 = vmatmul.bf16.gmra.mxu0 %v1408
  %v1534 = vpop.f32.mrf.mxu0
  %v1535 = vadd.f32 %v1492, %v1534
  %v1536 = vpop.f32.mrf.mxu0
  %v1537 = vadd.f32 %v1494, %v1536
  %1538 = vmatmul.bf16.gmra.mxu0 %v1412
  %v1539 = vpop.f32.mrf.mxu0
  %v1540 = vadd.f32 %v1497, %v1539
  %v1541 = vpop.f32.mrf.mxu0
  %1542 = vdwg.mxu0
  %1543 = vmatpush.bf16.msra.mxu0 %v341
  %1544 = vmatpush.bf16.msra.mxu0 %v340
  %1545 = vmatpush.bf16.msra.mxu0 %v339
  %1546 = vmatpush.bf16.msra.mxu0 %v338
  %1547 = vmatpush.bf16.msra.mxu0 %v337
  %1548 = vmatpush.bf16.msra.mxu0 %v336
  %1549 = vmatpush.bf16.msra.mxu0 %v335
  %1550 = vmatpush.bf16.msra.mxu0 %v334
  %1551 = vmatmul.bf16.gmra.mxu0 %v1389
  %v1552 = vpop.f32.mrf.mxu0
  %v1553 = vadd.f32 %v1510, %v1552
  %v1554 = vpop.f32.mrf.mxu0
  %v1555 = vadd.f32 %v1512, %v1554
  %1556 = vmatmul.bf16.gmra.mxu0 %v1393
  %v1557 = vpop.f32.mrf.mxu0
  %v1558 = vadd.f32 %v1515, %v1557
  %v1559 = vpop.f32.mrf.mxu0
  %v1560 = vadd.f32 %v1517, %v1559
  %1561 = vmatmul.bf16.gmra.mxu0 %v1397
  %v1562 = vpop.f32.mrf.mxu0
  %v1563 = vadd.f32 %v1520, %v1562
  %v1564 = vpop.f32.mrf.mxu0
  %v1565 = vadd.f32 %v1522, %v1564
  %1566 = vmatmul.bf16.gmra.mxu0 %v1401
  %v1567 = vpop.f32.mrf.mxu0
  %v1568 = vadd.f32 %v1525, %v1567
  %v1569 = vpop.f32.mrf.mxu0
  %v1570 = vadd.f32 %v1527, %v1569
  %1571 = vmatmul.bf16.gmra.mxu0 %v1405
  %v1572 = vpop.f32.mrf.mxu0
  %v1573 = vadd.f32 %v1530, %v1572
  %v1574 = vpop.f32.mrf.mxu0
  %v1575 = vadd.f32 %v1532, %v1574
  %1576 = vmatmul.bf16.gmra.mxu0 %v1409
  %v1577 = vpop.f32.mrf.mxu0
  %v1578 = vadd.f32 %v1535, %v1577
  %v1579 = vpop.f32.mrf.mxu0
  %v1580 = vadd.f32 %v1537, %v1579
  %1581 = vmatmul.bf16.gmra.mxu0 %v1413
  %v1582 = vpop.f32.mrf.mxu0
  %v1583 = vadd.f32 %v1540, %v1582
  %v1584 = vpop.f32.mrf.mxu0
  %1585 = vdwg.mxu0
  %1586 = vmatpush.bf16.msra.mxu0 0
  %1587 = vmatpush.bf16.msra.mxu0 0
  %1588 = vmatpush.bf16.msra.mxu0 0
  %1589 = vmatpush.bf16.msra.mxu0 0
  %1590 = vmatpush.bf16.msra.mxu0 0
  %1591 = vmatpush.bf16.msra.mxu0 0
  %1592 = vmatpush.bf16.msra.mxu0 0
  %1593 = vmatpush.bf16.msra.mxu0 %v342
  %1594 = vmatmul.bf16.gmra.mxu0 %v1437
  %v1595 = vpop.f32.mrf.mxu0
  %v1596 = vadd.f32 %v1553, %v1595
  %v1597 = vpop.f32.mrf.mxu0
  %v1598 = vadd.f32 %v1555, %v1597
  %1599 = vmatmul.bf16.gmra.mxu0 %v1440
  %v1600 = vpop.f32.mrf.mxu0
  %v1601 = vadd.f32 %v1558, %v1600
  %v1602 = vpop.f32.mrf.mxu0
  %v1603 = vadd.f32 %v1560, %v1602
  %1604 = vmatmul.bf16.gmra.mxu0 %v1443
  %v1605 = vpop.f32.mrf.mxu0
  %v1606 = vadd.f32 %v1563, %v1605
  %v1607 = vpop.f32.mrf.mxu0
  %v1608 = vadd.f32 %v1565, %v1607
  %1609 = vmatmul.bf16.gmra.mxu0 %v1446
  %v1610 = vpop.f32.mrf.mxu0
  %v1611 = vadd.f32 %v1568, %v1610
  %v1612 = vpop.f32.mrf.mxu0
  %v1613 = vadd.f32 %v1570, %v1612
  %1614 = vmatmul.bf16.gmra.mxu0 %v1449
  %v1615 = vpop.f32.mrf.mxu0
  %v1616 = vadd.f32 %v1573, %v1615
  %v1617 = vpop.f32.mrf.mxu0
  %v1618 = vadd.f32 %v1575, %v1617
  %1619 = vmatmul.bf16.gmra.mxu0 %v1452
  %v1620 = vpop.f32.mrf.mxu0
  %v1621 = vadd.f32 %v1578, %v1620
  %v1622 = vpop.f32.mrf.mxu0
  %v1623 = vadd.f32 %v1580, %v1622
  %1624 = vmatmul.bf16.gmra.mxu0 %v1455
  %v1625 = vpop.f32.mrf.mxu0
  %v1626 = vadd.f32 %v1583, %v1625
  %v1627 = vpop.f32.mrf.mxu0
  %1628 = vdwg.mxu0
  %v1629 = vmax.f32 %v1269, %v1596
  %v1630 = vmax.f32 %v1270, %v1598
  %v1631 = vmax.f32 %v1271, %v1601
  %v1632 = vmax.f32 %v1272, %v1603
  %v1633 = vmax.f32 %v1273, %v1606
  %v1634 = vmax.f32 %v1274, %v1608
  %v1635 = vmax.f32 %v1275, %v1611
  %v1636 = vmax.f32 %v1276, %v1613
  %v1637 = vmax.f32 %v1277, %v1616
  %v1638 = vmax.f32 %v1278, %v1618
  %v1639 = vmax.f32 %v1279, %v1621
  %v1640 = vmax.f32 %v1280, %v1623
  %v1641 = vmax.f32 %v1281, %v1626
  %v1642 = vld [vmem:[%s2] sm:$0x1]
  %v1644 = vperm.slane %v1642, 0
  %v1646 = vadd.f32 %v1629, %v1644
  %v1647 = vadd.f32 %v1630, %v1644
  %v1648 = vadd.f32 %v1631, %v1644
  %v1649 = vadd.f32 %v1632, %v1644
  %v1650 = vadd.f32 %v1633, %v1644
  %v1651 = vadd.f32 %v1634, %v1644
  %v1652 = vadd.f32 %v1635, %v1644
  %v1653 = vadd.f32 %v1636, %v1644
  %v1654 = vadd.f32 %v1637, %v1644
  %v1655 = vadd.f32 %v1638, %v1644
  %v1656 = vadd.f32 %v1639, %v1644
  %v1657 = vadd.f32 %v1640, %v1644
  %v1658 = vadd.f32 %v1641, %v1644
  %v1659 = vmax.f32 %v1646, 0.0
  %v1660 = vmax.f32 %v1647, 0.0
  %v1661 = vmax.f32 %v1648, 0.0
  %v1662 = vmax.f32 %v1649, 0.0
  %v1663 = vmax.f32 %v1650, 0.0
  %v1664 = vmax.f32 %v1651, 0.0
  %v1665 = vmax.f32 %v1652, 0.0
  %v1666 = vmax.f32 %v1653, 0.0
  %v1667 = vmax.f32 %v1654, 0.0
  %v1668 = vmax.f32 %v1655, 0.0
  %v1669 = vmax.f32 %v1656, 0.0
  %v1670 = vmax.f32 %v1657, 0.0
  %v1671 = vmax.f32 %v1658, 0.0
  %1672 = vst [vmem:[%s3] sm:$0xff] %v1659
  %1673 = vst [vmem:[%s3 + $0x8] sm:$0xff] %v1660
  %1674 = vst [vmem:[%s3 + $0x10] sm:$0xff] %v1661
  %1675 = vst [vmem:[%s3 + $0x18] sm:$0xff] %v1662
  %1676 = vst [vmem:[%s3 + $0x20] sm:$0xff] %v1663
  %1677 = vst [vmem:[%s3 + $0x28] sm:$0xff] %v1664
  %1678 = vst [vmem:[%s3 + $0x30] sm:$0xff] %v1665
  %1679 = vst [vmem:[%s3 + $0x38] sm:$0xff] %v1666
  %1680 = vst [vmem:[%s3 + $0x40] sm:$0xff] %v1667
  %1681 = vst [vmem:[%s3 + $0x48] sm:$0xff] %v1668
  %1682 = vst [vmem:[%s3 + $0x50] sm:$0xff] %v1669
  %1683 = vst [vmem:[%s3 + $0x58] sm:$0xff] %v1670
  %1684 = vst [vmem:[%s3 + $0x60] sm:$0x3] %v1671
  // Predicated region
  $region14: #{convnet_forward.4} parent=0 // pred_check
    _
  $region15: #{convnet_forward.4} parent=0 // pred_check_branch
    %1686 = sbr.rel (0) target = $region17
  $region16: #{convnet_forward.4} parent=0 // pred_region
    _
  $region17: #{convnet_forward.4} parent=0 // pred_fallthru
    _
  // Predicated region
  $region18: #{convnet_forward.4} parent=0 // pred_check
    _
  $region19: #{convnet_forward.4} parent=0 // pred_check_branch
    %1688 = sbr.rel (0) target = $region21
  $region20: #{convnet_forward.4} parent=0 // pred_region
    _
  $region21: #{convnet_forward.4} parent=0 // pred_fallthru
    _

// kernel: convnet_forward.5
$region0: #{convnet_forward.5}
  #allocation0 [shape = 'u32[]', space=smem, size = 0x4, offset = 0x4, fixed_abs, tag = 'smem constant byte address 0x4 - core index']
  #allocation1 [shape = 'u32[72,128]{1,0:T(1,128)}', space=vmem, size = 0x9000, scoped, tag = 'internal scratch']
  %s0 = inlined_call_operand.vmem [shape: bf16[2,6272], index: 0, kind: input, shape index: {}]
  %s1 = inlined_call_operand.vmem [shape: bf16[6272,128], index: 1, kind: input, shape index: {}]
  %s2 = inlined_call_operand.vmem [shape: f32[1,128], index: 2, kind: input, shape index: {}]
  %s3 = inlined_call_operand.hbm [shape: f32[2,128], index: 3, kind: output, shape index: {}]
  %s4 = sld [smem:[#allocation0]]
  $region22: #{convnet_forward.5} parent=0
    _
  %s6 = ssub.s32 1, %s4
  %s7 = scalar_select 0, %s6, %s4
  $region1: #{convnet_forward.5} parent=0
    #allocation2 [shape = 'u8[1024]{0}', space=vmem, size = 0x400, scoped, tag = 'output window, operand 0, single buffered']
    #allocation3 [shape = 's32[1]{0}', space=sflag, size = 0x4, scoped, tag = 'scoped memory for convnet_forward.5']
    %8 = vsyncpa [#allocation3], 0
    // Predicated region
    $region2: #{convnet_forward.5} parent=1 // pred_check
      _
    $region3: #{convnet_forward.5} parent=1 // pred_check_branch
      %10 = sbr.rel (0) target = $region5
    $region4: #{convnet_forward.5} parent=1 // pred_region
      _
    $region5: #{convnet_forward.5} parent=1 // pred_fallthru
      _
    // Predicated region
    $region6: #{convnet_forward.5} parent=1 // pred_check
      _
    $region7: #{convnet_forward.5} parent=1 // pred_check_branch
      %12 = sbr.rel (0) target = $region9
    $region8: #{convnet_forward.5} parent=1 // pred_region
      _
    $region9: #{convnet_forward.5} parent=1 // pred_fallthru
      _
    // Predicated region
    $region10: #{convnet_forward.5} parent=1 // pred_check
      _
    $region11: #{convnet_forward.5} parent=1 // pred_check_branch
      %14 = sbr.rel (0) target = $region13
    $region12: #{convnet_forward.5} parent=1 // pred_region
      _
    $region13: #{convnet_forward.5} parent=1 // pred_fallthru
      _
    %v15 = vld [vmem:[%s0] sm:$0xff]
    %v16 = vld [vmem:[%s0 + $0x8] sm:$0xff]
    %v17 = vld [vmem:[%s0 + $0x10] sm:$0xff]
    %v18 = vld [vmem:[%s0 + $0x18] sm:$0xff]
    %v19 = vld [vmem:[%s0 + $0x20] sm:$0xff]
    %v20 = vld [vmem:[%s0 + $0x28] sm:$0xff]
    %v21 = vld [vmem:[%s0 + $0x30] sm:$0x1]
    %v22 = vld [vmem:[%s1] sm:$0xf]
    %v23 = vld [vmem:[%s1 + $0x4] sm:$0xf]
    %v24 = vld [vmem:[%s1 + $0x8] sm:$0xf]
    %v25 = vld [vmem:[%s1 + $0xc] sm:$0xf]
    %v26 = vld [vmem:[%s1 + $0x10] sm:$0xf]
    %v27 = vld [vmem:[%s1 + $0x14] sm:$0xf]
    %v28 = vld [vmem:[%s1 + $0x18] sm:$0xf]
    %v29 = vld [vmem:[%s1 + $0x1c] sm:$0xf]
    %v30 = vld [vmem:[%s1 + $0x20] sm:$0xf]
    %v31 = vld [vmem:[%s1 + $0x24] sm:$0xf]
    %v32 = vld [vmem:[%s1 + $0x28] sm:$0xf]
    %v33 = vld [vmem:[%s1 + $0x2c] sm:$0xf]
    %v34 = vld [vmem:[%s1 + $0x30] sm:$0xf]
    %v35 = vld [vmem:[%s1 + $0x34] sm:$0xf]
    %v36 = vld [vmem:[%s1 + $0x38] sm:$0xf]
    %v37 = vld [vmem:[%s1 + $0x3c] sm:$0xf]
    %v38 = vld [vmem:[%s1 + $0x40] sm:$0xf]
    %v39 = vld [vmem:[%s1 + $0x44] sm:$0xf]
    %v40 = vld [vmem:[%s1 + $0x48] sm:$0xf]
    %v41 = vld [vmem:[%s1 + $0x4c] sm:$0xf]
    %v42 = vld [vmem:[%s1 + $0x50] sm:$0xf]
    %v43 = vld [vmem:[%s1 + $0x54] sm:$0xf]
    %v44 = vld [vmem:[%s1 + $0x58] sm:$0xf]
    %v45 = vld [vmem:[%s1 + $0x5c] sm:$0xf]
    %v46 = vld [vmem:[%s1 + $0x60] sm:$0xf]
    %v47 = vld [vmem:[%s1 + $0x64] sm:$0xf]
    %v48 = vld [vmem:[%s1 + $0x68] sm:$0xf]
    %v49 = vld [vmem:[%s1 + $0x6c] sm:$0xf]
    %v50 = vld [vmem:[%s1 + $0x70] sm:$0xf]
    %v51 = vld [vmem:[%s1 + $0x74] sm:$0xf]
    %v52 = vld [vmem:[%s1 + $0x78] sm:$0xf]
    %v53 = vld [vmem:[%s1 + $0x7c] sm:$0xf]
    %v54 = vld [vmem:[%s1 + $0x80] sm:$0xf]
    %v55 = vld [vmem:[%s1 + $0x84] sm:$0xf]
    %v56 = vld [vmem:[%s1 + $0x88] sm:$0xf]
    %v57 = vld [vmem:[%s1 + $0x8c] sm:$0xf]
    %v58 = vld [vmem:[%s1 + $0x90] sm:$0xf]
    %v59 = vld [vmem:[%s1 + $0x94] sm:$0xf]
    %v60 = vld [vmem:[%s1 + $0x98] sm:$0xf]
    %v61 = vld [vmem:[%s1 + $0x9c] sm:$0xf]
    %v62 = vld [vmem:[%s1 + $0xa0] sm:$0xf]
    %v63 = vld [vmem:[%s1 + $0xa4] sm:$0xf]
    %v64 = vld [vmem:[%s1 + $0xa8] sm:$0xf]
    %v65 = vld [vmem:[%s1 + $0xac] sm:$0xf]
    %v66 = vld [vmem:[%s1 + $0xb0] sm:$0xf]
    %v67 = vld [vmem:[%s1 + $0xb4] sm:$0xf]
    %v68 = vld [vmem:[%s1 + $0xb8] sm:$0xf]
    %v69 = vld [vmem:[%s1 + $0xbc] sm:$0xf]
    %v70 = vld [vmem:[%s1 + $0xc0] sm:$0xf]
    %v71 = vld [vmem:[%s1 + $0xc4] sm:$0xf]
    %v72 = vld [vmem:[%s1 + $0xc8] sm:$0xf]
    %v73 = vld [vmem:[%s1 + $0xcc] sm:$0xf]
    %v74 = vld [vmem:[%s1 + $0xd0] sm:$0xf]
    %v75 = vld [vmem:[%s1 + $0xd4] sm:$0xf]
    %v76 = vld [vmem:[%s1 + $0xd8] sm:$0xf]
    %v77 = vld [vmem:[%s1 + $0xdc] sm:$0xf]
    %v78 = vld [vmem:[%s1 + $0xe0] sm:$0xf]
    %v79 = vld [vmem:[%s1 + $0xe4] sm:$0xf]
    %v80 = vld [vmem:[%s1 + $0xe8] sm:$0xf]
    %v81 = vld [vmem:[%s1 + $0xec] sm:$0xf]
    %v82 = vld [vmem:[%s1 + $0xf0] sm:$0xf]
    %v83 = vld [vmem:[%s1 + $0xf4] sm:$0xf]
    %v84 = vld [vmem:[%s1 + $0xf8] sm:$0xf]
    %v85 = vld [vmem:[%s1 + $0xfc] sm:$0xf]
    %v86 = vld [vmem:[%s1 + $0x100] sm:$0xf]
    %v87 = vld [vmem:[%s1 + $0x104] sm:$0xf]
    %v88 = vld [vmem:[%s1 + $0x108] sm:$0xf]
    %v89 = vld [vmem:[%s1 + $0x10c] sm:$0xf]
    %v90 = vld [vmem:[%s1 + $0x110] sm:$0xf]
    %v91 = vld [vmem:[%s1 + $0x114] sm:$0xf]
    %v92 = vld [vmem:[%s1 + $0x118] sm:$0xf]
    %v93 = vld [vmem:[%s1 + $0x11c] sm:$0xf]
    %v94 = vld [vmem:[%s1 + $0x120] sm:$0xf]
    %v95 = vld [vmem:[%s1 + $0x124] sm:$0xf]
    %v96 = vld [vmem:[%s1 + $0x128] sm:$0xf]
    %v97 = vld [vmem:[%s1 + $0x12c] sm:$0xf]
    %v98 = vld [vmem:[%s1 + $0x130] sm:$0xf]
    %v99 = vld [vmem:[%s1 + $0x134] sm:$0xf]
    %v100 = vld [vmem:[%s1 + $0x138] sm:$0xf]
    %v101 = vld [vmem:[%s1 + $0x13c] sm:$0xf]
    %v102 = vld [vmem:[%s1 + $0x140] sm:$0xf]
    %v103 = vld [vmem:[%s1 + $0x144] sm:$0xf]
    %v104 = vld [vmem:[%s1 + $0x148] sm:$0xf]
    %v105 = vld [vmem:[%s1 + $0x14c] sm:$0xf]
    %v106 = vld [vmem:[%s1 + $0x150] sm:$0xf]
    %v107 = vld [vmem:[%s1 + $0x154] sm:$0xf]
    %v108 = vld [vmem:[%s1 + $0x158] sm:$0xf]
    %v109 = vld [vmem:[%s1 + $0x15c] sm:$0xf]
    %v110 = vld [vmem:[%s1 + $0x160] sm:$0xf]
    %v111 = vld [vmem:[%s1 + $0x164] sm:$0xf]
    %v112 = vld [vmem:[%s1 + $0x168] sm:$0xf]
    %v113 = vld [vmem:[%s1 + $0x16c] sm:$0xf]
    %v114 = vld [vmem:[%s1 + $0x170] sm:$0xf]
    %v115 = vld [vmem:[%s1 + $0x174] sm:$0xf]
    %v116 = vld [vmem:[%s1 + $0x178] sm:$0xf]
    %v117 = vld [vmem:[%s1 + $0x17c] sm:$0xf]
    %v118 = vld [vmem:[%s1 + $0x180] sm:$0xf]
    %v119 = vld [vmem:[%s1 + $0x184] sm:$0xf]
    %v120 = vld [vmem:[%s1 + $0x188] sm:$0xf]
    %v121 = vld [vmem:[%s1 + $0x18c] sm:$0xf]
    %v122 = vld [vmem:[%s1 + $0x190] sm:$0xf]
    %v123 = vld [vmem:[%s1 + $0x194] sm:$0xf]
    %v124 = vld [vmem:[%s1 + $0x198] sm:$0xf]
    %v125 = vld [vmem:[%s1 + $0x19c] sm:$0xf]
    %v126 = vld [vmem:[%s1 + $0x1a0] sm:$0xf]
    %v127 = vld [vmem:[%s1 + $0x1a4] sm:$0xf]
    %v128 = vld [vmem:[%s1 + $0x1a8] sm:$0xf]
    %v129 = vld [vmem:[%s1 + $0x1ac] sm:$0xf]
    %v130 = vld [vmem:[%s1 + $0x1b0] sm:$0xf]
    %v131 = vld [vmem:[%s1 + $0x1b4] sm:$0xf]
    %v132 = vld [vmem:[%s1 + $0x1b8] sm:$0xf]
    %v133 = vld [vmem:[%s1 + $0x1bc] sm:$0xf]
    %v134 = vld [vmem:[%s1 + $0x1c0] sm:$0xf]
    %v135 = vld [vmem:[%s1 + $0x1c4] sm:$0xf]
    %v136 = vld [vmem:[%s1 + $0x1c8] sm:$0xf]
    %v137 = vld [vmem:[%s1 + $0x1cc] sm:$0xf]
    %v138 = vld [vmem:[%s1 + $0x1d0] sm:$0xf]
    %v139 = vld [vmem:[%s1 + $0x1d4] sm:$0xf]
    %v140 = vld [vmem:[%s1 + $0x1d8] sm:$0xf]
    %v141 = vld [vmem:[%s1 + $0x1dc] sm:$0xf]
    %v142 = vld [vmem:[%s1 + $0x1e0] sm:$0xf]
    %v143 = vld [vmem:[%s1 + $0x1e4] sm:$0xf]
    %v144 = vld [vmem:[%s1 + $0x1e8] sm:$0xf]
    %v145 = vld [vmem:[%s1 + $0x1ec] sm:$0xf]
    %v146 = vld [vmem:[%s1 + $0x1f0] sm:$0xf]
    %v147 = vld [vmem:[%s1 + $0x1f4] sm:$0xf]
    %v148 = vld [vmem:[%s1 + $0x1f8] sm:$0xf]
    %v149 = vld [vmem:[%s1 + $0x1fc] sm:$0xf]
    %v150 = vld [vmem:[%s1 + $0x200] sm:$0xf]
    %v151 = vld [vmem:[%s1 + $0x204] sm:$0xf]
    %v152 = vld [vmem:[%s1 + $0x208] sm:$0xf]
    %v153 = vld [vmem:[%s1 + $0x20c] sm:$0xf]
    %v154 = vld [vmem:[%s1 + $0x210] sm:$0xf]
    %v155 = vld [vmem:[%s1 + $0x214] sm:$0xf]
    %v156 = vld [vmem:[%s1 + $0x218] sm:$0xf]
    %v157 = vld [vmem:[%s1 + $0x21c] sm:$0xf]
    %v158 = vld [vmem:[%s1 + $0x220] sm:$0xf]
    %v159 = vld [vmem:[%s1 + $0x224] sm:$0xf]
    %v160 = vld [vmem:[%s1 + $0x228] sm:$0xf]
    %v161 = vld [vmem:[%s1 + $0x22c] sm:$0xf]
    %v162 = vld [vmem:[%s1 + $0x230] sm:$0xf]
    %v163 = vld [vmem:[%s1 + $0x234] sm:$0xf]
    %v164 = vld [vmem:[%s1 + $0x238] sm:$0xf]
    %v165 = vld [vmem:[%s1 + $0x23c] sm:$0xf]
    %v166 = vld [vmem:[%s1 + $0x240] sm:$0xf]
    %v167 = vld [vmem:[%s1 + $0x244] sm:$0xf]
    %v168 = vld [vmem:[%s1 + $0x248] sm:$0xf]
    %v169 = vld [vmem:[%s1 + $0x24c] sm:$0xf]
    %v170 = vld [vmem:[%s1 + $0x250] sm:$0xf]
    %v171 = vld [vmem:[%s1 + $0x254] sm:$0xf]
    %v172 = vld [vmem:[%s1 + $0x258] sm:$0xf]
    %v173 = vld [vmem:[%s1 + $0x25c] sm:$0xf]
    %v174 = vld [vmem:[%s1 + $0x260] sm:$0xf]
    %v175 = vld [vmem:[%s1 + $0x264] sm:$0xf]
    %v176 = vld [vmem:[%s1 + $0x268] sm:$0xf]
    %v177 = vld [vmem:[%s1 + $0x26c] sm:$0xf]
    %v178 = vld [vmem:[%s1 + $0x270] sm:$0xf]
    %v179 = vld [vmem:[%s1 + $0x274] sm:$0xf]
    %v180 = vld [vmem:[%s1 + $0x278] sm:$0xf]
    %v181 = vld [vmem:[%s1 + $0x27c] sm:$0xf]
    %v182 = vld [vmem:[%s1 + $0x280] sm:$0xf]
    %v183 = vld [vmem:[%s1 + $0x284] sm:$0xf]
    %v184 = vld [vmem:[%s1 + $0x288] sm:$0xf]
    %v185 = vld [vmem:[%s1 + $0x28c] sm:$0xf]
    %v186 = vld [vmem:[%s1 + $0x290] sm:$0xf]
    %v187 = vld [vmem:[%s1 + $0x294] sm:$0xf]
    %v188 = vld [vmem:[%s1 + $0x298] sm:$0xf]
    %v189 = vld [vmem:[%s1 + $0x29c] sm:$0xf]
    %v190 = vld [vmem:[%s1 + $0x2a0] sm:$0xf]
    %v191 = vld [vmem:[%s1 + $0x2a4] sm:$0xf]
    %v192 = vld [vmem:[%s1 + $0x2a8] sm:$0xf]
    %v193 = vld [vmem:[%s1 + $0x2ac] sm:$0xf]
    %v194 = vld [vmem:[%s1 + $0x2b0] sm:$0xf]
    %v195 = vld [vmem:[%s1 + $0x2b4] sm:$0xf]
    %v196 = vld [vmem:[%s1 + $0x2b8] sm:$0xf]
    %v197 = vld [vmem:[%s1 + $0x2bc] sm:$0xf]
    %v198 = vld [vmem:[%s1 + $0x2c0] sm:$0xf]
    %v199 = vld [vmem:[%s1 + $0x2c4] sm:$0xf]
    %v200 = vld [vmem:[%s1 + $0x2c8] sm:$0xf]
    %v201 = vld [vmem:[%s1 + $0x2cc] sm:$0xf]
    %v202 = vld [vmem:[%s1 + $0x2d0] sm:$0xf]
    %v203 = vld [vmem:[%s1 + $0x2d4] sm:$0xf]
    %v204 = vld [vmem:[%s1 + $0x2d8] sm:$0xf]
    %v205 = vld [vmem:[%s1 + $0x2dc] sm:$0xf]
    %v206 = vld [vmem:[%s1 + $0x2e0] sm:$0xf]
    %v207 = vld [vmem:[%s1 + $0x2e4] sm:$0xf]
    %v208 = vld [vmem:[%s1 + $0x2e8] sm:$0xf]
    %v209 = vld [vmem:[%s1 + $0x2ec] sm:$0xf]
    %v210 = vld [vmem:[%s1 + $0x2f0] sm:$0xf]
    %v211 = vld [vmem:[%s1 + $0x2f4] sm:$0xf]
    %v212 = vld [vmem:[%s1 + $0x2f8] sm:$0xf]
    %v213 = vld [vmem:[%s1 + $0x2fc] sm:$0xf]
    %v214 = vld [vmem:[%s1 + $0x300] sm:$0xf]
    %v215 = vld [vmem:[%s1 + $0x304] sm:$0xf]
    %v216 = vld [vmem:[%s1 + $0x308] sm:$0xf]
    %v217 = vld [vmem:[%s1 + $0x30c] sm:$0xf]
    %v218 = vld [vmem:[%s1 + $0x310] sm:$0xf]
    %v219 = vld [vmem:[%s1 + $0x314] sm:$0xf]
    %v220 = vld [vmem:[%s1 + $0x318] sm:$0xf]
    %v221 = vld [vmem:[%s1 + $0x31c] sm:$0xf]
    %v222 = vld [vmem:[%s1 + $0x320] sm:$0xf]
    %v223 = vld [vmem:[%s1 + $0x324] sm:$0xf]
    %v224 = vld [vmem:[%s1 + $0x328] sm:$0xf]
    %v225 = vld [vmem:[%s1 + $0x32c] sm:$0xf]
    %v226 = vld [vmem:[%s1 + $0x330] sm:$0xf]
    %v227 = vld [vmem:[%s1 + $0x334] sm:$0xf]
    %v228 = vld [vmem:[%s1 + $0x338] sm:$0xf]
    %v229 = vld [vmem:[%s1 + $0x33c] sm:$0xf]
    %v230 = vld [vmem:[%s1 + $0x340] sm:$0xf]
    %v231 = vld [vmem:[%s1 + $0x344] sm:$0xf]
    %v232 = vld [vmem:[%s1 + $0x348] sm:$0xf]
    %v233 = vld [vmem:[%s1 + $0x34c] sm:$0xf]
    %v234 = vld [vmem:[%s1 + $0x350] sm:$0xf]
    %v235 = vld [vmem:[%s1 + $0x354] sm:$0xf]
    %v236 = vld [vmem:[%s1 + $0x358] sm:$0xf]
    %v237 = vld [vmem:[%s1 + $0x35c] sm:$0xf]
    %v238 = vld [vmem:[%s1 + $0x360] sm:$0xf]
    %v239 = vld [vmem:[%s1 + $0x364] sm:$0xf]
    %v240 = vld [vmem:[%s1 + $0x368] sm:$0xf]
    %v241 = vld [vmem:[%s1 + $0x36c] sm:$0xf]
    %v242 = vld [vmem:[%s1 + $0x370] sm:$0xf]
    %v243 = vld [vmem:[%s1 + $0x374] sm:$0xf]
    %v244 = vld [vmem:[%s1 + $0x378] sm:$0xf]
    %v245 = vld [vmem:[%s1 + $0x37c] sm:$0xf]
    %v246 = vld [vmem:[%s1 + $0x380] sm:$0xf]
    %v247 = vld [vmem:[%s1 + $0x384] sm:$0xf]
    %v248 = vld [vmem:[%s1 + $0x388] sm:$0xf]
    %v249 = vld [vmem:[%s1 + $0x38c] sm:$0xf]
    %v250 = vld [vmem:[%s1 + $0x390] sm:$0xf]
    %v251 = vld [vmem:[%s1 + $0x394] sm:$0xf]
    %v252 = vld [vmem:[%s1 + $0x398] sm:$0xf]
    %v253 = vld [vmem:[%s1 + $0x39c] sm:$0xf]
    %v254 = vld [vmem:[%s1 + $0x3a0] sm:$0xf]
    %v255 = vld [vmem:[%s1 + $0x3a4] sm:$0xf]
    %v256 = vld [vmem:[%s1 + $0x3a8] sm:$0xf]
    %v257 = vld [vmem:[%s1 + $0x3ac] sm:$0xf]
    %v258 = vld [vmem:[%s1 + $0x3b0] sm:$0xf]
    %v259 = vld [vmem:[%s1 + $0x3b4] sm:$0xf]
    %v260 = vld [vmem:[%s1 + $0x3b8] sm:$0xf]
    %v261 = vld [vmem:[%s1 + $0x3bc] sm:$0xf]
    %v262 = vld [vmem:[%s1 + $0x3c0] sm:$0xf]
    %v263 = vld [vmem:[%s1 + $0x3c4] sm:$0xf]
    %v264 = vld [vmem:[%s1 + $0x3c8] sm:$0xf]
    %v265 = vld [vmem:[%s1 + $0x3cc] sm:$0xf]
    %v266 = vld [vmem:[%s1 + $0x3d0] sm:$0xf]
    %v267 = vld [vmem:[%s1 + $0x3d4] sm:$0xf]
    %v268 = vld [vmem:[%s1 + $0x3d8] sm:$0xf]
    %v269 = vld [vmem:[%s1 + $0x3dc] sm:$0xf]
    %v270 = vld [vmem:[%s1 + $0x3e0] sm:$0xf]
    %v271 = vld [vmem:[%s1 + $0x3e4] sm:$0xf]
    %v272 = vld [vmem:[%s1 + $0x3e8] sm:$0xf]
    %v273 = vld [vmem:[%s1 + $0x3ec] sm:$0xf]
    %v274 = vld [vmem:[%s1 + $0x3f0] sm:$0xf]
    %v275 = vld [vmem:[%s1 + $0x3f4] sm:$0xf]
    %v276 = vld [vmem:[%s1 + $0x3f8] sm:$0xf]
    %v277 = vld [vmem:[%s1 + $0x3fc] sm:$0xf]
    %v278 = vld [vmem:[%s1 + $0x400] sm:$0xf]
    %v279 = vld [vmem:[%s1 + $0x404] sm:$0xf]
    %v280 = vld [vmem:[%s1 + $0x408] sm:$0xf]
    %v281 = vld [vmem:[%s1 + $0x40c] sm:$0xf]
    %v282 = vld [vmem:[%s1 + $0x410] sm:$0xf]
    %v283 = vld [vmem:[%s1 + $0x414] sm:$0xf]
    %v284 = vld [vmem:[%s1 + $0x418] sm:$0xf]
    %v285 = vld [vmem:[%s1 + $0x41c] sm:$0xf]
    %v286 = vld [vmem:[%s1 + $0x420] sm:$0xf]
    %v287 = vld [vmem:[%s1 + $0x424] sm:$0xf]
    %v288 = vld [vmem:[%s1 + $0x428] sm:$0xf]
    %v289 = vld [vmem:[%s1 + $0x42c] sm:$0xf]
    %v290 = vld [vmem:[%s1 + $0x430] sm:$0xf]
    %v291 = vld [vmem:[%s1 + $0x434] sm:$0xf]
    %v292 = vld [vmem:[%s1 + $0x438] sm:$0xf]
    %v293 = vld [vmem:[%s1 + $0x43c] sm:$0xf]
    %v294 = vld [vmem:[%s1 + $0x440] sm:$0xf]
    %v295 = vld [vmem:[%s1 + $0x444] sm:$0xf]
    %v296 = vld [vmem:[%s1 + $0x448] sm:$0xf]
    %v297 = vld [vmem:[%s1 + $0x44c] sm:$0xf]
    %v298 = vld [vmem:[%s1 + $0x450] sm:$0xf]
    %v299 = vld [vmem:[%s1 + $0x454] sm:$0xf]
    %v300 = vld [vmem:[%s1 + $0x458] sm:$0xf]
    %v301 = vld [vmem:[%s1 + $0x45c] sm:$0xf]
    %v302 = vld [vmem:[%s1 + $0x460] sm:$0xf]
    %v303 = vld [vmem:[%s1 + $0x464] sm:$0xf]
    %v304 = vld [vmem:[%s1 + $0x468] sm:$0xf]
    %v305 = vld [vmem:[%s1 + $0x46c] sm:$0xf]
    %v306 = vld [vmem:[%s1 + $0x470] sm:$0xf]
    %v307 = vld [vmem:[%s1 + $0x474] sm:$0xf]
    %v308 = vld [vmem:[%s1 + $0x478] sm:$0xf]
    %v309 = vld [vmem:[%s1 + $0x47c] sm:$0xf]
    %v310 = vld [vmem:[%s1 + $0x480] sm:$0xf]
    %v311 = vld [vmem:[%s1 + $0x484] sm:$0xf]
    %v312 = vld [vmem:[%s1 + $0x488] sm:$0xf]
    %v313 = vld [vmem:[%s1 + $0x48c] sm:$0xf]
    %v314 = vld [vmem:[%s1 + $0x490] sm:$0xf]
    %v315 = vld [vmem:[%s1 + $0x494] sm:$0xf]
    %v316 = vld [vmem:[%s1 + $0x498] sm:$0xf]
    %v317 = vld [vmem:[%s1 + $0x49c] sm:$0xf]
    %v318 = vld [vmem:[%s1 + $0x4a0] sm:$0xf]
    %v319 = vld [vmem:[%s1 + $0x4a4] sm:$0xf]
    %v320 = vld [vmem:[%s1 + $0x4a8] sm:$0xf]
    %v321 = vld [vmem:[%s1 + $0x4ac] sm:$0xf]
    %v322 = vld [vmem:[%s1 + $0x4b0] sm:$0xf]
    %v323 = vld [vmem:[%s1 + $0x4b4] sm:$0xf]
    %v324 = vld [vmem:[%s1 + $0x4b8] sm:$0xf]
    %v325 = vld [vmem:[%s1 + $0x4bc] sm:$0xf]
    %v326 = vld [vmem:[%s1 + $0x4c0] sm:$0xf]
    %v327 = vld [vmem:[%s1 + $0x4c4] sm:$0xf]
    %v328 = vld [vmem:[%s1 + $0x4c8] sm:$0xf]
    %v329 = vld [vmem:[%s1 + $0x4cc] sm:$0xf]
    %v330 = vld [vmem:[%s1 + $0x4d0] sm:$0xf]
    %v331 = vld [vmem:[%s1 + $0x4d4] sm:$0xf]
    %v332 = vld [vmem:[%s1 + $0x4d8] sm:$0xf]
    %v333 = vld [vmem:[%s1 + $0x4dc] sm:$0xf]
    %v334 = vld [vmem:[%s1 + $0x4e0] sm:$0xf]
    %v335 = vld [vmem:[%s1 + $0x4e4] sm:$0xf]
    %v336 = vld [vmem:[%s1 + $0x4e8] sm:$0xf]
    %v337 = vld [vmem:[%s1 + $0x4ec] sm:$0xf]
    %v338 = vld [vmem:[%s1 + $0x4f0] sm:$0xf]
    %v339 = vld [vmem:[%s1 + $0x4f4] sm:$0xf]
    %v340 = vld [vmem:[%s1 + $0x4f8] sm:$0xf]
    %v341 = vld [vmem:[%s1 + $0x4fc] sm:$0xf]
    %v342 = vld [vmem:[%s1 + $0x500] sm:$0xf]
    %v343 = vld [vmem:[%s1 + $0x504] sm:$0xf]
    %v344 = vld [vmem:[%s1 + $0x508] sm:$0xf]
    %v345 = vld [vmem:[%s1 + $0x50c] sm:$0xf]
    %v346 = vld [vmem:[%s1 + $0x510] sm:$0xf]
    %v347 = vld [vmem:[%s1 + $0x514] sm:$0xf]
    %v348 = vld [vmem:[%s1 + $0x518] sm:$0xf]
    %v349 = vld [vmem:[%s1 + $0x51c] sm:$0xf]
    %v350 = vld [vmem:[%s1 + $0x520] sm:$0xf]
    %v351 = vld [vmem:[%s1 + $0x524] sm:$0xf]
    %v352 = vld [vmem:[%s1 + $0x528] sm:$0xf]
    %v353 = vld [vmem:[%s1 + $0x52c] sm:$0xf]
    %v354 = vld [vmem:[%s1 + $0x530] sm:$0xf]
    %v355 = vld [vmem:[%s1 + $0x534] sm:$0xf]
    %v356 = vld [vmem:[%s1 + $0x538] sm:$0xf]
    %v357 = vld [vmem:[%s1 + $0x53c] sm:$0xf]
    %v358 = vld [vmem:[%s1 + $0x540] sm:$0xf]
    %v359 = vld [vmem:[%s1 + $0x544] sm:$0xf]
    %v360 = vld [vmem:[%s1 + $0x548] sm:$0xf]
    %v361 = vld [vmem:[%s1 + $0x54c] sm:$0xf]
    %v362 = vld [vmem:[%s1 + $0x550] sm:$0xf]
    %v363 = vld [vmem:[%s1 + $0x554] sm:$0xf]
    %v364 = vld [vmem:[%s1 + $0x558] sm:$0xf]
    %v365 = vld [vmem:[%s1 + $0x55c] sm:$0xf]
    %v366 = vld [vmem:[%s1 + $0x560] sm:$0xf]
    %v367 = vld [vmem:[%s1 + $0x564] sm:$0xf]
    %v368 = vld [vmem:[%s1 + $0x568] sm:$0xf]
    %v369 = vld [vmem:[%s1 + $0x56c] sm:$0xf]
    %v370 = vld [vmem:[%s1 + $0x570] sm:$0xf]
    %v371 = vld [vmem:[%s1 + $0x574] sm:$0xf]
    %v372 = vld [vmem:[%s1 + $0x578] sm:$0xf]
    %v373 = vld [vmem:[%s1 + $0x57c] sm:$0xf]
    %v374 = vld [vmem:[%s1 + $0x580] sm:$0xf]
    %v375 = vld [vmem:[%s1 + $0x584] sm:$0xf]
    %v376 = vld [vmem:[%s1 + $0x588] sm:$0xf]
    %v377 = vld [vmem:[%s1 + $0x58c] sm:$0xf]
    %v378 = vld [vmem:[%s1 + $0x590] sm:$0xf]
    %v379 = vld [vmem:[%s1 + $0x594] sm:$0xf]
    %v380 = vld [vmem:[%s1 + $0x598] sm:$0xf]
    %v381 = vld [vmem:[%s1 + $0x59c] sm:$0xf]
    %v382 = vld [vmem:[%s1 + $0x5a0] sm:$0xf]
    %v383 = vld [vmem:[%s1 + $0x5a4] sm:$0xf]
    %v384 = vld [vmem:[%s1 + $0x5a8] sm:$0xf]
    %v385 = vld [vmem:[%s1 + $0x5ac] sm:$0xf]
    %v386 = vld [vmem:[%s1 + $0x5b0] sm:$0xf]
    %v387 = vld [vmem:[%s1 + $0x5b4] sm:$0xf]
    %v388 = vld [vmem:[%s1 + $0x5b8] sm:$0xf]
    %v389 = vld [vmem:[%s1 + $0x5bc] sm:$0xf]
    %v390 = vld [vmem:[%s1 + $0x5c0] sm:$0xf]
    %v391 = vld [vmem:[%s1 + $0x5c4] sm:$0xf]
    %v392 = vld [vmem:[%s1 + $0x5c8] sm:$0xf]
    %v393 = vld [vmem:[%s1 + $0x5cc] sm:$0xf]
    %v394 = vld [vmem:[%s1 + $0x5d0] sm:$0xf]
    %v395 = vld [vmem:[%s1 + $0x5d4] sm:$0xf]
    %v396 = vld [vmem:[%s1 + $0x5d8] sm:$0xf]
    %v397 = vld [vmem:[%s1 + $0x5dc] sm:$0xf]
    %v398 = vld [vmem:[%s1 + $0x5e0] sm:$0xf]
    %v399 = vld [vmem:[%s1 + $0x5e4] sm:$0xf]
    %v400 = vld [vmem:[%s1 + $0x5e8] sm:$0xf]
    %v401 = vld [vmem:[%s1 + $0x5ec] sm:$0xf]
    %v402 = vld [vmem:[%s1 + $0x5f0] sm:$0xf]
    %v403 = vld [vmem:[%s1 + $0x5f4] sm:$0xf]
    %v404 = vld [vmem:[%s1 + $0x5f8] sm:$0xf]
    %v405 = vld [vmem:[%s1 + $0x5fc] sm:$0xf]
    %v406 = vld [vmem:[%s1 + $0x600] sm:$0xf]
    %v407 = vld [vmem:[%s1 + $0x604] sm:$0xf]
    %v408 = vld [vmem:[%s1 + $0x608] sm:$0xf]
    %v409 = vld [vmem:[%s1 + $0x60c] sm:$0xf]
    %v410 = vld [vmem:[%s1 + $0x610] sm:$0xf]
    %v411 = vld [vmem:[%s1 + $0x614] sm:$0xf]
    %v412 = vld [vmem:[%s1 + $0x618] sm:$0xf]
    %v413 = vld [vmem:[%s1 + $0x61c] sm:$0xf]
    %v414 = vld [vmem:[%s1 + $0x620] sm:$0xf]
    %v415 = vld [vmem:[%s1 + $0x624] sm:$0xf]
    %v416 = vld [vmem:[%s1 + $0x628] sm:$0xf]
    %v417 = vld [vmem:[%s1 + $0x62c] sm:$0xf]
    %v418 = vld [vmem:[%s1 + $0x630] sm:$0xf]
    %v419 = vld [vmem:[%s1 + $0x634] sm:$0xf]
    %v420 = vld [vmem:[%s1 + $0x638] sm:$0xf]
    %v421 = vld [vmem:[%s1 + $0x63c] sm:$0xf]
    %v422 = vld [vmem:[%s1 + $0x640] sm:$0xf]
    %v423 = vld [vmem:[%s1 + $0x644] sm:$0xf]
    %v424 = vld [vmem:[%s1 + $0x648] sm:$0xf]
    %v425 = vld [vmem:[%s1 + $0x64c] sm:$0xf]
    %v426 = vld [vmem:[%s1 + $0x650] sm:$0xf]
    %v427 = vld [vmem:[%s1 + $0x654] sm:$0xf]
    %v428 = vld [vmem:[%s1 + $0x658] sm:$0xf]
    %v429 = vld [vmem:[%s1 + $0x65c] sm:$0xf]
    %v430 = vld [vmem:[%s1 + $0x660] sm:$0xf]
    %v431 = vld [vmem:[%s1 + $0x664] sm:$0xf]
    %v432 = vld [vmem:[%s1 + $0x668] sm:$0xf]
    %v433 = vld [vmem:[%s1 + $0x66c] sm:$0xf]
    %v434 = vld [vmem:[%s1 + $0x670] sm:$0xf]
    %v435 = vld [vmem:[%s1 + $0x674] sm:$0xf]
    %v436 = vld [vmem:[%s1 + $0x678] sm:$0xf]
    %v437 = vld [vmem:[%s1 + $0x67c] sm:$0xf]
    %v438 = vld [vmem:[%s1 + $0x680] sm:$0xf]
    %v439 = vld [vmem:[%s1 + $0x684] sm:$0xf]
    %v440 = vld [vmem:[%s1 + $0x688] sm:$0xf]
    %v441 = vld [vmem:[%s1 + $0x68c] sm:$0xf]
    %v442 = vld [vmem:[%s1 + $0x690] sm:$0xf]
    %v443 = vld [vmem:[%s1 + $0x694] sm:$0xf]
    %v444 = vld [vmem:[%s1 + $0x698] sm:$0xf]
    %v445 = vld [vmem:[%s1 + $0x69c] sm:$0xf]
    %v446 = vld [vmem:[%s1 + $0x6a0] sm:$0xf]
    %v447 = vld [vmem:[%s1 + $0x6a4] sm:$0xf]
    %v448 = vld [vmem:[%s1 + $0x6a8] sm:$0xf]
    %v449 = vld [vmem:[%s1 + $0x6ac] sm:$0xf]
    %v450 = vld [vmem:[%s1 + $0x6b0] sm:$0xf]
    %v451 = vld [vmem:[%s1 + $0x6b4] sm:$0xf]
    %v452 = vld [vmem:[%s1 + $0x6b8] sm:$0xf]
    %v453 = vld [vmem:[%s1 + $0x6bc] sm:$0xf]
    %v454 = vld [vmem:[%s1 + $0x6c0] sm:$0xf]
    %v455 = vld [vmem:[%s1 + $0x6c4] sm:$0xf]
    %v456 = vld [vmem:[%s1 + $0x6c8] sm:$0xf]
    %v457 = vld [vmem:[%s1 + $0x6cc] sm:$0xf]
    %v458 = vld [vmem:[%s1 + $0x6d0] sm:$0xf]
    %v459 = vld [vmem:[%s1 + $0x6d4] sm:$0xf]
    %v460 = vld [vmem:[%s1 + $0x6d8] sm:$0xf]
    %v461 = vld [vmem:[%s1 + $0x6dc] sm:$0xf]
    %v462 = vld [vmem:[%s1 + $0x6e0] sm:$0xf]
    %v463 = vld [vmem:[%s1 + $0x6e4] sm:$0xf]
    %v464 = vld [vmem:[%s1 + $0x6e8] sm:$0xf]
    %v465 = vld [vmem:[%s1 + $0x6ec] sm:$0xf]
    %v466 = vld [vmem:[%s1 + $0x6f0] sm:$0xf]
    %v467 = vld [vmem:[%s1 + $0x6f4] sm:$0xf]
    %v468 = vld [vmem:[%s1 + $0x6f8] sm:$0xf]
    %v469 = vld [vmem:[%s1 + $0x6fc] sm:$0xf]
    %v470 = vld [vmem:[%s1 + $0x700] sm:$0xf]
    %v471 = vld [vmem:[%s1 + $0x704] sm:$0xf]
    %v472 = vld [vmem:[%s1 + $0x708] sm:$0xf]
    %v473 = vld [vmem:[%s1 + $0x70c] sm:$0xf]
    %v474 = vld [vmem:[%s1 + $0x710] sm:$0xf]
    %v475 = vld [vmem:[%s1 + $0x714] sm:$0xf]
    %v476 = vld [vmem:[%s1 + $0x718] sm:$0xf]
    %v477 = vld [vmem:[%s1 + $0x71c] sm:$0xf]
    %v478 = vld [vmem:[%s1 + $0x720] sm:$0xf]
    %v479 = vld [vmem:[%s1 + $0x724] sm:$0xf]
    %v480 = vld [vmem:[%s1 + $0x728] sm:$0xf]
    %v481 = vld [vmem:[%s1 + $0x72c] sm:$0xf]
    %v482 = vld [vmem:[%s1 + $0x730] sm:$0xf]
    %v483 = vld [vmem:[%s1 + $0x734] sm:$0xf]
    %v484 = vld [vmem:[%s1 + $0x738] sm:$0xf]
    %v485 = vld [vmem:[%s1 + $0x73c] sm:$0xf]
    %v486 = vld [vmem:[%s1 + $0x740] sm:$0xf]
    %v487 = vld [vmem:[%s1 + $0x744] sm:$0xf]
    %v488 = vld [vmem:[%s1 + $0x748] sm:$0xf]
    %v489 = vld [vmem:[%s1 + $0x74c] sm:$0xf]
    %v490 = vld [vmem:[%s1 + $0x750] sm:$0xf]
    %v491 = vld [vmem:[%s1 + $0x754] sm:$0xf]
    %v492 = vld [vmem:[%s1 + $0x758] sm:$0xf]
    %v493 = vld [vmem:[%s1 + $0x75c] sm:$0xf]
    %v494 = vld [vmem:[%s1 + $0x760] sm:$0xf]
    %v495 = vld [vmem:[%s1 + $0x764] sm:$0xf]
    %v496 = vld [vmem:[%s1 + $0x768] sm:$0xf]
    %v497 = vld [vmem:[%s1 + $0x76c] sm:$0xf]
    %v498 = vld [vmem:[%s1 + $0x770] sm:$0xf]
    %v499 = vld [vmem:[%s1 + $0x774] sm:$0xf]
    %v500 = vld [vmem:[%s1 + $0x778] sm:$0xf]
    %v501 = vld [vmem:[%s1 + $0x77c] sm:$0xf]
    %v502 = vld [vmem:[%s1 + $0x780] sm:$0xf]
    %v503 = vld [vmem:[%s1 + $0x784] sm:$0xf]
    %v504 = vld [vmem:[%s1 + $0x788] sm:$0xf]
    %v505 = vld [vmem:[%s1 + $0x78c] sm:$0xf]
    %v506 = vld [vmem:[%s1 + $0x790] sm:$0xf]
    %v507 = vld [vmem:[%s1 + $0x794] sm:$0xf]
    %v508 = vld [vmem:[%s1 + $0x798] sm:$0xf]
    %v509 = vld [vmem:[%s1 + $0x79c] sm:$0xf]
    %v510 = vld [vmem:[%s1 + $0x7a0] sm:$0xf]
    %v511 = vld [vmem:[%s1 + $0x7a4] sm:$0xf]
    %v512 = vld [vmem:[%s1 + $0x7a8] sm:$0xf]
    %v513 = vld [vmem:[%s1 + $0x7ac] sm:$0xf]
    %v514 = vld [vmem:[%s1 + $0x7b0] sm:$0xf]
    %v515 = vld [vmem:[%s1 + $0x7b4] sm:$0xf]
    %v516 = vld [vmem:[%s1 + $0x7b8] sm:$0xf]
    %v517 = vld [vmem:[%s1 + $0x7bc] sm:$0xf]
    %v518 = vld [vmem:[%s1 + $0x7c0] sm:$0xf]
    %v519 = vld [vmem:[%s1 + $0x7c4] sm:$0xf]
    %v520 = vld [vmem:[%s1 + $0x7c8] sm:$0xf]
    %v521 = vld [vmem:[%s1 + $0x7cc] sm:$0xf]
    %v522 = vld [vmem:[%s1 + $0x7d0] sm:$0xf]
    %v523 = vld [vmem:[%s1 + $0x7d4] sm:$0xf]
    %v524 = vld [vmem:[%s1 + $0x7d8] sm:$0xf]
    %v525 = vld [vmem:[%s1 + $0x7dc] sm:$0xf]
    %v526 = vld [vmem:[%s1 + $0x7e0] sm:$0xf]
    %v527 = vld [vmem:[%s1 + $0x7e4] sm:$0xf]
    %v528 = vld [vmem:[%s1 + $0x7e8] sm:$0xf]
    %v529 = vld [vmem:[%s1 + $0x7ec] sm:$0xf]
    %v530 = vld [vmem:[%s1 + $0x7f0] sm:$0xf]
    %v531 = vld [vmem:[%s1 + $0x7f4] sm:$0xf]
    %v532 = vld [vmem:[%s1 + $0x7f8] sm:$0xf]
    %v533 = vld [vmem:[%s1 + $0x7fc] sm:$0xf]
    %v534 = vld [vmem:[%s1 + $0x800] sm:$0xf]
    %v535 = vld [vmem:[%s1 + $0x804] sm:$0xf]
    %v536 = vld [vmem:[%s1 + $0x808] sm:$0xf]
    %v537 = vld [vmem:[%s1 + $0x80c] sm:$0xf]
    %v538 = vld [vmem:[%s1 + $0x810] sm:$0xf]
    %v539 = vld [vmem:[%s1 + $0x814] sm:$0xf]
    %v540 = vld [vmem:[%s1 + $0x818] sm:$0xf]
    %v541 = vld [vmem:[%s1 + $0x81c] sm:$0xf]
    %v542 = vld [vmem:[%s1 + $0x820] sm:$0xf]
    %v543 = vld [vmem:[%s1 + $0x824] sm:$0xf]
    %v544 = vld [vmem:[%s1 + $0x828] sm:$0xf]
    %v545 = vld [vmem:[%s1 + $0x82c] sm:$0xf]
    %v546 = vld [vmem:[%s1 + $0x830] sm:$0xf]
    %v547 = vld [vmem:[%s1 + $0x834] sm:$0xf]
    %v548 = vld [vmem:[%s1 + $0x838] sm:$0xf]
    %v549 = vld [vmem:[%s1 + $0x83c] sm:$0xf]
    %v550 = vld [vmem:[%s1 + $0x840] sm:$0xf]
    %v551 = vld [vmem:[%s1 + $0x844] sm:$0xf]
    %v552 = vld [vmem:[%s1 + $0x848] sm:$0xf]
    %v553 = vld [vmem:[%s1 + $0x84c] sm:$0xf]
    %v554 = vld [vmem:[%s1 + $0x850] sm:$0xf]
    %v555 = vld [vmem:[%s1 + $0x854] sm:$0xf]
    %v556 = vld [vmem:[%s1 + $0x858] sm:$0xf]
    %v557 = vld [vmem:[%s1 + $0x85c] sm:$0xf]
    %v558 = vld [vmem:[%s1 + $0x860] sm:$0xf]
    %v559 = vld [vmem:[%s1 + $0x864] sm:$0xf]
    %v560 = vld [vmem:[%s1 + $0x868] sm:$0xf]
    %v561 = vld [vmem:[%s1 + $0x86c] sm:$0xf]
    %v562 = vld [vmem:[%s1 + $0x870] sm:$0xf]
    %v563 = vld [vmem:[%s1 + $0x874] sm:$0xf]
    %v564 = vld [vmem:[%s1 + $0x878] sm:$0xf]
    %v565 = vld [vmem:[%s1 + $0x87c] sm:$0xf]
    %v566 = vld [vmem:[%s1 + $0x880] sm:$0xf]
    %v567 = vld [vmem:[%s1 + $0x884] sm:$0xf]
    %v568 = vld [vmem:[%s1 + $0x888] sm:$0xf]
    %v569 = vld [vmem:[%s1 + $0x88c] sm:$0xf]
    %v570 = vld [vmem:[%s1 + $0x890] sm:$0xf]
    %v571 = vld [vmem:[%s1 + $0x894] sm:$0xf]
    %v572 = vld [vmem:[%s1 + $0x898] sm:$0xf]
    %v573 = vld [vmem:[%s1 + $0x89c] sm:$0xf]
    %v574 = vld [vmem:[%s1 + $0x8a0] sm:$0xf]
    %v575 = vld [vmem:[%s1 + $0x8a4] sm:$0xf]
    %v576 = vld [vmem:[%s1 + $0x8a8] sm:$0xf]
    %v577 = vld [vmem:[%s1 + $0x8ac] sm:$0xf]
    %v578 = vld [vmem:[%s1 + $0x8b0] sm:$0xf]
    %v579 = vld [vmem:[%s1 + $0x8b4] sm:$0xf]
    %v580 = vld [vmem:[%s1 + $0x8b8] sm:$0xf]
    %v581 = vld [vmem:[%s1 + $0x8bc] sm:$0xf]
    %v582 = vld [vmem:[%s1 + $0x8c0] sm:$0xf]
    %v583 = vld [vmem:[%s1 + $0x8c4] sm:$0xf]
    %v584 = vld [vmem:[%s1 + $0x8c8] sm:$0xf]
    %v585 = vld [vmem:[%s1 + $0x8cc] sm:$0xf]
    %v586 = vld [vmem:[%s1 + $0x8d0] sm:$0xf]
    %v587 = vld [vmem:[%s1 + $0x8d4] sm:$0xf]
    %v588 = vld [vmem:[%s1 + $0x8d8] sm:$0xf]
    %v589 = vld [vmem:[%s1 + $0x8dc] sm:$0xf]
    %v590 = vld [vmem:[%s1 + $0x8e0] sm:$0xf]
    %v591 = vld [vmem:[%s1 + $0x8e4] sm:$0xf]
    %v592 = vld [vmem:[%s1 + $0x8e8] sm:$0xf]
    %v593 = vld [vmem:[%s1 + $0x8ec] sm:$0xf]
    %v594 = vld [vmem:[%s1 + $0x8f0] sm:$0xf]
    %v595 = vld [vmem:[%s1 + $0x8f4] sm:$0xf]
    %v596 = vld [vmem:[%s1 + $0x8f8] sm:$0xf]
    %v597 = vld [vmem:[%s1 + $0x8fc] sm:$0xf]
    %v598 = vld [vmem:[%s1 + $0x900] sm:$0xf]
    %v599 = vld [vmem:[%s1 + $0x904] sm:$0xf]
    %v600 = vld [vmem:[%s1 + $0x908] sm:$0xf]
    %v601 = vld [vmem:[%s1 + $0x90c] sm:$0xf]
    %v602 = vld [vmem:[%s1 + $0x910] sm:$0xf]
    %v603 = vld [vmem:[%s1 + $0x914] sm:$0xf]
    %v604 = vld [vmem:[%s1 + $0x918] sm:$0xf]
    %v605 = vld [vmem:[%s1 + $0x91c] sm:$0xf]
    %v606 = vld [vmem:[%s1 + $0x920] sm:$0xf]
    %v607 = vld [vmem:[%s1 + $0x924] sm:$0xf]
    %v608 = vld [vmem:[%s1 + $0x928] sm:$0xf]
    %v609 = vld [vmem:[%s1 + $0x92c] sm:$0xf]
    %v610 = vld [vmem:[%s1 + $0x930] sm:$0xf]
    %v611 = vld [vmem:[%s1 + $0x934] sm:$0xf]
    %v612 = vld [vmem:[%s1 + $0x938] sm:$0xf]
    %v613 = vld [vmem:[%s1 + $0x93c] sm:$0xf]
    %v614 = vld [vmem:[%s1 + $0x940] sm:$0xf]
    %v615 = vld [vmem:[%s1 + $0x944] sm:$0xf]
    %v616 = vld [vmem:[%s1 + $0x948] sm:$0xf]
    %v617 = vld [vmem:[%s1 + $0x94c] sm:$0xf]
    %v618 = vld [vmem:[%s1 + $0x950] sm:$0xf]
    %v619 = vld [vmem:[%s1 + $0x954] sm:$0xf]
    %v620 = vld [vmem:[%s1 + $0x958] sm:$0xf]
    %v621 = vld [vmem:[%s1 + $0x95c] sm:$0xf]
    %v622 = vld [vmem:[%s1 + $0x960] sm:$0xf]
    %v623 = vld [vmem:[%s1 + $0x964] sm:$0xf]
    %v624 = vld [vmem:[%s1 + $0x968] sm:$0xf]
    %v625 = vld [vmem:[%s1 + $0x96c] sm:$0xf]
    %v626 = vld [vmem:[%s1 + $0x970] sm:$0xf]
    %v627 = vld [vmem:[%s1 + $0x974] sm:$0xf]
    %v628 = vld [vmem:[%s1 + $0x978] sm:$0xf]
    %v629 = vld [vmem:[%s1 + $0x97c] sm:$0xf]
    %v630 = vld [vmem:[%s1 + $0x980] sm:$0xf]
    %v631 = vld [vmem:[%s1 + $0x984] sm:$0xf]
    %v632 = vld [vmem:[%s1 + $0x988] sm:$0xf]
    %v633 = vld [vmem:[%s1 + $0x98c] sm:$0xf]
    %v634 = vld [vmem:[%s1 + $0x990] sm:$0xf]
    %v635 = vld [vmem:[%s1 + $0x994] sm:$0xf]
    %v636 = vld [vmem:[%s1 + $0x998] sm:$0xf]
    %v637 = vld [vmem:[%s1 + $0x99c] sm:$0xf]
    %v638 = vld [vmem:[%s1 + $0x9a0] sm:$0xf]
    %v639 = vld [vmem:[%s1 + $0x9a4] sm:$0xf]
    %v640 = vld [vmem:[%s1 + $0x9a8] sm:$0xf]
    %v641 = vld [vmem:[%s1 + $0x9ac] sm:$0xf]
    %v642 = vld [vmem:[%s1 + $0x9b0] sm:$0xf]
    %v643 = vld [vmem:[%s1 + $0x9b4] sm:$0xf]
    %v644 = vld [vmem:[%s1 + $0x9b8] sm:$0xf]
    %v645 = vld [vmem:[%s1 + $0x9bc] sm:$0xf]
    %v646 = vld [vmem:[%s1 + $0x9c0] sm:$0xf]
    %v647 = vld [vmem:[%s1 + $0x9c4] sm:$0xf]
    %v648 = vld [vmem:[%s1 + $0x9c8] sm:$0xf]
    %v649 = vld [vmem:[%s1 + $0x9cc] sm:$0xf]
    %v650 = vld [vmem:[%s1 + $0x9d0] sm:$0xf]
    %v651 = vld [vmem:[%s1 + $0x9d4] sm:$0xf]
    %v652 = vld [vmem:[%s1 + $0x9d8] sm:$0xf]
    %v653 = vld [vmem:[%s1 + $0x9dc] sm:$0xf]
    %v654 = vld [vmem:[%s1 + $0x9e0] sm:$0xf]
    %v655 = vld [vmem:[%s1 + $0x9e4] sm:$0xf]
    %v656 = vld [vmem:[%s1 + $0x9e8] sm:$0xf]
    %v657 = vld [vmem:[%s1 + $0x9ec] sm:$0xf]
    %v658 = vld [vmem:[%s1 + $0x9f0] sm:$0xf]
    %v659 = vld [vmem:[%s1 + $0x9f4] sm:$0xf]
    %v660 = vld [vmem:[%s1 + $0x9f8] sm:$0xf]
    %v661 = vld [vmem:[%s1 + $0x9fc] sm:$0xf]
    %v662 = vld [vmem:[%s1 + $0xa00] sm:$0xf]
    %v663 = vld [vmem:[%s1 + $0xa04] sm:$0xf]
    %v664 = vld [vmem:[%s1 + $0xa08] sm:$0xf]
    %v665 = vld [vmem:[%s1 + $0xa0c] sm:$0xf]
    %v666 = vld [vmem:[%s1 + $0xa10] sm:$0xf]
    %v667 = vld [vmem:[%s1 + $0xa14] sm:$0xf]
    %v668 = vld [vmem:[%s1 + $0xa18] sm:$0xf]
    %v669 = vld [vmem:[%s1 + $0xa1c] sm:$0xf]
    %v670 = vld [vmem:[%s1 + $0xa20] sm:$0xf]
    %v671 = vld [vmem:[%s1 + $0xa24] sm:$0xf]
    %v672 = vld [vmem:[%s1 + $0xa28] sm:$0xf]
    %v673 = vld [vmem:[%s1 + $0xa2c] sm:$0xf]
    %v674 = vld [vmem:[%s1 + $0xa30] sm:$0xf]
    %v675 = vld [vmem:[%s1 + $0xa34] sm:$0xf]
    %v676 = vld [vmem:[%s1 + $0xa38] sm:$0xf]
    %v677 = vld [vmem:[%s1 + $0xa3c] sm:$0xf]
    %v678 = vld [vmem:[%s1 + $0xa40] sm:$0xf]
    %v679 = vld [vmem:[%s1 + $0xa44] sm:$0xf]
    %v680 = vld [vmem:[%s1 + $0xa48] sm:$0xf]
    %v681 = vld [vmem:[%s1 + $0xa4c] sm:$0xf]
    %v682 = vld [vmem:[%s1 + $0xa50] sm:$0xf]
    %v683 = vld [vmem:[%s1 + $0xa54] sm:$0xf]
    %v684 = vld [vmem:[%s1 + $0xa58] sm:$0xf]
    %v685 = vld [vmem:[%s1 + $0xa5c] sm:$0xf]
    %v686 = vld [vmem:[%s1 + $0xa60] sm:$0xf]
    %v687 = vld [vmem:[%s1 + $0xa64] sm:$0xf]
    %v688 = vld [vmem:[%s1 + $0xa68] sm:$0xf]
    %v689 = vld [vmem:[%s1 + $0xa6c] sm:$0xf]
    %v690 = vld [vmem:[%s1 + $0xa70] sm:$0xf]
    %v691 = vld [vmem:[%s1 + $0xa74] sm:$0xf]
    %v692 = vld [vmem:[%s1 + $0xa78] sm:$0xf]
    %v693 = vld [vmem:[%s1 + $0xa7c] sm:$0xf]
    %v694 = vld [vmem:[%s1 + $0xa80] sm:$0xf]
    %v695 = vld [vmem:[%s1 + $0xa84] sm:$0xf]
    %v696 = vld [vmem:[%s1 + $0xa88] sm:$0xf]
    %v697 = vld [vmem:[%s1 + $0xa8c] sm:$0xf]
    %v698 = vld [vmem:[%s1 + $0xa90] sm:$0xf]
    %v699 = vld [vmem:[%s1 + $0xa94] sm:$0xf]
    %v700 = vld [vmem:[%s1 + $0xa98] sm:$0xf]
    %v701 = vld [vmem:[%s1 + $0xa9c] sm:$0xf]
    %v702 = vld [vmem:[%s1 + $0xaa0] sm:$0xf]
    %v703 = vld [vmem:[%s1 + $0xaa4] sm:$0xf]
    %v704 = vld [vmem:[%s1 + $0xaa8] sm:$0xf]
    %v705 = vld [vmem:[%s1 + $0xaac] sm:$0xf]
    %v706 = vld [vmem:[%s1 + $0xab0] sm:$0xf]
    %v707 = vld [vmem:[%s1 + $0xab4] sm:$0xf]
    %v708 = vld [vmem:[%s1 + $0xab8] sm:$0xf]
    %v709 = vld [vmem:[%s1 + $0xabc] sm:$0xf]
    %v710 = vld [vmem:[%s1 + $0xac0] sm:$0xf]
    %v711 = vld [vmem:[%s1 + $0xac4] sm:$0xf]
    %v712 = vld [vmem:[%s1 + $0xac8] sm:$0xf]
    %v713 = vld [vmem:[%s1 + $0xacc] sm:$0xf]
    %v714 = vld [vmem:[%s1 + $0xad0] sm:$0xf]
    %v715 = vld [vmem:[%s1 + $0xad4] sm:$0xf]
    %v716 = vld [vmem:[%s1 + $0xad8] sm:$0xf]
    %v717 = vld [vmem:[%s1 + $0xadc] sm:$0xf]
    %v718 = vld [vmem:[%s1 + $0xae0] sm:$0xf]
    %v719 = vld [vmem:[%s1 + $0xae4] sm:$0xf]
    %v720 = vld [vmem:[%s1 + $0xae8] sm:$0xf]
    %v721 = vld [vmem:[%s1 + $0xaec] sm:$0xf]
    %v722 = vld [vmem:[%s1 + $0xaf0] sm:$0xf]
    %v723 = vld [vmem:[%s1 + $0xaf4] sm:$0xf]
    %v724 = vld [vmem:[%s1 + $0xaf8] sm:$0xf]
    %v725 = vld [vmem:[%s1 + $0xafc] sm:$0xf]
    %v726 = vld [vmem:[%s1 + $0xb00] sm:$0xf]
    %v727 = vld [vmem:[%s1 + $0xb04] sm:$0xf]
    %v728 = vld [vmem:[%s1 + $0xb08] sm:$0xf]
    %v729 = vld [vmem:[%s1 + $0xb0c] sm:$0xf]
    %v730 = vld [vmem:[%s1 + $0xb10] sm:$0xf]
    %v731 = vld [vmem:[%s1 + $0xb14] sm:$0xf]
    %v732 = vld [vmem:[%s1 + $0xb18] sm:$0xf]
    %v733 = vld [vmem:[%s1 + $0xb1c] sm:$0xf]
    %v734 = vld [vmem:[%s1 + $0xb20] sm:$0xf]
    %v735 = vld [vmem:[%s1 + $0xb24] sm:$0xf]
    %v736 = vld [vmem:[%s1 + $0xb28] sm:$0xf]
    %v737 = vld [vmem:[%s1 + $0xb2c] sm:$0xf]
    %v738 = vld [vmem:[%s1 + $0xb30] sm:$0xf]
    %v739 = vld [vmem:[%s1 + $0xb34] sm:$0xf]
    %v740 = vld [vmem:[%s1 + $0xb38] sm:$0xf]
    %v741 = vld [vmem:[%s1 + $0xb3c] sm:$0xf]
    %v742 = vld [vmem:[%s1 + $0xb40] sm:$0xf]
    %v743 = vld [vmem:[%s1 + $0xb44] sm:$0xf]
    %v744 = vld [vmem:[%s1 + $0xb48] sm:$0xf]
    %v745 = vld [vmem:[%s1 + $0xb4c] sm:$0xf]
    %v746 = vld [vmem:[%s1 + $0xb50] sm:$0xf]
    %v747 = vld [vmem:[%s1 + $0xb54] sm:$0xf]
    %v748 = vld [vmem:[%s1 + $0xb58] sm:$0xf]
    %v749 = vld [vmem:[%s1 + $0xb5c] sm:$0xf]
    %v750 = vld [vmem:[%s1 + $0xb60] sm:$0xf]
    %v751 = vld [vmem:[%s1 + $0xb64] sm:$0xf]
    %v752 = vld [vmem:[%s1 + $0xb68] sm:$0xf]
    %v753 = vld [vmem:[%s1 + $0xb6c] sm:$0xf]
    %v754 = vld [vmem:[%s1 + $0xb70] sm:$0xf]
    %v755 = vld [vmem:[%s1 + $0xb74] sm:$0xf]
    %v756 = vld [vmem:[%s1 + $0xb78] sm:$0xf]
    %v757 = vld [vmem:[%s1 + $0xb7c] sm:$0xf]
    %v758 = vld [vmem:[%s1 + $0xb80] sm:$0xf]
    %v759 = vld [vmem:[%s1 + $0xb84] sm:$0xf]
    %v760 = vld [vmem:[%s1 + $0xb88] sm:$0xf]
    %v761 = vld [vmem:[%s1 + $0xb8c] sm:$0xf]
    %v762 = vld [vmem:[%s1 + $0xb90] sm:$0xf]
    %v763 = vld [vmem:[%s1 + $0xb94] sm:$0xf]
    %v764 = vld [vmem:[%s1 + $0xb98] sm:$0xf]
    %v765 = vld [vmem:[%s1 + $0xb9c] sm:$0xf]
    %v766 = vld [vmem:[%s1 + $0xba0] sm:$0xf]
    %v767 = vld [vmem:[%s1 + $0xba4] sm:$0xf]
    %v768 = vld [vmem:[%s1 + $0xba8] sm:$0xf]
    %v769 = vld [vmem:[%s1 + $0xbac] sm:$0xf]
    %v770 = vld [vmem:[%s1 + $0xbb0] sm:$0xf]
    %v771 = vld [vmem:[%s1 + $0xbb4] sm:$0xf]
    %v772 = vld [vmem:[%s1 + $0xbb8] sm:$0xf]
    %v773 = vld [vmem:[%s1 + $0xbbc] sm:$0xf]
    %v774 = vld [vmem:[%s1 + $0xbc0] sm:$0xf]
    %v775 = vld [vmem:[%s1 + $0xbc4] sm:$0xf]
    %v776 = vld [vmem:[%s1 + $0xbc8] sm:$0xf]
    %v777 = vld [vmem:[%s1 + $0xbcc] sm:$0xf]
    %v778 = vld [vmem:[%s1 + $0xbd0] sm:$0xf]
    %v779 = vld [vmem:[%s1 + $0xbd4] sm:$0xf]
    %v780 = vld [vmem:[%s1 + $0xbd8] sm:$0xf]
    %v781 = vld [vmem:[%s1 + $0xbdc] sm:$0xf]
    %v782 = vld [vmem:[%s1 + $0xbe0] sm:$0xf]
    %v783 = vld [vmem:[%s1 + $0xbe4] sm:$0xf]
    %v784 = vld [vmem:[%s1 + $0xbe8] sm:$0xf]
    %v785 = vld [vmem:[%s1 + $0xbec] sm:$0xf]
    %v786 = vld [vmem:[%s1 + $0xbf0] sm:$0xf]
    %v787 = vld [vmem:[%s1 + $0xbf4] sm:$0xf]
    %v788 = vld [vmem:[%s1 + $0xbf8] sm:$0xf]
    %v789 = vld [vmem:[%s1 + $0xbfc] sm:$0xf]
    %v790 = vld [vmem:[%s1 + $0xc00] sm:$0xf]
    %v791 = vld [vmem:[%s1 + $0xc04] sm:$0xf]
    %v792 = vld [vmem:[%s1 + $0xc08] sm:$0xf]
    %v793 = vld [vmem:[%s1 + $0xc0c] sm:$0xf]
    %v794 = vld [vmem:[%s1 + $0xc10] sm:$0xf]
    %v795 = vld [vmem:[%s1 + $0xc14] sm:$0xf]
    %v796 = vld [vmem:[%s1 + $0xc18] sm:$0xf]
    %v797 = vld [vmem:[%s1 + $0xc1c] sm:$0xf]
    %v798 = vld [vmem:[%s1 + $0xc20] sm:$0xf]
    %v799 = vld [vmem:[%s1 + $0xc24] sm:$0xf]
    %v800 = vld [vmem:[%s1 + $0xc28] sm:$0xf]
    %v801 = vld [vmem:[%s1 + $0xc2c] sm:$0xf]
    %v802 = vld [vmem:[%s1 + $0xc30] sm:$0xf]
    %v803 = vld [vmem:[%s1 + $0xc34] sm:$0xf]
    %v804 = vld [vmem:[%s1 + $0xc38] sm:$0xf]
    %v805 = vld [vmem:[%s1 + $0xc3c] sm:$0xf]
    %v806 = vld [vmem:[%s2] sm:$0x1]
    %v808 = vperm.slane %v806, 0
    %811 = vst [vmem:[#allocation1] ss:$9 sm:$0xff] %v15
    %v812 = vld [vmem:[#allocation1] sm:$0xff]
    %v813 = vld [vmem:[#allocation1 + $0x9] sm:$0xff]
    %v814 = vld [vmem:[#allocation1 + $0x12] sm:$0xff]
    %v815 = vld [vmem:[#allocation1 + $0x1b] sm:$0xff]
    %v816 = vld [vmem:[#allocation1 + $0x24] sm:$0xff]
    %v817 = vld [vmem:[#allocation1 + $0x2d] sm:$0xff]
    %v818 = vld [vmem:[#allocation1 + $0x36] sm:$0xff]
    %v819 = vld [vmem:[#allocation1 + $0x3f] sm:$0xff]
    %821 = vst [vmem:[#allocation1] ss:$9 sm:$0xff] %v16
    %v822 = vld [vmem:[#allocation1] sm:$0xff]
    %v823 = vld [vmem:[#allocation1 + $0x9] sm:$0xff]
    %v824 = vld [vmem:[#allocation1 + $0x12] sm:$0xff]
    %v825 = vld [vmem:[#allocation1 + $0x1b] sm:$0xff]
    %v826 = vld [vmem:[#allocation1 + $0x24] sm:$0xff]
    %v827 = vld [vmem:[#allocation1 + $0x2d] sm:$0xff]
    %v828 = vld [vmem:[#allocation1 + $0x36] sm:$0xff]
    %v829 = vld [vmem:[#allocation1 + $0x3f] sm:$0xff]
    %831 = vst [vmem:[#allocation1] ss:$9 sm:$0xff] %v17
    %v832 = vld [vmem:[#allocation1] sm:$0xff]
    %v833 = vld [vmem:[#allocation1 + $0x9] sm:$0xff]
    %v834 = vld [vmem:[#allocation1 + $0x12] sm:$0xff]
    %v835 = vld [vmem:[#allocation1 + $0x1b] sm:$0xff]
    %v836 = vld [vmem:[#allocation1 + $0x24] sm:$0xff]
    %v837 = vld [vmem:[#allocation1 + $0x2d] sm:$0xff]
    %v838 = vld [vmem:[#allocation1 + $0x36] sm:$0xff]
    %v839 = vld [vmem:[#allocation1 + $0x3f] sm:$0xff]
    %841 = vst [vmem:[#allocation1] ss:$9 sm:$0xff] %v18
    %v842 = vld [vmem:[#allocation1] sm:$0xff]
    %v843 = vld [vmem:[#allocation1 + $0x9] sm:$0xff]
    %v844 = vld [vmem:[#allocation1 + $0x12] sm:$0xff]
    %v845 = vld [vmem:[#allocation1 + $0x1b] sm:$0xff]
    %v846 = vld [vmem:[#allocation1 + $0x24] sm:$0xff]
    %v847 = vld [vmem:[#allocation1 + $0x2d] sm:$0xff]
    %v848 = vld [vmem:[#allocation1 + $0x36] sm:$0xff]
    %v849 = vld [vmem:[#allocation1 + $0x3f] sm:$0xff]
    %851 = vst [vmem:[#allocation1] ss:$9 sm:$0xff] %v19
    %v852 = vld [vmem:[#allocation1] sm:$0xff]
    %v853 = vld [vmem:[#allocation1 + $0x9] sm:$0xff]
    %v854 = vld [vmem:[#allocation1 + $0x12] sm:$0xff]
    %v855 = vld [vmem:[#allocation1 + $0x1b] sm:$0xff]
    %v856 = vld [vmem:[#allocation1 + $0x24] sm:$0xff]
    %v857 = vld [vmem:[#allocation1 + $0x2d] sm:$0xff]
    %v858 = vld [vmem:[#allocation1 + $0x36] sm:$0xff]
    %v859 = vld [vmem:[#allocation1 + $0x3f] sm:$0xff]
    %861 = vst [vmem:[#allocation1] ss:$9 sm:$0xff] %v20
    %v862 = vld [vmem:[#allocation1] sm:$0xff]
    %v863 = vld [vmem:[#allocation1 + $0x9] sm:$0xff]
    %v864 = vld [vmem:[#allocation1 + $0x12] sm:$0xff]
    %v865 = vld [vmem:[#allocation1 + $0x1b] sm:$0xff]
    %v866 = vld [vmem:[#allocation1 + $0x24] sm:$0xff]
    %v867 = vld [vmem:[#allocation1 + $0x2d] sm:$0xff]
    %v868 = vld [vmem:[#allocation1 + $0x36] sm:$0xff]
    %v869 = vld [vmem:[#allocation1 + $0x3f] sm:$0xff]
    %871 = vst [vmem:[#allocation1] ss:$9 sm:$0xff] %v21
    %v872 = vld [vmem:[#allocation1] sm:$0xff]
    %v1706 = vunpack.c.l.b16 %v22
    %v1707 = vunpack.c.l.b16 %v23
    %v1708 = vunpack.c.l.b16 %v24
    %v1709 = vunpack.c.l.b16 %v25
    %v1710 = vunpack.c.l.b16 %v26
    %v1711 = vunpack.c.l.b16 %v27
    %v1712 = vunpack.c.l.b16 %v28
    %v1713 = vunpack.c.l.b16 %v29
    %v1714 = vunpack.c.l.b16 %v30
    %v1715 = vunpack.c.l.b16 %v31
    %v1716 = vunpack.c.l.b16 %v32
    %v1717 = vunpack.c.l.b16 %v33
    %v1718 = vunpack.c.l.b16 %v34
    %v1719 = vunpack.c.l.b16 %v35
    %v1720 = vunpack.c.l.b16 %v36
    %v1721 = vunpack.c.l.b16 %v37
    %v1722 = vunpack.c.l.b16 %v38
    %v1723 = vunpack.c.l.b16 %v39
    %v1724 = vunpack.c.l.b16 %v40
    %v1725 = vunpack.c.l.b16 %v41
    %v1726 = vunpack.c.l.b16 %v42
    %v1727 = vunpack.c.l.b16 %v43
    %v1728 = vunpack.c.l.b16 %v44
    %v1729 = vunpack.c.l.b16 %v45
    %v1730 = vunpack.c.l.b16 %v46
    %v1731 = vunpack.c.l.b16 %v47
    %v1732 = vunpack.c.l.b16 %v48
    %v1733 = vunpack.c.l.b16 %v49
    %v1734 = vunpack.c.l.b16 %v50
    %v1735 = vunpack.c.l.b16 %v51
    %v1736 = vunpack.c.l.b16 %v52
    %v1737 = vunpack.c.l.b16 %v53
    %v1738 = vunpack.c.l.b16 %v54
    %v1739 = vunpack.c.l.b16 %v55
    %v1740 = vunpack.c.l.b16 %v56
    %v1741 = vunpack.c.l.b16 %v57
    %v1742 = vunpack.c.l.b16 %v58
    %v1743 = vunpack.c.l.b16 %v59
    %v1744 = vunpack.c.l.b16 %v60
    %v1745 = vunpack.c.l.b16 %v61
    %v1746 = vunpack.c.l.b16 %v62
    %v1747 = vunpack.c.l.b16 %v63
    %v1748 = vunpack.c.l.b16 %v64
    %v1749 = vunpack.c.l.b16 %v65
    %v1750 = vunpack.c.l.b16 %v66
    %v1751 = vunpack.c.l.b16 %v67
    %v1752 = vunpack.c.l.b16 %v68
    %v1753 = vunpack.c.l.b16 %v69
    %v1754 = vunpack.c.l.b16 %v70
    %v1755 = vunpack.c.l.b16 %v71
    %v1756 = vunpack.c.l.b16 %v72
    %v1757 = vunpack.c.l.b16 %v73
    %v1758 = vunpack.c.l.b16 %v74
    %v1759 = vunpack.c.l.b16 %v75
    %v1760 = vunpack.c.l.b16 %v76
    %v1761 = vunpack.c.l.b16 %v77
    %v1762 = vunpack.c.l.b16 %v78
    %v1763 = vunpack.c.l.b16 %v79
    %v1764 = vunpack.c.l.b16 %v80
    %v1765 = vunpack.c.l.b16 %v81
    %v1766 = vunpack.c.l.b16 %v82
    %v1767 = vunpack.c.l.b16 %v83
    %v1768 = vunpack.c.l.b16 %v84
    %v1769 = vunpack.c.l.b16 %v85
    %v1770 = vunpack.c.l.b16 %v86
    %v1771 = vunpack.c.l.b16 %v87
    %v1772 = vunpack.c.l.b16 %v88
    %v1773 = vunpack.c.l.b16 %v89
    %v1774 = vunpack.c.l.b16 %v90
    %v1775 = vunpack.c.l.b16 %v91
    %v1776 = vunpack.c.l.b16 %v92
    %v1777 = vunpack.c.l.b16 %v93
    %v1778 = vunpack.c.l.b16 %v94
    %v1779 = vunpack.c.l.b16 %v95
    %v1780 = vunpack.c.l.b16 %v96
    %v1781 = vunpack.c.l.b16 %v97
    %v1782 = vunpack.c.l.b16 %v98
    %v1783 = vunpack.c.l.b16 %v99
    %v1784 = vunpack.c.l.b16 %v100
    %v1785 = vunpack.c.l.b16 %v101
    %v1786 = vunpack.c.l.b16 %v102
    %v1787 = vunpack.c.l.b16 %v103
    %v1788 = vunpack.c.l.b16 %v104
    %v1789 = vunpack.c.l.b16 %v105
    %v1790 = vunpack.c.l.b16 %v106
    %v1791 = vunpack.c.l.b16 %v107
    %v1792 = vunpack.c.l.b16 %v108
    %v1793 = vunpack.c.l.b16 %v109
    %v1794 = vunpack.c.l.b16 %v110
    %v1795 = vunpack.c.l.b16 %v111
    %v1796 = vunpack.c.l.b16 %v112
    %v1797 = vunpack.c.l.b16 %v113
    %v1798 = vunpack.c.l.b16 %v114
    %v1799 = vunpack.c.l.b16 %v115
    %v1800 = vunpack.c.l.b16 %v116
    %v1801 = vunpack.c.l.b16 %v117
    %v1802 = vunpack.c.l.b16 %v118
    %v1803 = vunpack.c.l.b16 %v119
    %v1804 = vunpack.c.l.b16 %v120
    %v1805 = vunpack.c.l.b16 %v121
    %v1806 = vunpack.c.l.b16 %v122
    %v1807 = vunpack.c.l.b16 %v123
    %v1808 = vunpack.c.l.b16 %v124
    %v1809 = vunpack.c.l.b16 %v125
    %v1810 = vunpack.c.l.b16 %v126
    %v1811 = vunpack.c.l.b16 %v127
    %v1812 = vunpack.c.l.b16 %v128
    %v1813 = vunpack.c.l.b16 %v129
    %v1814 = vunpack.c.l.b16 %v130
    %v1815 = vunpack.c.l.b16 %v131
    %v1816 = vunpack.c.l.b16 %v132
    %v1817 = vunpack.c.l.b16 %v133
    %v1818 = vunpack.c.l.b16 %v134
    %v1819 = vunpack.c.l.b16 %v135
    %v1820 = vunpack.c.l.b16 %v136
    %v1821 = vunpack.c.l.b16 %v137
    %v1822 = vunpack.c.l.b16 %v138
    %v1823 = vunpack.c.l.b16 %v139
    %v1824 = vunpack.c.l.b16 %v140
    %v1825 = vunpack.c.l.b16 %v141
    %v1826 = vunpack.c.l.b16 %v142
    %v1827 = vunpack.c.l.b16 %v143
    %v1828 = vunpack.c.l.b16 %v144
    %v1829 = vunpack.c.l.b16 %v145
    %v1830 = vunpack.c.l.b16 %v146
    %v1831 = vunpack.c.l.b16 %v147
    %v1832 = vunpack.c.l.b16 %v148
    %v1833 = vunpack.c.l.b16 %v149
    %v1834 = vunpack.c.l.b16 %v150
    %v1835 = vunpack.c.l.b16 %v151
    %v1836 = vunpack.c.l.b16 %v152
    %v1837 = vunpack.c.l.b16 %v153
    %v1838 = vunpack.c.l.b16 %v154
    %v1839 = vunpack.c.l.b16 %v155
    %v1840 = vunpack.c.l.b16 %v156
    %v1841 = vunpack.c.l.b16 %v157
    %v1842 = vunpack.c.l.b16 %v158
    %v1843 = vunpack.c.l.b16 %v159
    %v1844 = vunpack.c.l.b16 %v160
    %v1845 = vunpack.c.l.b16 %v161
    %v1846 = vunpack.c.l.b16 %v162
    %v1847 = vunpack.c.l.b16 %v163
    %v1848 = vunpack.c.l.b16 %v164
    %v1849 = vunpack.c.l.b16 %v165
    %v1850 = vunpack.c.l.b16 %v166
    %v1851 = vunpack.c.l.b16 %v167
    %v1852 = vunpack.c.l.b16 %v168
    %v1853 = vunpack.c.l.b16 %v169
    %v1854 = vunpack.c.l.b16 %v170
    %v1855 = vunpack.c.l.b16 %v171
    %v1856 = vunpack.c.l.b16 %v172
    %v1857 = vunpack.c.l.b16 %v173
    %v1858 = vunpack.c.l.b16 %v174
    %v1859 = vunpack.c.l.b16 %v175
    %v1860 = vunpack.c.l.b16 %v176
    %v1861 = vunpack.c.l.b16 %v177
    %v1862 = vunpack.c.l.b16 %v178
    %v1863 = vunpack.c.l.b16 %v179
    %v1864 = vunpack.c.l.b16 %v180
    %v1865 = vunpack.c.l.b16 %v181
    %v1866 = vunpack.c.l.b16 %v182
    %v1867 = vunpack.c.l.b16 %v183
    %v1868 = vunpack.c.l.b16 %v184
    %v1869 = vunpack.c.l.b16 %v185
    %v1870 = vunpack.c.l.b16 %v186
    %v1871 = vunpack.c.l.b16 %v187
    %v1872 = vunpack.c.l.b16 %v188
    %v1873 = vunpack.c.l.b16 %v189
    %v1874 = vunpack.c.l.b16 %v190
    %v1875 = vunpack.c.l.b16 %v191
    %v1876 = vunpack.c.l.b16 %v192
    %v1877 = vunpack.c.l.b16 %v193
    %v1878 = vunpack.c.l.b16 %v194
    %v1879 = vunpack.c.l.b16 %v195
    %v1880 = vunpack.c.l.b16 %v196
    %v1881 = vunpack.c.l.b16 %v197
    %v1882 = vunpack.c.l.b16 %v198
    %v1883 = vunpack.c.l.b16 %v199
    %v1884 = vunpack.c.l.b16 %v200
    %v1885 = vunpack.c.l.b16 %v201
    %v1886 = vunpack.c.l.b16 %v202
    %v1887 = vunpack.c.l.b16 %v203
    %v1888 = vunpack.c.l.b16 %v204
    %v1889 = vunpack.c.l.b16 %v205
    %v1890 = vunpack.c.l.b16 %v206
    %v1891 = vunpack.c.l.b16 %v207
    %v1892 = vunpack.c.l.b16 %v208
    %v1893 = vunpack.c.l.b16 %v209
    %v1894 = vunpack.c.l.b16 %v210
    %v1895 = vunpack.c.l.b16 %v211
    %v1896 = vunpack.c.l.b16 %v212
    %v1897 = vunpack.c.l.b16 %v213
    %v1898 = vunpack.c.l.b16 %v214
    %v1899 = vunpack.c.l.b16 %v215
    %v1900 = vunpack.c.l.b16 %v216
    %v1901 = vunpack.c.l.b16 %v217
    %v1902 = vunpack.c.l.b16 %v218
    %v1903 = vunpack.c.l.b16 %v219
    %v1904 = vunpack.c.l.b16 %v220
    %v1905 = vunpack.c.l.b16 %v221
    %v1906 = vunpack.c.l.b16 %v222
    %v1907 = vunpack.c.l.b16 %v223
    %v1908 = vunpack.c.l.b16 %v224
    %v1909 = vunpack.c.l.b16 %v225
    %v1910 = vunpack.c.l.b16 %v226
    %v1911 = vunpack.c.l.b16 %v227
    %v1912 = vunpack.c.l.b16 %v228
    %v1913 = vunpack.c.l.b16 %v229
    %v1914 = vunpack.c.l.b16 %v230
    %v1915 = vunpack.c.l.b16 %v231
    %v1916 = vunpack.c.l.b16 %v232
    %v1917 = vunpack.c.l.b16 %v233
    %v1918 = vunpack.c.l.b16 %v234
    %v1919 = vunpack.c.l.b16 %v235
    %v1920 = vunpack.c.l.b16 %v236
    %v1921 = vunpack.c.l.b16 %v237
    %v1922 = vunpack.c.l.b16 %v238
    %v1923 = vunpack.c.l.b16 %v239
    %v1924 = vunpack.c.l.b16 %v240
    %v1925 = vunpack.c.l.b16 %v241
    %v1926 = vunpack.c.l.b16 %v242
    %v1927 = vunpack.c.l.b16 %v243
    %v1928 = vunpack.c.l.b16 %v244
    %v1929 = vunpack.c.l.b16 %v245
    %v1930 = vunpack.c.l.b16 %v246
    %v1931 = vunpack.c.l.b16 %v247
    %v1932 = vunpack.c.l.b16 %v248
    %v1933 = vunpack.c.l.b16 %v249
    %v1934 = vunpack.c.l.b16 %v250
    %v1935 = vunpack.c.l.b16 %v251
    %v1936 = vunpack.c.l.b16 %v252
    %v1937 = vunpack.c.l.b16 %v253
    %v1938 = vunpack.c.l.b16 %v254
    %v1939 = vunpack.c.l.b16 %v255
    %v1940 = vunpack.c.l.b16 %v256
    %v1941 = vunpack.c.l.b16 %v257
    %v1942 = vunpack.c.l.b16 %v258
    %v1943 = vunpack.c.l.b16 %v259
    %v1944 = vunpack.c.l.b16 %v260
    %v1945 = vunpack.c.l.b16 %v261
    %v1946 = vunpack.c.l.b16 %v262
    %v1947 = vunpack.c.l.b16 %v263
    %v1948 = vunpack.c.l.b16 %v264
    %v1949 = vunpack.c.l.b16 %v265
    %v1950 = vunpack.c.l.b16 %v266
    %v1951 = vunpack.c.l.b16 %v267
    %v1952 = vunpack.c.l.b16 %v268
    %v1953 = vunpack.c.l.b16 %v269
    %v1954 = vunpack.c.l.b16 %v270
    %v1955 = vunpack.c.l.b16 %v271
    %v1956 = vunpack.c.l.b16 %v272
    %v1957 = vunpack.c.l.b16 %v273
    %v1958 = vunpack.c.l.b16 %v274
    %v1959 = vunpack.c.l.b16 %v275
    %v1960 = vunpack.c.l.b16 %v276
    %v1961 = vunpack.c.l.b16 %v277
    %v1962 = vunpack.c.l.b16 %v278
    %v1963 = vunpack.c.l.b16 %v279
    %v1964 = vunpack.c.l.b16 %v280
    %v1965 = vunpack.c.l.b16 %v281
    %v1966 = vunpack.c.l.b16 %v282
    %v1967 = vunpack.c.l.b16 %v283
    %v1968 = vunpack.c.l.b16 %v284
    %v1969 = vunpack.c.l.b16 %v285
    %v1970 = vunpack.c.l.b16 %v286
    %v1971 = vunpack.c.l.b16 %v287
    %v1972 = vunpack.c.l.b16 %v288
    %v1973 = vunpack.c.l.b16 %v289
    %v1974 = vunpack.c.l.b16 %v290
    %v1975 = vunpack.c.l.b16 %v291
    %v1976 = vunpack.c.l.b16 %v292
    %v1977 = vunpack.c.l.b16 %v293
    %v1978 = vunpack.c.l.b16 %v294
    %v1979 = vunpack.c.l.b16 %v295
    %v1980 = vunpack.c.l.b16 %v296
    %v1981 = vunpack.c.l.b16 %v297
    %v1982 = vunpack.c.l.b16 %v298
    %v1983 = vunpack.c.l.b16 %v299
    %v1984 = vunpack.c.l.b16 %v300
    %v1985 = vunpack.c.l.b16 %v301
    %v1986 = vunpack.c.l.b16 %v302
    %v1987 = vunpack.c.l.b16 %v303
    %v1988 = vunpack.c.l.b16 %v304
    %v1989 = vunpack.c.l.b16 %v305
    %v1990 = vunpack.c.l.b16 %v306
    %v1991 = vunpack.c.l.b16 %v307
    %v1992 = vunpack.c.l.b16 %v308
    %v1993 = vunpack.c.l.b16 %v309
    %v1994 = vunpack.c.l.b16 %v310
    %v1995 = vunpack.c.l.b16 %v311
    %v1996 = vunpack.c.l.b16 %v312
    %v1997 = vunpack.c.l.b16 %v313
    %v1998 = vunpack.c.l.b16 %v314
    %v1999 = vunpack.c.l.b16 %v315
    %v2000 = vunpack.c.l.b16 %v316
    %v2001 = vunpack.c.l.b16 %v317
    %v2002 = vunpack.c.l.b16 %v318
    %v2003 = vunpack.c.l.b16 %v319
    %v2004 = vunpack.c.l.b16 %v320
    %v2005 = vunpack.c.l.b16 %v321
    %v2006 = vunpack.c.l.b16 %v322
    %v2007 = vunpack.c.l.b16 %v323
    %v2008 = vunpack.c.l.b16 %v324
    %v2009 = vunpack.c.l.b16 %v325
    %v2010 = vunpack.c.l.b16 %v326
    %v2011 = vunpack.c.l.b16 %v327
    %v2012 = vunpack.c.l.b16 %v328
    %v2013 = vunpack.c.l.b16 %v329
    %v2014 = vunpack.c.l.b16 %v330
    %v2015 = vunpack.c.l.b16 %v331
    %v2016 = vunpack.c.l.b16 %v332
    %v2017 = vunpack.c.l.b16 %v333
    %v2018 = vunpack.c.l.b16 %v334
    %v2019 = vunpack.c.l.b16 %v335
    %v2020 = vunpack.c.l.b16 %v336
    %v2021 = vunpack.c.l.b16 %v337
    %v2022 = vunpack.c.l.b16 %v338
    %v2023 = vunpack.c.l.b16 %v339
    %v2024 = vunpack.c.l.b16 %v340
    %v2025 = vunpack.c.l.b16 %v341
    %v2026 = vunpack.c.l.b16 %v342
    %v2027 = vunpack.c.l.b16 %v343
    %v2028 = vunpack.c.l.b16 %v344
    %v2029 = vunpack.c.l.b16 %v345
    %v2030 = vunpack.c.l.b16 %v346
    %v2031 = vunpack.c.l.b16 %v347
    %v2032 = vunpack.c.l.b16 %v348
    %v2033 = vunpack.c.l.b16 %v349
    %v2034 = vunpack.c.l.b16 %v350
    %v2035 = vunpack.c.l.b16 %v351
    %v2036 = vunpack.c.l.b16 %v352
    %v2037 = vunpack.c.l.b16 %v353
    %v2038 = vunpack.c.l.b16 %v354
    %v2039 = vunpack.c.l.b16 %v355
    %v2040 = vunpack.c.l.b16 %v356
    %v2041 = vunpack.c.l.b16 %v357
    %v2042 = vunpack.c.l.b16 %v358
    %v2043 = vunpack.c.l.b16 %v359
    %v2044 = vunpack.c.l.b16 %v360
    %v2045 = vunpack.c.l.b16 %v361
    %v2046 = vunpack.c.l.b16 %v362
    %v2047 = vunpack.c.l.b16 %v363
    %v2048 = vunpack.c.l.b16 %v364
    %v2049 = vunpack.c.l.b16 %v365
    %v2050 = vunpack.c.l.b16 %v366
    %v2051 = vunpack.c.l.b16 %v367
    %v2052 = vunpack.c.l.b16 %v368
    %v2053 = vunpack.c.l.b16 %v369
    %v2054 = vunpack.c.l.b16 %v370
    %v2055 = vunpack.c.l.b16 %v371
    %v2056 = vunpack.c.l.b16 %v372
    %v2057 = vunpack.c.l.b16 %v373
    %v2058 = vunpack.c.l.b16 %v374
    %v2059 = vunpack.c.l.b16 %v375
    %v2060 = vunpack.c.l.b16 %v376
    %v2061 = vunpack.c.l.b16 %v377
    %v2062 = vunpack.c.l.b16 %v378
    %v2063 = vunpack.c.l.b16 %v379
    %v2064 = vunpack.c.l.b16 %v380
    %v2065 = vunpack.c.l.b16 %v381
    %v2066 = vunpack.c.l.b16 %v382
    %v2067 = vunpack.c.l.b16 %v383
    %v2068 = vunpack.c.l.b16 %v384
    %v2069 = vunpack.c.l.b16 %v385
    %v2070 = vunpack.c.l.b16 %v386
    %v2071 = vunpack.c.l.b16 %v387
    %v2072 = vunpack.c.l.b16 %v388
    %v2073 = vunpack.c.l.b16 %v389
    %v2074 = vunpack.c.l.b16 %v390
    %v2075 = vunpack.c.l.b16 %v391
    %v2076 = vunpack.c.l.b16 %v392
    %v2077 = vunpack.c.l.b16 %v393
    %v2078 = vunpack.c.l.b16 %v394
    %v2079 = vunpack.c.l.b16 %v395
    %v2080 = vunpack.c.l.b16 %v396
    %v2081 = vunpack.c.l.b16 %v397
    %v2082 = vunpack.c.l.b16 %v398
    %v2083 = vunpack.c.l.b16 %v399
    %v2084 = vunpack.c.l.b16 %v400
    %v2085 = vunpack.c.l.b16 %v401
    %v2086 = vunpack.c.l.b16 %v402
    %v2087 = vunpack.c.l.b16 %v403
    %v2088 = vunpack.c.l.b16 %v404
    %v2089 = vunpack.c.l.b16 %v405
    %v2090 = vunpack.c.l.b16 %v406
    %v2091 = vunpack.c.l.b16 %v407
    %v2092 = vunpack.c.l.b16 %v408
    %v2093 = vunpack.c.l.b16 %v409
    %v2094 = vunpack.c.l.b16 %v410
    %v2095 = vunpack.c.l.b16 %v411
    %v2096 = vunpack.c.l.b16 %v412
    %v2097 = vunpack.c.l.b16 %v413
    %v2098 = vunpack.c.l.b16 %v414
    %v2099 = vunpack.c.l.b16 %v415
    %v2100 = vunpack.c.l.b16 %v416
    %v2101 = vunpack.c.l.b16 %v417
    %v2102 = vunpack.c.l.b16 %v418
    %v2103 = vunpack.c.l.b16 %v419
    %v2104 = vunpack.c.l.b16 %v420
    %v2105 = vunpack.c.l.b16 %v421
    %v2106 = vunpack.c.l.b16 %v422
    %v2107 = vunpack.c.l.b16 %v423
    %v2108 = vunpack.c.l.b16 %v424
    %v2109 = vunpack.c.l.b16 %v425
    %v2110 = vunpack.c.l.b16 %v426
    %v2111 = vunpack.c.l.b16 %v427
    %v2112 = vunpack.c.l.b16 %v428
    %v2113 = vunpack.c.l.b16 %v429
    %v2114 = vunpack.c.l.b16 %v430
    %v2115 = vunpack.c.l.b16 %v431
    %v2116 = vunpack.c.l.b16 %v432
    %v2117 = vunpack.c.l.b16 %v433
    %v2118 = vunpack.c.l.b16 %v434
    %v2119 = vunpack.c.l.b16 %v435
    %v2120 = vunpack.c.l.b16 %v436
    %v2121 = vunpack.c.l.b16 %v437
    %v2122 = vunpack.c.l.b16 %v438
    %v2123 = vunpack.c.l.b16 %v439
    %v2124 = vunpack.c.l.b16 %v440
    %v2125 = vunpack.c.l.b16 %v441
    %v2126 = vunpack.c.l.b16 %v442
    %v2127 = vunpack.c.l.b16 %v443
    %v2128 = vunpack.c.l.b16 %v444
    %v2129 = vunpack.c.l.b16 %v445
    %v2130 = vunpack.c.l.b16 %v446
    %v2131 = vunpack.c.l.b16 %v447
    %v2132 = vunpack.c.l.b16 %v448
    %v2133 = vunpack.c.l.b16 %v449
    %v2134 = vunpack.c.l.b16 %v450
    %v2135 = vunpack.c.l.b16 %v451
    %v2136 = vunpack.c.l.b16 %v452
    %v2137 = vunpack.c.l.b16 %v453
    %v2138 = vunpack.c.l.b16 %v454
    %v2139 = vunpack.c.l.b16 %v455
    %v2140 = vunpack.c.l.b16 %v456
    %v2141 = vunpack.c.l.b16 %v457
    %v2142 = vunpack.c.l.b16 %v458
    %v2143 = vunpack.c.l.b16 %v459
    %v2144 = vunpack.c.l.b16 %v460
    %v2145 = vunpack.c.l.b16 %v461
    %v2146 = vunpack.c.l.b16 %v462
    %v2147 = vunpack.c.l.b16 %v463
    %v2148 = vunpack.c.l.b16 %v464
    %v2149 = vunpack.c.l.b16 %v465
    %v2150 = vunpack.c.l.b16 %v466
    %v2151 = vunpack.c.l.b16 %v467
    %v2152 = vunpack.c.l.b16 %v468
    %v2153 = vunpack.c.l.b16 %v469
    %v2154 = vunpack.c.l.b16 %v470
    %v2155 = vunpack.c.l.b16 %v471
    %v2156 = vunpack.c.l.b16 %v472
    %v2157 = vunpack.c.l.b16 %v473
    %v2158 = vunpack.c.l.b16 %v474
    %v2159 = vunpack.c.l.b16 %v475
    %v2160 = vunpack.c.l.b16 %v476
    %v2161 = vunpack.c.l.b16 %v477
    %v2162 = vunpack.c.l.b16 %v478
    %v2163 = vunpack.c.l.b16 %v479
    %v2164 = vunpack.c.l.b16 %v480
    %v2165 = vunpack.c.l.b16 %v481
    %v2166 = vunpack.c.l.b16 %v482
    %v2167 = vunpack.c.l.b16 %v483
    %v2168 = vunpack.c.l.b16 %v484
    %v2169 = vunpack.c.l.b16 %v485
    %v2170 = vunpack.c.l.b16 %v486
    %v2171 = vunpack.c.l.b16 %v487
    %v2172 = vunpack.c.l.b16 %v488
    %v2173 = vunpack.c.l.b16 %v489
    %v2174 = vunpack.c.l.b16 %v490
    %v2175 = vunpack.c.l.b16 %v491
    %v2176 = vunpack.c.l.b16 %v492
    %v2177 = vunpack.c.l.b16 %v493
    %v2178 = vunpack.c.l.b16 %v494
    %v2179 = vunpack.c.l.b16 %v495
    %v2180 = vunpack.c.l.b16 %v496
    %v2181 = vunpack.c.l.b16 %v497
    %v2182 = vunpack.c.l.b16 %v498
    %v2183 = vunpack.c.l.b16 %v499
    %v2184 = vunpack.c.l.b16 %v500
    %v2185 = vunpack.c.l.b16 %v501
    %v2186 = vunpack.c.l.b16 %v502
    %v2187 = vunpack.c.l.b16 %v503
    %v2188 = vunpack.c.l.b16 %v504
    %v2189 = vunpack.c.l.b16 %v505
    %v2190 = vunpack.c.l.b16 %v506
    %v2191 = vunpack.c.l.b16 %v507
    %v2192 = vunpack.c.l.b16 %v508
    %v2193 = vunpack.c.l.b16 %v509
    %v2194 = vunpack.c.l.b16 %v510
    %v2195 = vunpack.c.l.b16 %v511
    %v2196 = vunpack.c.l.b16 %v512
    %v2197 = vunpack.c.l.b16 %v513
    %v2198 = vunpack.c.l.b16 %v514
    %v2199 = vunpack.c.l.b16 %v515
    %v2200 = vunpack.c.l.b16 %v516
    %v2201 = vunpack.c.l.b16 %v517
    %v2202 = vunpack.c.l.b16 %v518
    %v2203 = vunpack.c.l.b16 %v519
    %v2204 = vunpack.c.l.b16 %v520
    %v2205 = vunpack.c.l.b16 %v521
    %v2206 = vunpack.c.l.b16 %v522
    %v2207 = vunpack.c.l.b16 %v523
    %v2208 = vunpack.c.l.b16 %v524
    %v2209 = vunpack.c.l.b16 %v525
    %v2210 = vunpack.c.l.b16 %v526
    %v2211 = vunpack.c.l.b16 %v527
    %v2212 = vunpack.c.l.b16 %v528
    %v2213 = vunpack.c.l.b16 %v529
    %v2214 = vunpack.c.l.b16 %v530
    %v2215 = vunpack.c.l.b16 %v531
    %v2216 = vunpack.c.l.b16 %v532
    %v2217 = vunpack.c.l.b16 %v533
    %v2218 = vunpack.c.l.b16 %v534
    %v2219 = vunpack.c.l.b16 %v535
    %v2220 = vunpack.c.l.b16 %v536
    %v2221 = vunpack.c.l.b16 %v537
    %v2222 = vunpack.c.l.b16 %v538
    %v2223 = vunpack.c.l.b16 %v539
    %v2224 = vunpack.c.l.b16 %v540
    %v2225 = vunpack.c.l.b16 %v541
    %v2226 = vunpack.c.l.b16 %v542
    %v2227 = vunpack.c.l.b16 %v543
    %v2228 = vunpack.c.l.b16 %v544
    %v2229 = vunpack.c.l.b16 %v545
    %v2230 = vunpack.c.l.b16 %v546
    %v2231 = vunpack.c.l.b16 %v547
    %v2232 = vunpack.c.l.b16 %v548
    %v2233 = vunpack.c.l.b16 %v549
    %v2234 = vunpack.c.l.b16 %v550
    %v2235 = vunpack.c.l.b16 %v551
    %v2236 = vunpack.c.l.b16 %v552
    %v2237 = vunpack.c.l.b16 %v553
    %v2238 = vunpack.c.l.b16 %v554
    %v2239 = vunpack.c.l.b16 %v555
    %v2240 = vunpack.c.l.b16 %v556
    %v2241 = vunpack.c.l.b16 %v557
    %v2242 = vunpack.c.l.b16 %v558
    %v2243 = vunpack.c.l.b16 %v559
    %v2244 = vunpack.c.l.b16 %v560
    %v2245 = vunpack.c.l.b16 %v561
    %v2246 = vunpack.c.l.b16 %v562
    %v2247 = vunpack.c.l.b16 %v563
    %v2248 = vunpack.c.l.b16 %v564
    %v2249 = vunpack.c.l.b16 %v565
    %v2250 = vunpack.c.l.b16 %v566
    %v2251 = vunpack.c.l.b16 %v567
    %v2252 = vunpack.c.l.b16 %v568
    %v2253 = vunpack.c.l.b16 %v569
    %v2254 = vunpack.c.l.b16 %v570
    %v2255 = vunpack.c.l.b16 %v571
    %v2256 = vunpack.c.l.b16 %v572
    %v2257 = vunpack.c.l.b16 %v573
    %v2258 = vunpack.c.l.b16 %v574
    %v2259 = vunpack.c.l.b16 %v575
    %v2260 = vunpack.c.l.b16 %v576
    %v2261 = vunpack.c.l.b16 %v577
    %v2262 = vunpack.c.l.b16 %v578
    %v2263 = vunpack.c.l.b16 %v579
    %v2264 = vunpack.c.l.b16 %v580
    %v2265 = vunpack.c.l.b16 %v581
    %v2266 = vunpack.c.l.b16 %v582
    %v2267 = vunpack.c.l.b16 %v583
    %v2268 = vunpack.c.l.b16 %v584
    %v2269 = vunpack.c.l.b16 %v585
    %v2270 = vunpack.c.l.b16 %v586
    %v2271 = vunpack.c.l.b16 %v587
    %v2272 = vunpack.c.l.b16 %v588
    %v2273 = vunpack.c.l.b16 %v589
    %v2274 = vunpack.c.l.b16 %v590
    %v2275 = vunpack.c.l.b16 %v591
    %v2276 = vunpack.c.l.b16 %v592
    %v2277 = vunpack.c.l.b16 %v593
    %v2278 = vunpack.c.l.b16 %v594
    %v2279 = vunpack.c.l.b16 %v595
    %v2280 = vunpack.c.l.b16 %v596
    %v2281 = vunpack.c.l.b16 %v597
    %v2282 = vunpack.c.l.b16 %v598
    %v2283 = vunpack.c.l.b16 %v599
    %v2284 = vunpack.c.l.b16 %v600
    %v2285 = vunpack.c.l.b16 %v601
    %v2286 = vunpack.c.l.b16 %v602
    %v2287 = vunpack.c.l.b16 %v603
    %v2288 = vunpack.c.l.b16 %v604
    %v2289 = vunpack.c.l.b16 %v605
    %v2290 = vunpack.c.l.b16 %v606
    %v2291 = vunpack.c.l.b16 %v607
    %v2292 = vunpack.c.l.b16 %v608
    %v2293 = vunpack.c.l.b16 %v609
    %v2294 = vunpack.c.l.b16 %v610
    %v2295 = vunpack.c.l.b16 %v611
    %v2296 = vunpack.c.l.b16 %v612
    %v2297 = vunpack.c.l.b16 %v613
    %v2298 = vunpack.c.l.b16 %v614
    %v2299 = vunpack.c.l.b16 %v615
    %v2300 = vunpack.c.l.b16 %v616
    %v2301 = vunpack.c.l.b16 %v617
    %v2302 = vunpack.c.l.b16 %v618
    %v2303 = vunpack.c.l.b16 %v619
    %v2304 = vunpack.c.l.b16 %v620
    %v2305 = vunpack.c.l.b16 %v621
    %v2306 = vunpack.c.l.b16 %v622
    %v2307 = vunpack.c.l.b16 %v623
    %v2308 = vunpack.c.l.b16 %v624
    %v2309 = vunpack.c.l.b16 %v625
    %v2310 = vunpack.c.l.b16 %v626
    %v2311 = vunpack.c.l.b16 %v627
    %v2312 = vunpack.c.l.b16 %v628
    %v2313 = vunpack.c.l.b16 %v629
    %v2314 = vunpack.c.l.b16 %v630
    %v2315 = vunpack.c.l.b16 %v631
    %v2316 = vunpack.c.l.b16 %v632
    %v2317 = vunpack.c.l.b16 %v633
    %v2318 = vunpack.c.l.b16 %v634
    %v2319 = vunpack.c.l.b16 %v635
    %v2320 = vunpack.c.l.b16 %v636
    %v2321 = vunpack.c.l.b16 %v637
    %v2322 = vunpack.c.l.b16 %v638
    %v2323 = vunpack.c.l.b16 %v639
    %v2324 = vunpack.c.l.b16 %v640
    %v2325 = vunpack.c.l.b16 %v641
    %v2326 = vunpack.c.l.b16 %v642
    %v2327 = vunpack.c.l.b16 %v643
    %v2328 = vunpack.c.l.b16 %v644
    %v2329 = vunpack.c.l.b16 %v645
    %v2330 = vunpack.c.l.b16 %v646
    %v2331 = vunpack.c.l.b16 %v647
    %v2332 = vunpack.c.l.b16 %v648
    %v2333 = vunpack.c.l.b16 %v649
    %v2334 = vunpack.c.l.b16 %v650
    %v2335 = vunpack.c.l.b16 %v651
    %v2336 = vunpack.c.l.b16 %v652
    %v2337 = vunpack.c.l.b16 %v653
    %v2338 = vunpack.c.l.b16 %v654
    %v2339 = vunpack.c.l.b16 %v655
    %v2340 = vunpack.c.l.b16 %v656
    %v2341 = vunpack.c.l.b16 %v657
    %v2342 = vunpack.c.l.b16 %v658
    %v2343 = vunpack.c.l.b16 %v659
    %v2344 = vunpack.c.l.b16 %v660
    %v2345 = vunpack.c.l.b16 %v661
    %v2346 = vunpack.c.l.b16 %v662
    %v2347 = vunpack.c.l.b16 %v663
    %v2348 = vunpack.c.l.b16 %v664
    %v2349 = vunpack.c.l.b16 %v665
    %v2350 = vunpack.c.l.b16 %v666
    %v2351 = vunpack.c.l.b16 %v667
    %v2352 = vunpack.c.l.b16 %v668
    %v2353 = vunpack.c.l.b16 %v669
    %v2354 = vunpack.c.l.b16 %v670
    %v2355 = vunpack.c.l.b16 %v671
    %v2356 = vunpack.c.l.b16 %v672
    %v2357 = vunpack.c.l.b16 %v673
    %v2358 = vunpack.c.l.b16 %v674
    %v2359 = vunpack.c.l.b16 %v675
    %v2360 = vunpack.c.l.b16 %v676
    %v2361 = vunpack.c.l.b16 %v677
    %v2362 = vunpack.c.l.b16 %v678
    %v2363 = vunpack.c.l.b16 %v679
    %v2364 = vunpack.c.l.b16 %v680
    %v2365 = vunpack.c.l.b16 %v681
    %v2366 = vunpack.c.l.b16 %v682
    %v2367 = vunpack.c.l.b16 %v683
    %v2368 = vunpack.c.l.b16 %v684
    %v2369 = vunpack.c.l.b16 %v685
    %v2370 = vunpack.c.l.b16 %v686
    %v2371 = vunpack.c.l.b16 %v687
    %v2372 = vunpack.c.l.b16 %v688
    %v2373 = vunpack.c.l.b16 %v689
    %v2374 = vunpack.c.l.b16 %v690
    %v2375 = vunpack.c.l.b16 %v691
    %v2376 = vunpack.c.l.b16 %v692
    %v2377 = vunpack.c.l.b16 %v693
    %v2378 = vunpack.c.l.b16 %v694
    %v2379 = vunpack.c.l.b16 %v695
    %v2380 = vunpack.c.l.b16 %v696
    %v2381 = vunpack.c.l.b16 %v697
    %v2382 = vunpack.c.l.b16 %v698
    %v2383 = vunpack.c.l.b16 %v699
    %v2384 = vunpack.c.l.b16 %v700
    %v2385 = vunpack.c.l.b16 %v701
    %v2386 = vunpack.c.l.b16 %v702
    %v2387 = vunpack.c.l.b16 %v703
    %v2388 = vunpack.c.l.b16 %v704
    %v2389 = vunpack.c.l.b16 %v705
    %v2390 = vunpack.c.l.b16 %v706
    %v2391 = vunpack.c.l.b16 %v707
    %v2392 = vunpack.c.l.b16 %v708
    %v2393 = vunpack.c.l.b16 %v709
    %v2394 = vunpack.c.l.b16 %v710
    %v2395 = vunpack.c.l.b16 %v711
    %v2396 = vunpack.c.l.b16 %v712
    %v2397 = vunpack.c.l.b16 %v713
    %v2398 = vunpack.c.l.b16 %v714
    %v2399 = vunpack.c.l.b16 %v715
    %v2400 = vunpack.c.l.b16 %v716
    %v2401 = vunpack.c.l.b16 %v717
    %v2402 = vunpack.c.l.b16 %v718
    %v2403 = vunpack.c.l.b16 %v719
    %v2404 = vunpack.c.l.b16 %v720
    %v2405 = vunpack.c.l.b16 %v721
    %v2406 = vunpack.c.l.b16 %v722
    %v2407 = vunpack.c.l.b16 %v723
    %v2408 = vunpack.c.l.b16 %v724
    %v2409 = vunpack.c.l.b16 %v725
    %v2410 = vunpack.c.l.b16 %v726
    %v2411 = vunpack.c.l.b16 %v727
    %v2412 = vunpack.c.l.b16 %v728
    %v2413 = vunpack.c.l.b16 %v729
    %v2414 = vunpack.c.l.b16 %v730
    %v2415 = vunpack.c.l.b16 %v731
    %v2416 = vunpack.c.l.b16 %v732
    %v2417 = vunpack.c.l.b16 %v733
    %v2418 = vunpack.c.l.b16 %v734
    %v2419 = vunpack.c.l.b16 %v735
    %v2420 = vunpack.c.l.b16 %v736
    %v2421 = vunpack.c.l.b16 %v737
    %v2422 = vunpack.c.l.b16 %v738
    %v2423 = vunpack.c.l.b16 %v739
    %v2424 = vunpack.c.l.b16 %v740
    %v2425 = vunpack.c.l.b16 %v741
    %v2426 = vunpack.c.l.b16 %v742
    %v2427 = vunpack.c.l.b16 %v743
    %v2428 = vunpack.c.l.b16 %v744
    %v2429 = vunpack.c.l.b16 %v745
    %v2430 = vunpack.c.l.b16 %v746
    %v2431 = vunpack.c.l.b16 %v747
    %v2432 = vunpack.c.l.b16 %v748
    %v2433 = vunpack.c.l.b16 %v749
    %v2434 = vunpack.c.l.b16 %v750
    %v2435 = vunpack.c.l.b16 %v751
    %v2436 = vunpack.c.l.b16 %v752
    %v2437 = vunpack.c.l.b16 %v753
    %v2438 = vunpack.c.l.b16 %v754
    %v2439 = vunpack.c.l.b16 %v755
    %v2440 = vunpack.c.l.b16 %v756
    %v2441 = vunpack.c.l.b16 %v757
    %v2442 = vunpack.c.l.b16 %v758
    %v2443 = vunpack.c.l.b16 %v759
    %v2444 = vunpack.c.l.b16 %v760
    %v2445 = vunpack.c.l.b16 %v761
    %v2446 = vunpack.c.l.b16 %v762
    %v2447 = vunpack.c.l.b16 %v763
    %v2448 = vunpack.c.l.b16 %v764
    %v2449 = vunpack.c.l.b16 %v765
    %v2450 = vunpack.c.l.b16 %v766
    %v2451 = vunpack.c.l.b16 %v767
    %v2452 = vunpack.c.l.b16 %v768
    %v2453 = vunpack.c.l.b16 %v769
    %v2454 = vunpack.c.l.b16 %v770
    %v2455 = vunpack.c.l.b16 %v771
    %v2456 = vunpack.c.l.b16 %v772
    %v2457 = vunpack.c.l.b16 %v773
    %v2458 = vunpack.c.l.b16 %v774
    %v2459 = vunpack.c.l.b16 %v775
    %v2460 = vunpack.c.l.b16 %v776
    %v2461 = vunpack.c.l.b16 %v777
    %v2462 = vunpack.c.l.b16 %v778
    %v2463 = vunpack.c.l.b16 %v779
    %v2464 = vunpack.c.l.b16 %v780
    %v2465 = vunpack.c.l.b16 %v781
    %v2466 = vunpack.c.l.b16 %v782
    %v2467 = vunpack.c.l.b16 %v783
    %v2468 = vunpack.c.l.b16 %v784
    %v2469 = vunpack.c.l.b16 %v785
    %v2470 = vunpack.c.l.b16 %v786
    %v2471 = vunpack.c.l.b16 %v787
    %v2472 = vunpack.c.l.b16 %v788
    %v2473 = vunpack.c.l.b16 %v789
    %v2474 = vunpack.c.l.b16 %v790
    %v2475 = vunpack.c.l.b16 %v791
    %v2476 = vunpack.c.l.b16 %v792
    %v2477 = vunpack.c.l.b16 %v793
    %v2478 = vunpack.c.l.b16 %v794
    %v2479 = vunpack.c.l.b16 %v795
    %v2480 = vunpack.c.l.b16 %v796
    %v2481 = vunpack.c.l.b16 %v797
    %v2482 = vunpack.c.l.b16 %v798
    %v2483 = vunpack.c.l.b16 %v799
    %v2484 = vunpack.c.l.b16 %v800
    %v2485 = vunpack.c.l.b16 %v801
    %v2486 = vunpack.c.l.b16 %v802
    %v2487 = vunpack.c.l.b16 %v803
    %v2488 = vunpack.c.l.b16 %v804
    %v2489 = vunpack.c.l.b16 %v805
    %v2490 = vpack.c.b16 %v1707, %v1706
    %v2491 = vpack.c.b16 %v1709, %v1708
    %v2492 = vpack.c.b16 %v1711, %v1710
    %v2493 = vpack.c.b16 %v1713, %v1712
    %v2494 = vpack.c.b16 %v1715, %v1714
    %v2495 = vpack.c.b16 %v1717, %v1716
    %v2496 = vpack.c.b16 %v1719, %v1718
    %v2497 = vpack.c.b16 %v1721, %v1720
    %v2498 = vpack.c.b16 %v1723, %v1722
    %v2499 = vpack.c.b16 %v1725, %v1724
    %v2500 = vpack.c.b16 %v1727, %v1726
    %v2501 = vpack.c.b16 %v1729, %v1728
    %v2502 = vpack.c.b16 %v1731, %v1730
    %v2503 = vpack.c.b16 %v1733, %v1732
    %v2504 = vpack.c.b16 %v1735, %v1734
    %v2505 = vpack.c.b16 %v1737, %v1736
    %v2506 = vpack.c.b16 %v1739, %v1738
    %v2507 = vpack.c.b16 %v1741, %v1740
    %v2508 = vpack.c.b16 %v1743, %v1742
    %v2509 = vpack.c.b16 %v1745, %v1744
    %v2510 = vpack.c.b16 %v1747, %v1746
    %v2511 = vpack.c.b16 %v1749, %v1748
    %v2512 = vpack.c.b16 %v1751, %v1750
    %v2513 = vpack.c.b16 %v1753, %v1752
    %v2514 = vpack.c.b16 %v1755, %v1754
    %v2515 = vpack.c.b16 %v1757, %v1756
    %v2516 = vpack.c.b16 %v1759, %v1758
    %v2517 = vpack.c.b16 %v1761, %v1760
    %v2518 = vpack.c.b16 %v1763, %v1762
    %v2519 = vpack.c.b16 %v1765, %v1764
    %v2520 = vpack.c.b16 %v1767, %v1766
    %v2521 = vpack.c.b16 %v1769, %v1768
    %v2522 = vpack.c.b16 %v1771, %v1770
    %v2523 = vpack.c.b16 %v1773, %v1772
    %v2524 = vpack.c.b16 %v1775, %v1774
    %v2525 = vpack.c.b16 %v1777, %v1776
    %v2526 = vpack.c.b16 %v1779, %v1778
    %v2527 = vpack.c.b16 %v1781, %v1780
    %v2528 = vpack.c.b16 %v1783, %v1782
    %v2529 = vpack.c.b16 %v1785, %v1784
    %v2530 = vpack.c.b16 %v1787, %v1786
    %v2531 = vpack.c.b16 %v1789, %v1788
    %v2532 = vpack.c.b16 %v1791, %v1790
    %v2533 = vpack.c.b16 %v1793, %v1792
    %v2534 = vpack.c.b16 %v1795, %v1794
    %v2535 = vpack.c.b16 %v1797, %v1796
    %v2536 = vpack.c.b16 %v1799, %v1798
    %v2537 = vpack.c.b16 %v1801, %v1800
    %v2538 = vpack.c.b16 %v1803, %v1802
    %v2539 = vpack.c.b16 %v1805, %v1804
    %v2540 = vpack.c.b16 %v1807, %v1806
    %v2541 = vpack.c.b16 %v1809, %v1808
    %v2542 = vpack.c.b16 %v1811, %v1810
    %v2543 = vpack.c.b16 %v1813, %v1812
    %v2544 = vpack.c.b16 %v1815, %v1814
    %v2545 = vpack.c.b16 %v1817, %v1816
    %v2546 = vpack.c.b16 %v1819, %v1818
    %v2547 = vpack.c.b16 %v1821, %v1820
    %v2548 = vpack.c.b16 %v1823, %v1822
    %v2549 = vpack.c.b16 %v1825, %v1824
    %v2550 = vpack.c.b16 %v1827, %v1826
    %v2551 = vpack.c.b16 %v1829, %v1828
    %v2552 = vpack.c.b16 %v1831, %v1830
    %v2553 = vpack.c.b16 %v1833, %v1832
    %v2554 = vpack.c.b16 %v1835, %v1834
    %v2555 = vpack.c.b16 %v1837, %v1836
    %v2556 = vpack.c.b16 %v1839, %v1838
    %v2557 = vpack.c.b16 %v1841, %v1840
    %v2558 = vpack.c.b16 %v1843, %v1842
    %v2559 = vpack.c.b16 %v1845, %v1844
    %v2560 = vpack.c.b16 %v1847, %v1846
    %v2561 = vpack.c.b16 %v1849, %v1848
    %v2562 = vpack.c.b16 %v1851, %v1850
    %v2563 = vpack.c.b16 %v1853, %v1852
    %v2564 = vpack.c.b16 %v1855, %v1854
    %v2565 = vpack.c.b16 %v1857, %v1856
    %v2566 = vpack.c.b16 %v1859, %v1858
    %v2567 = vpack.c.b16 %v1861, %v1860
    %v2568 = vpack.c.b16 %v1863, %v1862
    %v2569 = vpack.c.b16 %v1865, %v1864
    %v2570 = vpack.c.b16 %v1867, %v1866
    %v2571 = vpack.c.b16 %v1869, %v1868
    %v2572 = vpack.c.b16 %v1871, %v1870
    %v2573 = vpack.c.b16 %v1873, %v1872
    %v2574 = vpack.c.b16 %v1875, %v1874
    %v2575 = vpack.c.b16 %v1877, %v1876
    %v2576 = vpack.c.b16 %v1879, %v1878
    %v2577 = vpack.c.b16 %v1881, %v1880
    %v2578 = vpack.c.b16 %v1883, %v1882
    %v2579 = vpack.c.b16 %v1885, %v1884
    %v2580 = vpack.c.b16 %v1887, %v1886
    %v2581 = vpack.c.b16 %v1889, %v1888
    %v2582 = vpack.c.b16 %v1891, %v1890
    %v2583 = vpack.c.b16 %v1893, %v1892
    %v2584 = vpack.c.b16 %v1895, %v1894
    %v2585 = vpack.c.b16 %v1897, %v1896
    %v2586 = vpack.c.b16 %v1899, %v1898
    %v2587 = vpack.c.b16 %v1901, %v1900
    %v2588 = vpack.c.b16 %v1903, %v1902
    %v2589 = vpack.c.b16 %v1905, %v1904
    %v2590 = vpack.c.b16 %v1907, %v1906
    %v2591 = vpack.c.b16 %v1909, %v1908
    %v2592 = vpack.c.b16 %v1911, %v1910
    %v2593 = vpack.c.b16 %v1913, %v1912
    %v2594 = vpack.c.b16 %v1915, %v1914
    %v2595 = vpack.c.b16 %v1917, %v1916
    %v2596 = vpack.c.b16 %v1919, %v1918
    %v2597 = vpack.c.b16 %v1921, %v1920
    %v2598 = vpack.c.b16 %v1923, %v1922
    %v2599 = vpack.c.b16 %v1925, %v1924
    %v2600 = vpack.c.b16 %v1927, %v1926
    %v2601 = vpack.c.b16 %v1929, %v1928
    %v2602 = vpack.c.b16 %v1931, %v1930
    %v2603 = vpack.c.b16 %v1933, %v1932
    %v2604 = vpack.c.b16 %v1935, %v1934
    %v2605 = vpack.c.b16 %v1937, %v1936
    %v2606 = vpack.c.b16 %v1939, %v1938
    %v2607 = vpack.c.b16 %v1941, %v1940
    %v2608 = vpack.c.b16 %v1943, %v1942
    %v2609 = vpack.c.b16 %v1945, %v1944
    %v2610 = vpack.c.b16 %v1947, %v1946
    %v2611 = vpack.c.b16 %v1949, %v1948
    %v2612 = vpack.c.b16 %v1951, %v1950
    %v2613 = vpack.c.b16 %v1953, %v1952
    %v2614 = vpack.c.b16 %v1955, %v1954
    %v2615 = vpack.c.b16 %v1957, %v1956
    %v2616 = vpack.c.b16 %v1959, %v1958
    %v2617 = vpack.c.b16 %v1961, %v1960
    %v2618 = vpack.c.b16 %v1963, %v1962
    %v2619 = vpack.c.b16 %v1965, %v1964
    %v2620 = vpack.c.b16 %v1967, %v1966
    %v2621 = vpack.c.b16 %v1969, %v1968
    %v2622 = vpack.c.b16 %v1971, %v1970
    %v2623 = vpack.c.b16 %v1973, %v1972
    %v2624 = vpack.c.b16 %v1975, %v1974
    %v2625 = vpack.c.b16 %v1977, %v1976
    %v2626 = vpack.c.b16 %v1979, %v1978
    %v2627 = vpack.c.b16 %v1981, %v1980
    %v2628 = vpack.c.b16 %v1983, %v1982
    %v2629 = vpack.c.b16 %v1985, %v1984
    %v2630 = vpack.c.b16 %v1987, %v1986
    %v2631 = vpack.c.b16 %v1989, %v1988
    %v2632 = vpack.c.b16 %v1991, %v1990
    %v2633 = vpack.c.b16 %v1993, %v1992
    %v2634 = vpack.c.b16 %v1995, %v1994
    %v2635 = vpack.c.b16 %v1997, %v1996
    %v2636 = vpack.c.b16 %v1999, %v1998
    %v2637 = vpack.c.b16 %v2001, %v2000
    %v2638 = vpack.c.b16 %v2003, %v2002
    %v2639 = vpack.c.b16 %v2005, %v2004
    %v2640 = vpack.c.b16 %v2007, %v2006
    %v2641 = vpack.c.b16 %v2009, %v2008
    %v2642 = vpack.c.b16 %v2011, %v2010
    %v2643 = vpack.c.b16 %v2013, %v2012
    %v2644 = vpack.c.b16 %v2015, %v2014
    %v2645 = vpack.c.b16 %v2017, %v2016
    %v2646 = vpack.c.b16 %v2019, %v2018
    %v2647 = vpack.c.b16 %v2021, %v2020
    %v2648 = vpack.c.b16 %v2023, %v2022
    %v2649 = vpack.c.b16 %v2025, %v2024
    %v2650 = vpack.c.b16 %v2027, %v2026
    %v2651 = vpack.c.b16 %v2029, %v2028
    %v2652 = vpack.c.b16 %v2031, %v2030
    %v2653 = vpack.c.b16 %v2033, %v2032
    %v2654 = vpack.c.b16 %v2035, %v2034
    %v2655 = vpack.c.b16 %v2037, %v2036
    %v2656 = vpack.c.b16 %v2039, %v2038
    %v2657 = vpack.c.b16 %v2041, %v2040
    %v2658 = vpack.c.b16 %v2043, %v2042
    %v2659 = vpack.c.b16 %v2045, %v2044
    %v2660 = vpack.c.b16 %v2047, %v2046
    %v2661 = vpack.c.b16 %v2049, %v2048
    %v2662 = vpack.c.b16 %v2051, %v2050
    %v2663 = vpack.c.b16 %v2053, %v2052
    %v2664 = vpack.c.b16 %v2055, %v2054
    %v2665 = vpack.c.b16 %v2057, %v2056
    %v2666 = vpack.c.b16 %v2059, %v2058
    %v2667 = vpack.c.b16 %v2061, %v2060
    %v2668 = vpack.c.b16 %v2063, %v2062
    %v2669 = vpack.c.b16 %v2065, %v2064
    %v2670 = vpack.c.b16 %v2067, %v2066
    %v2671 = vpack.c.b16 %v2069, %v2068
    %v2672 = vpack.c.b16 %v2071, %v2070
    %v2673 = vpack.c.b16 %v2073, %v2072
    %v2674 = vpack.c.b16 %v2075, %v2074
    %v2675 = vpack.c.b16 %v2077, %v2076
    %v2676 = vpack.c.b16 %v2079, %v2078
    %v2677 = vpack.c.b16 %v2081, %v2080
    %v2678 = vpack.c.b16 %v2083, %v2082
    %v2679 = vpack.c.b16 %v2085, %v2084
    %v2680 = vpack.c.b16 %v2087, %v2086
    %v2681 = vpack.c.b16 %v2089, %v2088
    %v2682 = vpack.c.b16 %v2091, %v2090
    %v2683 = vpack.c.b16 %v2093, %v2092
    %v2684 = vpack.c.b16 %v2095, %v2094
    %v2685 = vpack.c.b16 %v2097, %v2096
    %v2686 = vpack.c.b16 %v2099, %v2098
    %v2687 = vpack.c.b16 %v2101, %v2100
    %v2688 = vpack.c.b16 %v2103, %v2102
    %v2689 = vpack.c.b16 %v2105, %v2104
    %v2690 = vpack.c.b16 %v2107, %v2106
    %v2691 = vpack.c.b16 %v2109, %v2108
    %v2692 = vpack.c.b16 %v2111, %v2110
    %v2693 = vpack.c.b16 %v2113, %v2112
    %v2694 = vpack.c.b16 %v2115, %v2114
    %v2695 = vpack.c.b16 %v2117, %v2116
    %v2696 = vpack.c.b16 %v2119, %v2118
    %v2697 = vpack.c.b16 %v2121, %v2120
    %v2698 = vpack.c.b16 %v2123, %v2122
    %v2699 = vpack.c.b16 %v2125, %v2124
    %v2700 = vpack.c.b16 %v2127, %v2126
    %v2701 = vpack.c.b16 %v2129, %v2128
    %v2702 = vpack.c.b16 %v2131, %v2130
    %v2703 = vpack.c.b16 %v2133, %v2132
    %v2704 = vpack.c.b16 %v2135, %v2134
    %v2705 = vpack.c.b16 %v2137, %v2136
    %v2706 = vpack.c.b16 %v2139, %v2138
    %v2707 = vpack.c.b16 %v2141, %v2140
    %v2708 = vpack.c.b16 %v2143, %v2142
    %v2709 = vpack.c.b16 %v2145, %v2144
    %v2710 = vpack.c.b16 %v2147, %v2146
    %v2711 = vpack.c.b16 %v2149, %v2148
    %v2712 = vpack.c.b16 %v2151, %v2150
    %v2713 = vpack.c.b16 %v2153, %v2152
    %v2714 = vpack.c.b16 %v2155, %v2154
    %v2715 = vpack.c.b16 %v2157, %v2156
    %v2716 = vpack.c.b16 %v2159, %v2158
    %v2717 = vpack.c.b16 %v2161, %v2160
    %v2718 = vpack.c.b16 %v2163, %v2162
    %v2719 = vpack.c.b16 %v2165, %v2164
    %v2720 = vpack.c.b16 %v2167, %v2166
    %v2721 = vpack.c.b16 %v2169, %v2168
    %v2722 = vpack.c.b16 %v2171, %v2170
    %v2723 = vpack.c.b16 %v2173, %v2172
    %v2724 = vpack.c.b16 %v2175, %v2174
    %v2725 = vpack.c.b16 %v2177, %v2176
    %v2726 = vpack.c.b16 %v2179, %v2178
    %v2727 = vpack.c.b16 %v2181, %v2180
    %v2728 = vpack.c.b16 %v2183, %v2182
    %v2729 = vpack.c.b16 %v2185, %v2184
    %v2730 = vpack.c.b16 %v2187, %v2186
    %v2731 = vpack.c.b16 %v2189, %v2188
    %v2732 = vpack.c.b16 %v2191, %v2190
    %v2733 = vpack.c.b16 %v2193, %v2192
    %v2734 = vpack.c.b16 %v2195, %v2194
    %v2735 = vpack.c.b16 %v2197, %v2196
    %v2736 = vpack.c.b16 %v2199, %v2198
    %v2737 = vpack.c.b16 %v2201, %v2200
    %v2738 = vpack.c.b16 %v2203, %v2202
    %v2739 = vpack.c.b16 %v2205, %v2204
    %v2740 = vpack.c.b16 %v2207, %v2206
    %v2741 = vpack.c.b16 %v2209, %v2208
    %v2742 = vpack.c.b16 %v2211, %v2210
    %v2743 = vpack.c.b16 %v2213, %v2212
    %v2744 = vpack.c.b16 %v2215, %v2214
    %v2745 = vpack.c.b16 %v2217, %v2216
    %v2746 = vpack.c.b16 %v2219, %v2218
    %v2747 = vpack.c.b16 %v2221, %v2220
    %v2748 = vpack.c.b16 %v2223, %v2222
    %v2749 = vpack.c.b16 %v2225, %v2224
    %v2750 = vpack.c.b16 %v2227, %v2226
    %v2751 = vpack.c.b16 %v2229, %v2228
    %v2752 = vpack.c.b16 %v2231, %v2230
    %v2753 = vpack.c.b16 %v2233, %v2232
    %v2754 = vpack.c.b16 %v2235, %v2234
    %v2755 = vpack.c.b16 %v2237, %v2236
    %v2756 = vpack.c.b16 %v2239, %v2238
    %v2757 = vpack.c.b16 %v2241, %v2240
    %v2758 = vpack.c.b16 %v2243, %v2242
    %v2759 = vpack.c.b16 %v2245, %v2244
    %v2760 = vpack.c.b16 %v2247, %v2246
    %v2761 = vpack.c.b16 %v2249, %v2248
    %v2762 = vpack.c.b16 %v2251, %v2250
    %v2763 = vpack.c.b16 %v2253, %v2252
    %v2764 = vpack.c.b16 %v2255, %v2254
    %v2765 = vpack.c.b16 %v2257, %v2256
    %v2766 = vpack.c.b16 %v2259, %v2258
    %v2767 = vpack.c.b16 %v2261, %v2260
    %v2768 = vpack.c.b16 %v2263, %v2262
    %v2769 = vpack.c.b16 %v2265, %v2264
    %v2770 = vpack.c.b16 %v2267, %v2266
    %v2771 = vpack.c.b16 %v2269, %v2268
    %v2772 = vpack.c.b16 %v2271, %v2270
    %v2773 = vpack.c.b16 %v2273, %v2272
    %v2774 = vpack.c.b16 %v2275, %v2274
    %v2775 = vpack.c.b16 %v2277, %v2276
    %v2776 = vpack.c.b16 %v2279, %v2278
    %v2777 = vpack.c.b16 %v2281, %v2280
    %v2778 = vpack.c.b16 %v2283, %v2282
    %v2779 = vpack.c.b16 %v2285, %v2284
    %v2780 = vpack.c.b16 %v2287, %v2286
    %v2781 = vpack.c.b16 %v2289, %v2288
    %v2782 = vpack.c.b16 %v2291, %v2290
    %v2783 = vpack.c.b16 %v2293, %v2292
    %v2784 = vpack.c.b16 %v2295, %v2294
    %v2785 = vpack.c.b16 %v2297, %v2296
    %v2786 = vpack.c.b16 %v2299, %v2298
    %v2787 = vpack.c.b16 %v2301, %v2300
    %v2788 = vpack.c.b16 %v2303, %v2302
    %v2789 = vpack.c.b16 %v2305, %v2304
    %v2790 = vpack.c.b16 %v2307, %v2306
    %v2791 = vpack.c.b16 %v2309, %v2308
    %v2792 = vpack.c.b16 %v2311, %v2310
    %v2793 = vpack.c.b16 %v2313, %v2312
    %v2794 = vpack.c.b16 %v2315, %v2314
    %v2795 = vpack.c.b16 %v2317, %v2316
    %v2796 = vpack.c.b16 %v2319, %v2318
    %v2797 = vpack.c.b16 %v2321, %v2320
    %v2798 = vpack.c.b16 %v2323, %v2322
    %v2799 = vpack.c.b16 %v2325, %v2324
    %v2800 = vpack.c.b16 %v2327, %v2326
    %v2801 = vpack.c.b16 %v2329, %v2328
    %v2802 = vpack.c.b16 %v2331, %v2330
    %v2803 = vpack.c.b16 %v2333, %v2332
    %v2804 = vpack.c.b16 %v2335, %v2334
    %v2805 = vpack.c.b16 %v2337, %v2336
    %v2806 = vpack.c.b16 %v2339, %v2338
    %v2807 = vpack.c.b16 %v2341, %v2340
    %v2808 = vpack.c.b16 %v2343, %v2342
    %v2809 = vpack.c.b16 %v2345, %v2344
    %v2810 = vpack.c.b16 %v2347, %v2346
    %v2811 = vpack.c.b16 %v2349, %v2348
    %v2812 = vpack.c.b16 %v2351, %v2350
    %v2813 = vpack.c.b16 %v2353, %v2352
    %v2814 = vpack.c.b16 %v2355, %v2354
    %v2815 = vpack.c.b16 %v2357, %v2356
    %v2816 = vpack.c.b16 %v2359, %v2358
    %v2817 = vpack.c.b16 %v2361, %v2360
    %v2818 = vpack.c.b16 %v2363, %v2362
    %v2819 = vpack.c.b16 %v2365, %v2364
    %v2820 = vpack.c.b16 %v2367, %v2366
    %v2821 = vpack.c.b16 %v2369, %v2368
    %v2822 = vpack.c.b16 %v2371, %v2370
    %v2823 = vpack.c.b16 %v2373, %v2372
    %v2824 = vpack.c.b16 %v2375, %v2374
    %v2825 = vpack.c.b16 %v2377, %v2376
    %v2826 = vpack.c.b16 %v2379, %v2378
    %v2827 = vpack.c.b16 %v2381, %v2380
    %v2828 = vpack.c.b16 %v2383, %v2382
    %v2829 = vpack.c.b16 %v2385, %v2384
    %v2830 = vpack.c.b16 %v2387, %v2386
    %v2831 = vpack.c.b16 %v2389, %v2388
    %v2832 = vpack.c.b16 %v2391, %v2390
    %v2833 = vpack.c.b16 %v2393, %v2392
    %v2834 = vpack.c.b16 %v2395, %v2394
    %v2835 = vpack.c.b16 %v2397, %v2396
    %v2836 = vpack.c.b16 %v2399, %v2398
    %v2837 = vpack.c.b16 %v2401, %v2400
    %v2838 = vpack.c.b16 %v2403, %v2402
    %v2839 = vpack.c.b16 %v2405, %v2404
    %v2840 = vpack.c.b16 %v2407, %v2406
    %v2841 = vpack.c.b16 %v2409, %v2408
    %v2842 = vpack.c.b16 %v2411, %v2410
    %v2843 = vpack.c.b16 %v2413, %v2412
    %v2844 = vpack.c.b16 %v2415, %v2414
    %v2845 = vpack.c.b16 %v2417, %v2416
    %v2846 = vpack.c.b16 %v2419, %v2418
    %v2847 = vpack.c.b16 %v2421, %v2420
    %v2848 = vpack.c.b16 %v2423, %v2422
    %v2849 = vpack.c.b16 %v2425, %v2424
    %v2850 = vpack.c.b16 %v2427, %v2426
    %v2851 = vpack.c.b16 %v2429, %v2428
    %v2852 = vpack.c.b16 %v2431, %v2430
    %v2853 = vpack.c.b16 %v2433, %v2432
    %v2854 = vpack.c.b16 %v2435, %v2434
    %v2855 = vpack.c.b16 %v2437, %v2436
    %v2856 = vpack.c.b16 %v2439, %v2438
    %v2857 = vpack.c.b16 %v2441, %v2440
    %v2858 = vpack.c.b16 %v2443, %v2442
    %v2859 = vpack.c.b16 %v2445, %v2444
    %v2860 = vpack.c.b16 %v2447, %v2446
    %v2861 = vpack.c.b16 %v2449, %v2448
    %v2862 = vpack.c.b16 %v2451, %v2450
    %v2863 = vpack.c.b16 %v2453, %v2452
    %v2864 = vpack.c.b16 %v2455, %v2454
    %v2865 = vpack.c.b16 %v2457, %v2456
    %v2866 = vpack.c.b16 %v2459, %v2458
    %v2867 = vpack.c.b16 %v2461, %v2460
    %v2868 = vpack.c.b16 %v2463, %v2462
    %v2869 = vpack.c.b16 %v2465, %v2464
    %v2870 = vpack.c.b16 %v2467, %v2466
    %v2871 = vpack.c.b16 %v2469, %v2468
    %v2872 = vpack.c.b16 %v2471, %v2470
    %v2873 = vpack.c.b16 %v2473, %v2472
    %v2874 = vpack.c.b16 %v2475, %v2474
    %v2875 = vpack.c.b16 %v2477, %v2476
    %v2876 = vpack.c.b16 %v2479, %v2478
    %v2877 = vpack.c.b16 %v2481, %v2480
    %v2878 = vpack.c.b16 %v2483, %v2482
    %v2879 = vpack.c.b16 %v2485, %v2484
    %v2880 = vpack.c.b16 %v2487, %v2486
    %v2881 = vpack.c.b16 %v2489, %v2488
    %3274 = vmatpush.bf16.msra.mxu0 %v2497
    %3275 = vmatpush.bf16.msra.mxu0 %v2496
    %3276 = vmatpush.bf16.msra.mxu0 %v2495
    %3277 = vmatpush.bf16.msra.mxu0 %v2494
    %3278 = vmatpush.bf16.msra.mxu0 %v2493
    %3279 = vmatpush.bf16.msra.mxu0 %v2492
    %3280 = vmatpush.bf16.msra.mxu0 %v2491
    %3281 = vmatpush.bf16.msra.mxu0 %v2490
    %3282 = vmatmul.bf16.gmra.mxu0 %v812
    %v3283 = vpop.f32.mrf.mxu0
    %v3284 = vadd.f32 %v808, %v3283
    %v3285 = vpop.f32.mrf.mxu0
    %3286 = vdwg.mxu0
    %3287 = vmatpush.bf16.msra.mxu0 %v2505
    %3288 = vmatpush.bf16.msra.mxu0 %v2504
    %3289 = vmatpush.bf16.msra.mxu0 %v2503
    %3290 = vmatpush.bf16.msra.mxu0 %v2502
    %3291 = vmatpush.bf16.msra.mxu0 %v2501
    %3292 = vmatpush.bf16.msra.mxu0 %v2500
    %3293 = vmatpush.bf16.msra.mxu0 %v2499
    %3294 = vmatpush.bf16.msra.mxu0 %v2498
    %3295 = vmatmul.bf16.gmra.mxu0 %v813
    %v3296 = vpop.f32.mrf.mxu0
    %v3297 = vadd.f32 %v3284, %v3296
    %v3298 = vpop.f32.mrf.mxu0
    %3299 = vdwg.mxu0
    %3300 = vmatpush.bf16.msra.mxu0 %v2513
    %3301 = vmatpush.bf16.msra.mxu0 %v2512
    %3302 = vmatpush.bf16.msra.mxu0 %v2511
    %3303 = vmatpush.bf16.msra.mxu0 %v2510
    %3304 = vmatpush.bf16.msra.mxu0 %v2509
    %3305 = vmatpush.bf16.msra.mxu0 %v2508
    %3306 = vmatpush.bf16.msra.mxu0 %v2507
    %3307 = vmatpush.bf16.msra.mxu0 %v2506
    %3308 = vmatmul.bf16.gmra.mxu0 %v814
    %v3309 = vpop.f32.mrf.mxu0
    %v3310 = vadd.f32 %v3297, %v3309
    %v3311 = vpop.f32.mrf.mxu0
    %3312 = vdwg.mxu0
    %3313 = vmatpush.bf16.msra.mxu0 %v2521
    %3314 = vmatpush.bf16.msra.mxu0 %v2520
    %3315 = vmatpush.bf16.msra.mxu0 %v2519
    %3316 = vmatpush.bf16.msra.mxu0 %v2518
    %3317 = vmatpush.bf16.msra.mxu0 %v2517
    %3318 = vmatpush.bf16.msra.mxu0 %v2516
    %3319 = vmatpush.bf16.msra.mxu0 %v2515
    %3320 = vmatpush.bf16.msra.mxu0 %v2514
    %3321 = vmatmul.bf16.gmra.mxu0 %v815
    %v3322 = vpop.f32.mrf.mxu0
    %v3323 = vadd.f32 %v3310, %v3322
    %v3324 = vpop.f32.mrf.mxu0
    %3325 = vdwg.mxu0
    %3326 = vmatpush.bf16.msra.mxu0 %v2529
    %3327 = vmatpush.bf16.msra.mxu0 %v2528
    %3328 = vmatpush.bf16.msra.mxu0 %v2527
    %3329 = vmatpush.bf16.msra.mxu0 %v2526
    %3330 = vmatpush.bf16.msra.mxu0 %v2525
    %3331 = vmatpush.bf16.msra.mxu0 %v2524
    %3332 = vmatpush.bf16.msra.mxu0 %v2523
    %3333 = vmatpush.bf16.msra.mxu0 %v2522
    %3334 = vmatmul.bf16.gmra.mxu0 %v816
    %v3335 = vpop.f32.mrf.mxu0
    %v3336 = vadd.f32 %v3323, %v3335
    %v3337 = vpop.f32.mrf.mxu0
    %3338 = vdwg.mxu0
    %3339 = vmatpush.bf16.msra.mxu0 %v2537
    %3340 = vmatpush.bf16.msra.mxu0 %v2536
    %3341 = vmatpush.bf16.msra.mxu0 %v2535
    %3342 = vmatpush.bf16.msra.mxu0 %v2534
    %3343 = vmatpush.bf16.msra.mxu0 %v2533
    %3344 = vmatpush.bf16.msra.mxu0 %v2532
    %3345 = vmatpush.bf16.msra.mxu0 %v2531
    %3346 = vmatpush.bf16.msra.mxu0 %v2530
    %3347 = vmatmul.bf16.gmra.mxu0 %v817
    %v3348 = vpop.f32.mrf.mxu0
    %v3349 = vadd.f32 %v3336, %v3348
    %v3350 = vpop.f32.mrf.mxu0
    %3351 = vdwg.mxu0
    %3352 = vmatpush.bf16.msra.mxu0 %v2545
    %3353 = vmatpush.bf16.msra.mxu0 %v2544
    %3354 = vmatpush.bf16.msra.mxu0 %v2543
    %3355 = vmatpush.bf16.msra.mxu0 %v2542
    %3356 = vmatpush.bf16.msra.mxu0 %v2541
    %3357 = vmatpush.bf16.msra.mxu0 %v2540
    %3358 = vmatpush.bf16.msra.mxu0 %v2539
    %3359 = vmatpush.bf16.msra.mxu0 %v2538
    %3360 = vmatmul.bf16.gmra.mxu0 %v818
    %v3361 = vpop.f32.mrf.mxu0
    %v3362 = vadd.f32 %v3349, %v3361
    %v3363 = vpop.f32.mrf.mxu0
    %3364 = vdwg.mxu0
    %3365 = vmatpush.bf16.msra.mxu0 %v2553
    %3366 = vmatpush.bf16.msra.mxu0 %v2552
    %3367 = vmatpush.bf16.msra.mxu0 %v2551
    %3368 = vmatpush.bf16.msra.mxu0 %v2550
    %3369 = vmatpush.bf16.msra.mxu0 %v2549
    %3370 = vmatpush.bf16.msra.mxu0 %v2548
    %3371 = vmatpush.bf16.msra.mxu0 %v2547
    %3372 = vmatpush.bf16.msra.mxu0 %v2546
    %3373 = vmatmul.bf16.gmra.mxu0 %v819
    %v3374 = vpop.f32.mrf.mxu0
    %v3375 = vadd.f32 %v3362, %v3374
    %v3376 = vpop.f32.mrf.mxu0
    %3377 = vdwg.mxu0
    %3378 = vmatpush.bf16.msra.mxu0 %v2561
    %3379 = vmatpush.bf16.msra.mxu0 %v2560
    %3380 = vmatpush.bf16.msra.mxu0 %v2559
    %3381 = vmatpush.bf16.msra.mxu0 %v2558
    %3382 = vmatpush.bf16.msra.mxu0 %v2557
    %3383 = vmatpush.bf16.msra.mxu0 %v2556
    %3384 = vmatpush.bf16.msra.mxu0 %v2555
    %3385 = vmatpush.bf16.msra.mxu0 %v2554
    %3386 = vmatmul.bf16.gmra.mxu0 %v822
    %v3387 = vpop.f32.mrf.mxu0
    %v3388 = vadd.f32 %v3375, %v3387
    %v3389 = vpop.f32.mrf.mxu0
    %3390 = vdwg.mxu0
    %3391 = vmatpush.bf16.msra.mxu0 %v2569
    %3392 = vmatpush.bf16.msra.mxu0 %v2568
    %3393 = vmatpush.bf16.msra.mxu0 %v2567
    %3394 = vmatpush.bf16.msra.mxu0 %v2566
    %3395 = vmatpush.bf16.msra.mxu0 %v2565
    %3396 = vmatpush.bf16.msra.mxu0 %v2564
    %3397 = vmatpush.bf16.msra.mxu0 %v2563
    %3398 = vmatpush.bf16.msra.mxu0 %v2562
    %3399 = vmatmul.bf16.gmra.mxu0 %v823
    %v3400 = vpop.f32.mrf.mxu0
    %v3401 = vadd.f32 %v3388, %v3400
    %v3402 = vpop.f32.mrf.mxu0
    %3403 = vdwg.mxu0
    %3404 = vmatpush.bf16.msra.mxu0 %v2577
    %3405 = vmatpush.bf16.msra.mxu0 %v2576
    %3406 = vmatpush.bf16.msra.mxu0 %v2575
    %3407 = vmatpush.bf16.msra.mxu0 %v2574
    %3408 = vmatpush.bf16.msra.mxu0 %v2573
    %3409 = vmatpush.bf16.msra.mxu0 %v2572
    %3410 = vmatpush.bf16.msra.mxu0 %v2571
    %3411 = vmatpush.bf16.msra.mxu0 %v2570
    %3412 = vmatmul.bf16.gmra.mxu0 %v824
    %v3413 = vpop.f32.mrf.mxu0
    %v3414 = vadd.f32 %v3401, %v3413
    %v3415 = vpop.f32.mrf.mxu0
    %3416 = vdwg.mxu0
    %3417 = vmatpush.bf16.msra.mxu0 %v2585
    %3418 = vmatpush.bf16.msra.mxu0 %v2584
    %3419 = vmatpush.bf16.msra.mxu0 %v2583
    %3420 = vmatpush.bf16.msra.mxu0 %v2582
    %3421 = vmatpush.bf16.msra.mxu0 %v2581
    %3422 = vmatpush.bf16.msra.mxu0 %v2580
    %3423 = vmatpush.bf16.msra.mxu0 %v2579
    %3424 = vmatpush.bf16.msra.mxu0 %v2578
    %3425 = vmatmul.bf16.gmra.mxu0 %v825
    %v3426 = vpop.f32.mrf.mxu0
    %v3427 = vadd.f32 %v3414, %v3426
    %v3428 = vpop.f32.mrf.mxu0
    %3429 = vdwg.mxu0
    %3430 = vmatpush.bf16.msra.mxu0 %v2593
    %3431 = vmatpush.bf16.msra.mxu0 %v2592
    %3432 = vmatpush.bf16.msra.mxu0 %v2591
    %3433 = vmatpush.bf16.msra.mxu0 %v2590
    %3434 = vmatpush.bf16.msra.mxu0 %v2589
    %3435 = vmatpush.bf16.msra.mxu0 %v2588
    %3436 = vmatpush.bf16.msra.mxu0 %v2587
    %3437 = vmatpush.bf16.msra.mxu0 %v2586
    %3438 = vmatmul.bf16.gmra.mxu0 %v826
    %v3439 = vpop.f32.mrf.mxu0
    %v3440 = vadd.f32 %v3427, %v3439
    %v3441 = vpop.f32.mrf.mxu0
    %3442 = vdwg.mxu0
    %3443 = vmatpush.bf16.msra.mxu0 %v2601
    %3444 = vmatpush.bf16.msra.mxu0 %v2600
    %3445 = vmatpush.bf16.msra.mxu0 %v2599
    %3446 = vmatpush.bf16.msra.mxu0 %v2598
    %3447 = vmatpush.bf16.msra.mxu0 %v2597
    %3448 = vmatpush.bf16.msra.mxu0 %v2596
    %3449 = vmatpush.bf16.msra.mxu0 %v2595
    %3450 = vmatpush.bf16.msra.mxu0 %v2594
    %3451 = vmatmul.bf16.gmra.mxu0 %v827
    %v3452 = vpop.f32.mrf.mxu0
    %v3453 = vadd.f32 %v3440, %v3452
    %v3454 = vpop.f32.mrf.mxu0
    %3455 = vdwg.mxu0
    %3456 = vmatpush.bf16.msra.mxu0 %v2609
    %3457 = vmatpush.bf16.msra.mxu0 %v2608
    %3458 = vmatpush.bf16.msra.mxu0 %v2607
    %3459 = vmatpush.bf16.msra.mxu0 %v2606
    %3460 = vmatpush.bf16.msra.mxu0 %v2605
    %3461 = vmatpush.bf16.msra.mxu0 %v2604
    %3462 = vmatpush.bf16.msra.mxu0 %v2603
    %3463 = vmatpush.bf16.msra.mxu0 %v2602
    %3464 = vmatmul.bf16.gmra.mxu0 %v828
    %v3465 = vpop.f32.mrf.mxu0
    %v3466 = vadd.f32 %v3453, %v3465
    %v3467 = vpop.f32.mrf.mxu0
    %3468 = vdwg.mxu0
    %3469 = vmatpush.bf16.msra.mxu0 %v2617
    %3470 = vmatpush.bf16.msra.mxu0 %v2616
    %3471 = vmatpush.bf16.msra.mxu0 %v2615
    %3472 = vmatpush.bf16.msra.mxu0 %v2614
    %3473 = vmatpush.bf16.msra.mxu0 %v2613
    %3474 = vmatpush.bf16.msra.mxu0 %v2612
    %3475 = vmatpush.bf16.msra.mxu0 %v2611
    %3476 = vmatpush.bf16.msra.mxu0 %v2610
    %3477 = vmatmul.bf16.gmra.mxu0 %v829
    %v3478 = vpop.f32.mrf.mxu0
    %v3479 = vadd.f32 %v3466, %v3478
    %v3480 = vpop.f32.mrf.mxu0
    %3481 = vdwg.mxu0
    %3482 = vmatpush.bf16.msra.mxu0 %v2625
    %3483 = vmatpush.bf16.msra.mxu0 %v2624
    %3484 = vmatpush.bf16.msra.mxu0 %v2623
    %3485 = vmatpush.bf16.msra.mxu0 %v2622
    %3486 = vmatpush.bf16.msra.mxu0 %v2621
    %3487 = vmatpush.bf16.msra.mxu0 %v2620
    %3488 = vmatpush.bf16.msra.mxu0 %v2619
    %3489 = vmatpush.bf16.msra.mxu0 %v2618
    %3490 = vmatmul.bf16.gmra.mxu0 %v832
    %v3491 = vpop.f32.mrf.mxu0
    %v3492 = vadd.f32 %v3479, %v3491
    %v3493 = vpop.f32.mrf.mxu0
    %3494 = vdwg.mxu0
    %3495 = vmatpush.bf16.msra.mxu0 %v2633
    %3496 = vmatpush.bf16.msra.mxu0 %v2632
    %3497 = vmatpush.bf16.msra.mxu0 %v2631
    %3498 = vmatpush.bf16.msra.mxu0 %v2630
    %3499 = vmatpush.bf16.msra.mxu0 %v2629
    %3500 = vmatpush.bf16.msra.mxu0 %v2628
    %3501 = vmatpush.bf16.msra.mxu0 %v2627
    %3502 = vmatpush.bf16.msra.mxu0 %v2626
    %3503 = vmatmul.bf16.gmra.mxu0 %v833
    %v3504 = vpop.f32.mrf.mxu0
    %v3505 = vadd.f32 %v3492, %v3504
    %v3506 = vpop.f32.mrf.mxu0
    %3507 = vdwg.mxu0
    %3508 = vmatpush.bf16.msra.mxu0 %v2641
    %3509 = vmatpush.bf16.msra.mxu0 %v2640
    %3510 = vmatpush.bf16.msra.mxu0 %v2639
    %3511 = vmatpush.bf16.msra.mxu0 %v2638
    %3512 = vmatpush.bf16.msra.mxu0 %v2637
    %3513 = vmatpush.bf16.msra.mxu0 %v2636
    %3514 = vmatpush.bf16.msra.mxu0 %v2635
    %3515 = vmatpush.bf16.msra.mxu0 %v2634
    %3516 = vmatmul.bf16.gmra.mxu0 %v834
    %v3517 = vpop.f32.mrf.mxu0
    %v3518 = vadd.f32 %v3505, %v3517
    %v3519 = vpop.f32.mrf.mxu0
    %3520 = vdwg.mxu0
    %3521 = vmatpush.bf16.msra.mxu0 %v2649
    %3522 = vmatpush.bf16.msra.mxu0 %v2648
    %3523 = vmatpush.bf16.msra.mxu0 %v2647
    %3524 = vmatpush.bf16.msra.mxu0 %v2646
    %3525 = vmatpush.bf16.msra.mxu0 %v2645
    %3526 = vmatpush.bf16.msra.mxu0 %v2644
    %3527 = vmatpush.bf16.msra.mxu0 %v2643
    %3528 = vmatpush.bf16.msra.mxu0 %v2642
    %3529 = vmatmul.bf16.gmra.mxu0 %v835
    %v3530 = vpop.f32.mrf.mxu0
    %v3531 = vadd.f32 %v3518, %v3530
    %v3532 = vpop.f32.mrf.mxu0
    %3533 = vdwg.mxu0
    %3534 = vmatpush.bf16.msra.mxu0 %v2657
    %3535 = vmatpush.bf16.msra.mxu0 %v2656
    %3536 = vmatpush.bf16.msra.mxu0 %v2655
    %3537 = vmatpush.bf16.msra.mxu0 %v2654
    %3538 = vmatpush.bf16.msra.mxu0 %v2653
    %3539 = vmatpush.bf16.msra.mxu0 %v2652
    %3540 = vmatpush.bf16.msra.mxu0 %v2651
    %3541 = vmatpush.bf16.msra.mxu0 %v2650
    %3542 = vmatmul.bf16.gmra.mxu0 %v836
    %v3543 = vpop.f32.mrf.mxu0
    %v3544 = vadd.f32 %v3531, %v3543
    %v3545 = vpop.f32.mrf.mxu0
    %3546 = vdwg.mxu0
    %3547 = vmatpush.bf16.msra.mxu0 %v2665
    %3548 = vmatpush.bf16.msra.mxu0 %v2664
    %3549 = vmatpush.bf16.msra.mxu0 %v2663
    %3550 = vmatpush.bf16.msra.mxu0 %v2662
    %3551 = vmatpush.bf16.msra.mxu0 %v2661
    %3552 = vmatpush.bf16.msra.mxu0 %v2660
    %3553 = vmatpush.bf16.msra.mxu0 %v2659
    %3554 = vmatpush.bf16.msra.mxu0 %v2658
    %3555 = vmatmul.bf16.gmra.mxu0 %v837
    %v3556 = vpop.f32.mrf.mxu0
    %v3557 = vadd.f32 %v3544, %v3556
    %v3558 = vpop.f32.mrf.mxu0
    %3559 = vdwg.mxu0
    %3560 = vmatpush.bf16.msra.mxu0 %v2673
    %3561 = vmatpush.bf16.msra.mxu0 %v2672
    %3562 = vmatpush.bf16.msra.mxu0 %v2671
    %3563 = vmatpush.bf16.msra.mxu0 %v2670
    %3564 = vmatpush.bf16.msra.mxu0 %v2669
    %3565 = vmatpush.bf16.msra.mxu0 %v2668
    %3566 = vmatpush.bf16.msra.mxu0 %v2667
    %3567 = vmatpush.bf16.msra.mxu0 %v2666
    %3568 = vmatmul.bf16.gmra.mxu0 %v838
    %v3569 = vpop.f32.mrf.mxu0
    %v3570 = vadd.f32 %v3557, %v3569
    %v3571 = vpop.f32.mrf.mxu0
    %3572 = vdwg.mxu0
    %3573 = vmatpush.bf16.msra.mxu0 %v2681
    %3574 = vmatpush.bf16.msra.mxu0 %v2680
    %3575 = vmatpush.bf16.msra.mxu0 %v2679
    %3576 = vmatpush.bf16.msra.mxu0 %v2678
    %3577 = vmatpush.bf16.msra.mxu0 %v2677
    %3578 = vmatpush.bf16.msra.mxu0 %v2676
    %3579 = vmatpush.bf16.msra.mxu0 %v2675
    %3580 = vmatpush.bf16.msra.mxu0 %v2674
    %3581 = vmatmul.bf16.gmra.mxu0 %v839
    %v3582 = vpop.f32.mrf.mxu0
    %v3583 = vadd.f32 %v3570, %v3582
    %v3584 = vpop.f32.mrf.mxu0
    %3585 = vdwg.mxu0
    %3586 = vmatpush.bf16.msra.mxu0 %v2689
    %3587 = vmatpush.bf16.msra.mxu0 %v2688
    %3588 = vmatpush.bf16.msra.mxu0 %v2687
    %3589 = vmatpush.bf16.msra.mxu0 %v2686
    %3590 = vmatpush.bf16.msra.mxu0 %v2685
    %3591 = vmatpush.bf16.msra.mxu0 %v2684
    %3592 = vmatpush.bf16.msra.mxu0 %v2683
    %3593 = vmatpush.bf16.msra.mxu0 %v2682
    %3594 = vmatmul.bf16.gmra.mxu0 %v842
    %v3595 = vpop.f32.mrf.mxu0
    %v3596 = vadd.f32 %v3583, %v3595
    %v3597 = vpop.f32.mrf.mxu0
    %3598 = vdwg.mxu0
    %3599 = vmatpush.bf16.msra.mxu0 %v2697
    %3600 = vmatpush.bf16.msra.mxu0 %v2696
    %3601 = vmatpush.bf16.msra.mxu0 %v2695
    %3602 = vmatpush.bf16.msra.mxu0 %v2694
    %3603 = vmatpush.bf16.msra.mxu0 %v2693
    %3604 = vmatpush.bf16.msra.mxu0 %v2692
    %3605 = vmatpush.bf16.msra.mxu0 %v2691
    %3606 = vmatpush.bf16.msra.mxu0 %v2690
    %3607 = vmatmul.bf16.gmra.mxu0 %v843
    %v3608 = vpop.f32.mrf.mxu0
    %v3609 = vadd.f32 %v3596, %v3608
    %v3610 = vpop.f32.mrf.mxu0
    %3611 = vdwg.mxu0
    %3612 = vmatpush.bf16.msra.mxu0 %v2705
    %3613 = vmatpush.bf16.msra.mxu0 %v2704
    %3614 = vmatpush.bf16.msra.mxu0 %v2703
    %3615 = vmatpush.bf16.msra.mxu0 %v2702
    %3616 = vmatpush.bf16.msra.mxu0 %v2701
    %3617 = vmatpush.bf16.msra.mxu0 %v2700
    %3618 = vmatpush.bf16.msra.mxu0 %v2699
    %3619 = vmatpush.bf16.msra.mxu0 %v2698
    %3620 = vmatmul.bf16.gmra.mxu0 %v844
    %v3621 = vpop.f32.mrf.mxu0
    %v3622 = vadd.f32 %v3609, %v3621
    %v3623 = vpop.f32.mrf.mxu0
    %3624 = vdwg.mxu0
    %3625 = vmatpush.bf16.msra.mxu0 %v2713
    %3626 = vmatpush.bf16.msra.mxu0 %v2712
    %3627 = vmatpush.bf16.msra.mxu0 %v2711
    %3628 = vmatpush.bf16.msra.mxu0 %v2710
    %3629 = vmatpush.bf16.msra.mxu0 %v2709
    %3630 = vmatpush.bf16.msra.mxu0 %v2708
    %3631 = vmatpush.bf16.msra.mxu0 %v2707
    %3632 = vmatpush.bf16.msra.mxu0 %v2706
    %3633 = vmatmul.bf16.gmra.mxu0 %v845
    %v3634 = vpop.f32.mrf.mxu0
    %v3635 = vadd.f32 %v3622, %v3634
    %v3636 = vpop.f32.mrf.mxu0
    %3637 = vdwg.mxu0
    %3638 = vmatpush.bf16.msra.mxu0 %v2721
    %3639 = vmatpush.bf16.msra.mxu0 %v2720
    %3640 = vmatpush.bf16.msra.mxu0 %v2719
    %3641 = vmatpush.bf16.msra.mxu0 %v2718
    %3642 = vmatpush.bf16.msra.mxu0 %v2717
    %3643 = vmatpush.bf16.msra.mxu0 %v2716
    %3644 = vmatpush.bf16.msra.mxu0 %v2715
    %3645 = vmatpush.bf16.msra.mxu0 %v2714
    %3646 = vmatmul.bf16.gmra.mxu0 %v846
    %v3647 = vpop.f32.mrf.mxu0
    %v3648 = vadd.f32 %v3635, %v3647
    %v3649 = vpop.f32.mrf.mxu0
    %3650 = vdwg.mxu0
    %3651 = vmatpush.bf16.msra.mxu0 %v2729
    %3652 = vmatpush.bf16.msra.mxu0 %v2728
    %3653 = vmatpush.bf16.msra.mxu0 %v2727
    %3654 = vmatpush.bf16.msra.mxu0 %v2726
    %3655 = vmatpush.bf16.msra.mxu0 %v2725
    %3656 = vmatpush.bf16.msra.mxu0 %v2724
    %3657 = vmatpush.bf16.msra.mxu0 %v2723
    %3658 = vmatpush.bf16.msra.mxu0 %v2722
    %3659 = vmatmul.bf16.gmra.mxu0 %v847
    %v3660 = vpop.f32.mrf.mxu0
    %v3661 = vadd.f32 %v3648, %v3660
    %v3662 = vpop.f32.mrf.mxu0
    %3663 = vdwg.mxu0
    %3664 = vmatpush.bf16.msra.mxu0 %v2737
    %3665 = vmatpush.bf16.msra.mxu0 %v2736
    %3666 = vmatpush.bf16.msra.mxu0 %v2735
    %3667 = vmatpush.bf16.msra.mxu0 %v2734
    %3668 = vmatpush.bf16.msra.mxu0 %v2733
    %3669 = vmatpush.bf16.msra.mxu0 %v2732
    %3670 = vmatpush.bf16.msra.mxu0 %v2731
    %3671 = vmatpush.bf16.msra.mxu0 %v2730
    %3672 = vmatmul.bf16.gmra.mxu0 %v848
    %v3673 = vpop.f32.mrf.mxu0
    %v3674 = vadd.f32 %v3661, %v3673
    %v3675 = vpop.f32.mrf.mxu0
    %3676 = vdwg.mxu0
    %3677 = vmatpush.bf16.msra.mxu0 %v2745
    %3678 = vmatpush.bf16.msra.mxu0 %v2744
    %3679 = vmatpush.bf16.msra.mxu0 %v2743
    %3680 = vmatpush.bf16.msra.mxu0 %v2742
    %3681 = vmatpush.bf16.msra.mxu0 %v2741
    %3682 = vmatpush.bf16.msra.mxu0 %v2740
    %3683 = vmatpush.bf16.msra.mxu0 %v2739
    %3684 = vmatpush.bf16.msra.mxu0 %v2738
    %3685 = vmatmul.bf16.gmra.mxu0 %v849
    %v3686 = vpop.f32.mrf.mxu0
    %v3687 = vadd.f32 %v3674, %v3686
    %v3688 = vpop.f32.mrf.mxu0
    %3689 = vdwg.mxu0
    %3690 = vmatpush.bf16.msra.mxu0 %v2753
    %3691 = vmatpush.bf16.msra.mxu0 %v2752
    %3692 = vmatpush.bf16.msra.mxu0 %v2751
    %3693 = vmatpush.bf16.msra.mxu0 %v2750
    %3694 = vmatpush.bf16.msra.mxu0 %v2749
    %3695 = vmatpush.bf16.msra.mxu0 %v2748
    %3696 = vmatpush.bf16.msra.mxu0 %v2747
    %3697 = vmatpush.bf16.msra.mxu0 %v2746
    %3698 = vmatmul.bf16.gmra.mxu0 %v852
    %v3699 = vpop.f32.mrf.mxu0
    %v3700 = vadd.f32 %v3687, %v3699
    %v3701 = vpop.f32.mrf.mxu0
    %3702 = vdwg.mxu0
    %3703 = vmatpush.bf16.msra.mxu0 %v2761
    %3704 = vmatpush.bf16.msra.mxu0 %v2760
    %3705 = vmatpush.bf16.msra.mxu0 %v2759
    %3706 = vmatpush.bf16.msra.mxu0 %v2758
    %3707 = vmatpush.bf16.msra.mxu0 %v2757
    %3708 = vmatpush.bf16.msra.mxu0 %v2756
    %3709 = vmatpush.bf16.msra.mxu0 %v2755
    %3710 = vmatpush.bf16.msra.mxu0 %v2754
    %3711 = vmatmul.bf16.gmra.mxu0 %v853
    %v3712 = vpop.f32.mrf.mxu0
    %v3713 = vadd.f32 %v3700, %v3712
    %v3714 = vpop.f32.mrf.mxu0
    %3715 = vdwg.mxu0
    %3716 = vmatpush.bf16.msra.mxu0 %v2769
    %3717 = vmatpush.bf16.msra.mxu0 %v2768
    %3718 = vmatpush.bf16.msra.mxu0 %v2767
    %3719 = vmatpush.bf16.msra.mxu0 %v2766
    %3720 = vmatpush.bf16.msra.mxu0 %v2765
    %3721 = vmatpush.bf16.msra.mxu0 %v2764
    %3722 = vmatpush.bf16.msra.mxu0 %v2763
    %3723 = vmatpush.bf16.msra.mxu0 %v2762
    %3724 = vmatmul.bf16.gmra.mxu0 %v854
    %v3725 = vpop.f32.mrf.mxu0
    %v3726 = vadd.f32 %v3713, %v3725
    %v3727 = vpop.f32.mrf.mxu0
    %3728 = vdwg.mxu0
    %3729 = vmatpush.bf16.msra.mxu0 %v2777
    %3730 = vmatpush.bf16.msra.mxu0 %v2776
    %3731 = vmatpush.bf16.msra.mxu0 %v2775
    %3732 = vmatpush.bf16.msra.mxu0 %v2774
    %3733 = vmatpush.bf16.msra.mxu0 %v2773
    %3734 = vmatpush.bf16.msra.mxu0 %v2772
    %3735 = vmatpush.bf16.msra.mxu0 %v2771
    %3736 = vmatpush.bf16.msra.mxu0 %v2770
    %3737 = vmatmul.bf16.gmra.mxu0 %v855
    %v3738 = vpop.f32.mrf.mxu0
    %v3739 = vadd.f32 %v3726, %v3738
    %v3740 = vpop.f32.mrf.mxu0
    %3741 = vdwg.mxu0
    %3742 = vmatpush.bf16.msra.mxu0 %v2785
    %3743 = vmatpush.bf16.msra.mxu0 %v2784
    %3744 = vmatpush.bf16.msra.mxu0 %v2783
    %3745 = vmatpush.bf16.msra.mxu0 %v2782
    %3746 = vmatpush.bf16.msra.mxu0 %v2781
    %3747 = vmatpush.bf16.msra.mxu0 %v2780
    %3748 = vmatpush.bf16.msra.mxu0 %v2779
    %3749 = vmatpush.bf16.msra.mxu0 %v2778
    %3750 = vmatmul.bf16.gmra.mxu0 %v856
    %v3751 = vpop.f32.mrf.mxu0
    %v3752 = vadd.f32 %v3739, %v3751
    %v3753 = vpop.f32.mrf.mxu0
    %3754 = vdwg.mxu0
    %3755 = vmatpush.bf16.msra.mxu0 %v2793
    %3756 = vmatpush.bf16.msra.mxu0 %v2792
    %3757 = vmatpush.bf16.msra.mxu0 %v2791
    %3758 = vmatpush.bf16.msra.mxu0 %v2790
    %3759 = vmatpush.bf16.msra.mxu0 %v2789
    %3760 = vmatpush.bf16.msra.mxu0 %v2788
    %3761 = vmatpush.bf16.msra.mxu0 %v2787
    %3762 = vmatpush.bf16.msra.mxu0 %v2786
    %3763 = vmatmul.bf16.gmra.mxu0 %v857
    %v3764 = vpop.f32.mrf.mxu0
    %v3765 = vadd.f32 %v3752, %v3764
    %v3766 = vpop.f32.mrf.mxu0
    %3767 = vdwg.mxu0
    %3768 = vmatpush.bf16.msra.mxu0 %v2801
    %3769 = vmatpush.bf16.msra.mxu0 %v2800
    %3770 = vmatpush.bf16.msra.mxu0 %v2799
    %3771 = vmatpush.bf16.msra.mxu0 %v2798
    %3772 = vmatpush.bf16.msra.mxu0 %v2797
    %3773 = vmatpush.bf16.msra.mxu0 %v2796
    %3774 = vmatpush.bf16.msra.mxu0 %v2795
    %3775 = vmatpush.bf16.msra.mxu0 %v2794
    %3776 = vmatmul.bf16.gmra.mxu0 %v858
    %v3777 = vpop.f32.mrf.mxu0
    %v3778 = vadd.f32 %v3765, %v3777
    %v3779 = vpop.f32.mrf.mxu0
    %3780 = vdwg.mxu0
    %3781 = vmatpush.bf16.msra.mxu0 %v2809
    %3782 = vmatpush.bf16.msra.mxu0 %v2808
    %3783 = vmatpush.bf16.msra.mxu0 %v2807
    %3784 = vmatpush.bf16.msra.mxu0 %v2806
    %3785 = vmatpush.bf16.msra.mxu0 %v2805
    %3786 = vmatpush.bf16.msra.mxu0 %v2804
    %3787 = vmatpush.bf16.msra.mxu0 %v2803
    %3788 = vmatpush.bf16.msra.mxu0 %v2802
    %3789 = vmatmul.bf16.gmra.mxu0 %v859
    %v3790 = vpop.f32.mrf.mxu0
    %v3791 = vadd.f32 %v3778, %v3790
    %v3792 = vpop.f32.mrf.mxu0
    %3793 = vdwg.mxu0
    %3794 = vmatpush.bf16.msra.mxu0 %v2817
    %3795 = vmatpush.bf16.msra.mxu0 %v2816
    %3796 = vmatpush.bf16.msra.mxu0 %v2815
    %3797 = vmatpush.bf16.msra.mxu0 %v2814
    %3798 = vmatpush.bf16.msra.mxu0 %v2813
    %3799 = vmatpush.bf16.msra.mxu0 %v2812
    %3800 = vmatpush.bf16.msra.mxu0 %v2811
    %3801 = vmatpush.bf16.msra.mxu0 %v2810
    %3802 = vmatmul.bf16.gmra.mxu0 %v862
    %v3803 = vpop.f32.mrf.mxu0
    %v3804 = vadd.f32 %v3791, %v3803
    %v3805 = vpop.f32.mrf.mxu0
    %3806 = vdwg.mxu0
    %3807 = vmatpush.bf16.msra.mxu0 %v2825
    %3808 = vmatpush.bf16.msra.mxu0 %v2824
    %3809 = vmatpush.bf16.msra.mxu0 %v2823
    %3810 = vmatpush.bf16.msra.mxu0 %v2822
    %3811 = vmatpush.bf16.msra.mxu0 %v2821
    %3812 = vmatpush.bf16.msra.mxu0 %v2820
    %3813 = vmatpush.bf16.msra.mxu0 %v2819
    %3814 = vmatpush.bf16.msra.mxu0 %v2818
    %3815 = vmatmul.bf16.gmra.mxu0 %v863
    %v3816 = vpop.f32.mrf.mxu0
    %v3817 = vadd.f32 %v3804, %v3816
    %v3818 = vpop.f32.mrf.mxu0
    %3819 = vdwg.mxu0
    %3820 = vmatpush.bf16.msra.mxu0 %v2833
    %3821 = vmatpush.bf16.msra.mxu0 %v2832
    %3822 = vmatpush.bf16.msra.mxu0 %v2831
    %3823 = vmatpush.bf16.msra.mxu0 %v2830
    %3824 = vmatpush.bf16.msra.mxu0 %v2829
    %3825 = vmatpush.bf16.msra.mxu0 %v2828
    %3826 = vmatpush.bf16.msra.mxu0 %v2827
    %3827 = vmatpush.bf16.msra.mxu0 %v2826
    %3828 = vmatmul.bf16.gmra.mxu0 %v864
    %v3829 = vpop.f32.mrf.mxu0
    %v3830 = vadd.f32 %v3817, %v3829
    %v3831 = vpop.f32.mrf.mxu0
    %3832 = vdwg.mxu0
    %3833 = vmatpush.bf16.msra.mxu0 %v2841
    %3834 = vmatpush.bf16.msra.mxu0 %v2840
    %3835 = vmatpush.bf16.msra.mxu0 %v2839
    %3836 = vmatpush.bf16.msra.mxu0 %v2838
    %3837 = vmatpush.bf16.msra.mxu0 %v2837
    %3838 = vmatpush.bf16.msra.mxu0 %v2836
    %3839 = vmatpush.bf16.msra.mxu0 %v2835
    %3840 = vmatpush.bf16.msra.mxu0 %v2834
    %3841 = vmatmul.bf16.gmra.mxu0 %v865
    %v3842 = vpop.f32.mrf.mxu0
    %v3843 = vadd.f32 %v3830, %v3842
    %v3844 = vpop.f32.mrf.mxu0
    %3845 = vdwg.mxu0
    %3846 = vmatpush.bf16.msra.mxu0 %v2849
    %3847 = vmatpush.bf16.msra.mxu0 %v2848
    %3848 = vmatpush.bf16.msra.mxu0 %v2847
    %3849 = vmatpush.bf16.msra.mxu0 %v2846
    %3850 = vmatpush.bf16.msra.mxu0 %v2845
    %3851 = vmatpush.bf16.msra.mxu0 %v2844
    %3852 = vmatpush.bf16.msra.mxu0 %v2843
    %3853 = vmatpush.bf16.msra.mxu0 %v2842
    %3854 = vmatmul.bf16.gmra.mxu0 %v866
    %v3855 = vpop.f32.mrf.mxu0
    %v3856 = vadd.f32 %v3843, %v3855
    %v3857 = vpop.f32.mrf.mxu0
    %3858 = vdwg.mxu0
    %3859 = vmatpush.bf16.msra.mxu0 %v2857
    %3860 = vmatpush.bf16.msra.mxu0 %v2856
    %3861 = vmatpush.bf16.msra.mxu0 %v2855
    %3862 = vmatpush.bf16.msra.mxu0 %v2854
    %3863 = vmatpush.bf16.msra.mxu0 %v2853
    %3864 = vmatpush.bf16.msra.mxu0 %v2852
    %3865 = vmatpush.bf16.msra.mxu0 %v2851
    %3866 = vmatpush.bf16.msra.mxu0 %v2850
    %3867 = vmatmul.bf16.gmra.mxu0 %v867
    %v3868 = vpop.f32.mrf.mxu0
    %v3869 = vadd.f32 %v3856, %v3868
    %v3870 = vpop.f32.mrf.mxu0
    %3871 = vdwg.mxu0
    %3872 = vmatpush.bf16.msra.mxu0 %v2865
    %3873 = vmatpush.bf16.msra.mxu0 %v2864
    %3874 = vmatpush.bf16.msra.mxu0 %v2863
    %3875 = vmatpush.bf16.msra.mxu0 %v2862
    %3876 = vmatpush.bf16.msra.mxu0 %v2861
    %3877 = vmatpush.bf16.msra.mxu0 %v2860
    %3878 = vmatpush.bf16.msra.mxu0 %v2859
    %3879 = vmatpush.bf16.msra.mxu0 %v2858
    %3880 = vmatmul.bf16.gmra.mxu0 %v868
    %v3881 = vpop.f32.mrf.mxu0
    %v3882 = vadd.f32 %v3869, %v3881
    %v3883 = vpop.f32.mrf.mxu0
    %3884 = vdwg.mxu0
    %3885 = vmatpush.bf16.msra.mxu0 %v2873
    %3886 = vmatpush.bf16.msra.mxu0 %v2872
    %3887 = vmatpush.bf16.msra.mxu0 %v2871
    %3888 = vmatpush.bf16.msra.mxu0 %v2870
    %3889 = vmatpush.bf16.msra.mxu0 %v2869
    %3890 = vmatpush.bf16.msra.mxu0 %v2868
    %3891 = vmatpush.bf16.msra.mxu0 %v2867
    %3892 = vmatpush.bf16.msra.mxu0 %v2866
    %3893 = vmatmul.bf16.gmra.mxu0 %v869
    %v3894 = vpop.f32.mrf.mxu0
    %v3895 = vadd.f32 %v3882, %v3894
    %v3896 = vpop.f32.mrf.mxu0
    %3897 = vdwg.mxu0
    %3898 = vmatpush.bf16.msra.mxu0 %v2881
    %3899 = vmatpush.bf16.msra.mxu0 %v2880
    %3900 = vmatpush.bf16.msra.mxu0 %v2879
    %3901 = vmatpush.bf16.msra.mxu0 %v2878
    %3902 = vmatpush.bf16.msra.mxu0 %v2877
    %3903 = vmatpush.bf16.msra.mxu0 %v2876
    %3904 = vmatpush.bf16.msra.mxu0 %v2875
    %3905 = vmatpush.bf16.msra.mxu0 %v2874
    %3906 = vmatmul.bf16.gmra.mxu0 %v872
    %v3907 = vpop.f32.mrf.mxu0
    %v3908 = vadd.f32 %v3895, %v3907
    %v3909 = vpop.f32.mrf.mxu0
    %3910 = vdwg.mxu0
    %3911 = vst [vmem:[#allocation2] sm:$0x3] %v3908
    // Predicated region
    $region14: #{convnet_forward.5} parent=1 // pred_check
      _
    $region15: #{convnet_forward.5} parent=1 // pred_check_branch
      %3913 = sbr.rel (0) target = $region17
    $region16: #{convnet_forward.5} parent=1 // pred_region
      %3915 = vsyncadd [#allocation3], 0
      %s3917 = sshll.u32 [#allocation2], 4
      %s3918 = int_to_ptr.vmem [resolvable:$true] %s3917
      %s3919 = sshll.u32 %s3, 4
      %s3920 = int_to_ptr.hbm [resolvable:$true] %s3919
      %3922 = dma.vmem_to_hbm [thread:$0]  %s3918, 32, %s3920, [#allocation3]
    $region17: #{convnet_forward.5} parent=1 // pred_fallthru
      _
    // Predicated region
    $region18: #{convnet_forward.5} parent=1 // pred_check
      _
    $region19: #{convnet_forward.5} parent=1 // pred_check_branch
      %3924 = sbr.rel (0) target = $region21
    $region20: #{convnet_forward.5} parent=1 // pred_region
      %3926 = dma.done [#allocation3], 32
    $region21: #{convnet_forward.5} parent=1 // pred_fallthru
      _
    %3927 = vsyncpa [#allocation3], 1

</llo_original>
